<compile_context>
chip_gen: v5e
topology: v5e:2x2
jax: 0.10.0
libtpu: 0.0.40
codegen_flags: <defaults>
</compile_context>

<pallas_src>
import math

import jax
import jax.numpy as jnp
from jax.experimental import pallas as pl
from jax.experimental.pallas import tpu as pltpu

NUM_ANGLE_BIN = 12  # heading-bin count used by the Box_Estimation_Net_3D head


# --------------------------------------------------------------------------- #
# Fused kernel: both PointNet sub-networks, one batch element per grid step.
# --------------------------------------------------------------------------- #
def _front_pointnet_kernel(x_ref, *refs):
    (cr_w1, cr_b1, cr_w2, cr_b2, cr_w3, cr_b3,
     cr_fw1, cr_fb1, cr_fw2, cr_fb2, cr_fw3, cr_fb3) = refs[0:12]
    (be_w1, be_b1, be_w2, be_b2, be_w3, be_b3,
     be_fw1, be_fb1, be_fw2, be_fb2, be_fw3, be_fb3) = refs[12:24]
    center_ref, box_ref = refs[24:26]

    def layer(h, w_ref, b, relu=True, out_dtype=jnp.bfloat16):
        # bf16 MXU matmul with f32 accumulation; bias / ReLU in f32 on the VPU.
        y = jnp.dot(h, w_ref[...], preferred_element_type=jnp.float32) + b
        if relu:
            y = jnp.maximum(y, 0.0)
        return y.astype(out_dtype)

    x = x_ref[...]                                            # (N, 4) bf16 cloud

    # ------------------ Center_Regression_Net (T-Net) ----------------------- #
    h = layer(x, cr_w1, cr_b1[...])                           # (N, 128) bf16
    h = layer(h, cr_w2, cr_b2[...])                           # (N, 128) bf16
    h = layer(h, cr_w3, cr_b3[...], out_dtype=jnp.float32)    # (N, 256) f32
    g = jnp.max(h, axis=0, keepdims=True).astype(jnp.bfloat16)   # maxpool (1,256)
    f = layer(g, cr_fw1, cr_fb1[...])                         # (1, 256)
    f = layer(f, cr_fw2, cr_fb2[...])                         # (1, 128)
    # cr_fw3 / cr_fb3 are zero-padded to 4 output lanes in the wrapper, so the
    # 4th component of delta4 is exactly 0 -> delta4 == [dx, dy, dz, 0] and can
    # be used directly in the BE conv1 bias fold (no in-kernel pad/concat/slice).
    delta4 = layer(f, cr_fw3, cr_fb3[...], relu=False,
                   out_dtype=jnp.float32)                     # (1, 4)
    center_ref[...] = delta4

    # -------- Box_Estimation_Net_3D on re-centered points (bias fold) ------- #
    # relu((x - [d,0]) @ W1 + b1) == relu(x @ W1 + (b1 - [d,0] @ W1))
    b1_adj = be_b1[...] - jnp.dot(delta4.astype(jnp.bfloat16), be_w1[...],
                                  preferred_element_type=jnp.float32)  # (1, 128)
    h = layer(x, be_w1, b1_adj)                               # (N, 128) bf16
    h = layer(h, be_w2, be_b2[...])                           # (N, 256) bf16
    h = layer(h, be_w3, be_b3[...], out_dtype=jnp.float32)    # (N, 512) f32
    g = jnp.max(h, axis=0, keepdims=True).astype(jnp.bfloat16)   # maxpool (1,512)
    f = layer(g, be_fw1, be_fb1[...])                         # (1, 512)
    f = layer(f, be_fw2, be_fb2[...])                         # (1, 256)
    box_ref[...] = layer(f, be_fw3, be_fb3[...], relu=False,
                         out_dtype=jnp.float32)               # (1, 30)


def front_pointnet_pallas(point_cloud, cr_params, be_params):
    """Fused CR-net + BE-net.  Returns (center_delta (B,3), box_output (B,30))."""
    B, N, Cin = point_cloud.shape
    assert Cin == 4, "Front_PointNet expects 4 input channels (xyz + 1 feature)"
    assert N % 8 == 0

    be_out = be_params[-1].shape[-1]            # 3 + 2*NUM_ANGLE_BIN + 3

    # The cloud is only ever an MXU LHS -> feed it as bf16 (halves the DMA).
    x = point_cloud.astype(jnp.bfloat16)

    # Zero-pad the CR head (128->3) to (128->4): the extra output lane is exactly
    # 0, giving a lane-padded [dx,dy,dz,0] usable directly for the BE bias fold.
    cr_params = list(cr_params)
    cr_params[10] = jnp.pad(cr_params[10], ((0, 0), (0, 1)))   # fw3 (128,3)->(128,4)
    cr_params[11] = jnp.pad(cr_params[11], ((0, 0), (0, 1)))   # fb3 (1,3)->(1,4)

    # Whole (N,4) cloud per batch element; all weights/biases VMEM-resident
    # (~1.2 MiB bf16) — well under every generation's scoped-VMEM default, so no
    # vmem_limit_bytes override is needed at these sizes.
    x_spec = pl.BlockSpec((None, N, Cin), lambda b: (b, 0, 0))
    vmem_whole = pl.BlockSpec(memory_space=pltpu.MemorySpace.VMEM)

    center4, box = pl.pallas_call(
        _front_pointnet_kernel,
        grid=(B,),
        in_specs=[x_spec] + [vmem_whole] * (len(cr_params) + len(be_params)),
        out_specs=(
            pl.BlockSpec((None, 1, 4), lambda b: (b, 0, 0)),
            pl.BlockSpec((None, 1, be_out), lambda b: (b, 0, 0)),
        ),
        out_shape=(
            jax.ShapeDtypeStruct((B, 1, 4), jnp.float32),
            jax.ShapeDtypeStruct((B, 1, be_out), jnp.float32),
        ),
        compiler_params=pltpu.CompilerParams(
            dimension_semantics=("parallel",)),   # megacore over batch on v7x
    )(x, *cr_params, *be_params)

    return center4[:, 0, :3], box[:, 0, :]


# --------------------------------------------------------------------------- #
# Front_PointNet.forward
# --------------------------------------------------------------------------- #
def front_pointnet_forward(point_cloud, cr_params, be_params):
    center_delta, output = front_pointnet_pallas(point_cloud, cr_params, be_params)

    # TODO(synk): parse_output_to_tensors is not provided in the source; the split
    # below follows the standard frustum-pointnet layout implied by fc3's width.
    nab = NUM_ANGLE_BIN
    end_points = {}
    end_points['center_delta'] = center_delta
    end_points['center_res'] = output[:, 0:3]
    end_points['angle_scores'] = output[:, 3:3 + nab]
    end_points['angle_residuals_normalized'] = output[:, 3 + nab:3 + 2 * nab]
    end_points['angle_residuals'] = (
        end_points['angle_residuals_normalized'] * (jnp.pi / nab))
    end_points['size_res'] = output[:, 3 + 2 * nab:3 + 2 * nab + 3]
    end_points['center'] = end_points['center_res'] + end_points['center_delta']
    return end_points


# --------------------------------------------------------------------------- #
# Deterministic synthetic parameters (weights bf16, biases f32).
# --------------------------------------------------------------------------- #
def _init_subnet_params(key, layer_dims):
    params = []
    for cin, cout in layer_dims:
        key, kw, kb = jax.random.split(key, 3)
        w = (jax.random.normal(kw, (cin, cout), jnp.float32)
             * (1.0 / math.sqrt(cin))).astype(jnp.bfloat16)
        b = jax.random.normal(kb, (1, cout), jnp.float32) * 0.01
        params += [w, b]
    return params, key


def make_front_pointnet_params(key):
    # Center_Regression_Net: conv 4->128->128->256, fc 256->256->128->3
    cr_params, key = _init_subnet_params(
        key, [(4, 128), (128, 128), (128, 256), (256, 256), (256, 128), (128, 3)])
    # Box_Estimation_Net_3D: conv 4->128->256->512, fc 512->512->256->(3+2*NAB+3)
    be_out = 3 + NUM_ANGLE_BIN * 2 + 3
    be_params, key = _init_subnet_params(
        key, [(4, 128), (128, 256), (256, 512), (512, 512), (512, 256), (256, be_out)])
    return cr_params, be_params


# --------------------------------------------------------------------------- #
# Pure-JAX f32 reference (for a loose numeric sanity check).
# --------------------------------------------------------------------------- #
def _subnet_reference(x, params):
    p = [q.astype(jnp.float32) for q in params]

    def layer(h, w, b, relu=True):
        y = h @ w + b
        return jnp.maximum(y, 0.0) if relu else y

    h = layer(x, p[0], p[1])
    h = layer(h, p[2], p[3])
    h = layer(h, p[4], p[5])
    g = jnp.max(h, axis=1)
    f = layer(g, p[6], p[7])
    f = layer(f, p[8], p[9])
    return layer(f, p[10], p[11], relu=False)


def front_pointnet_reference(point_cloud, cr_params, be_params):
    center_delta = _subnet_reference(point_cloud, cr_params)
    xyz = point_cloud[:, :, :3] - center_delta[:, None, :]
    pc_new = jnp.concatenate([xyz, point_cloud[:, :, 3:]], axis=-1)
    output = _subnet_reference(pc_new, be_params)
    return center_delta, output


if __name__ == "__main__":
    key = jax.random.PRNGKey(0)
    B, NUM_POINTS, C = 2, 256, 4   # small shapes; N is a multiple of 256 so the
                                   # same kernel fills the 256-wide MXU M dim.

    key, k_pc, k_params = jax.random.split(key, 3)
    point_cloud = jax.random.normal(k_pc, (B, NUM_POINTS, C), jnp.float32)
    cr_params, be_params = make_front_pointnet_params(k_params)

    fwd = jax.jit(front_pointnet_forward)
    end_points = fwd(point_cloud, cr_params, be_params)
    jax.block_until_ready(end_points)

    # shape checks
    assert end_points['center_delta'].shape == (B, 3)
    assert end_points['center'].shape == (B, 3)
    assert end_points['angle_scores'].shape == (B, NUM_ANGLE_BIN)
    assert end_points['angle_residuals'].shape == (B, NUM_ANGLE_BIN)
    assert end_points['size_res'].shape == (B, 3)

    # loose numeric check vs. pure-JAX f32 reference (kernel runs bf16 matmuls
    # with bf16 inter-layer activations, f32 accumulation).
    ref_delta, ref_out = jax.jit(front_pointnet_reference)(
        point_cloud, cr_params, be_params)
    nab = NUM_ANGLE_BIN

    def max_err(a, b):
        return float(jnp.max(jnp.abs(a - b) / (1.0 + jnp.abs(b))))

    checks = [
        (end_points['center_delta'], ref_delta),
        (end_points['center'], ref_out[:, 0:3] + ref_delta),
        (end_points['angle_scores'], ref_out[:, 3:3 + nab]),
        (end_points['size_res'], ref_out[:, 3 + 2 * nab:3 + 2 * nab + 3]),
    ]
    worst = max(max_err(a, b) for a, b in checks)
    assert worst < 1.5e-1, f"kernel/reference mismatch: {worst}"

    print("KERNEL_OK")
</pallas_src>

<mosaic_0001>
module attributes {stable_mosaic.version = 11 : i64} {
  func.func @_front_pointnet_kernel(%arg0: i32, %arg1: memref<1x256x4xbf16, #tpu.memory_space<vmem>>, %arg2: memref<4x128xbf16, #tpu.memory_space<vmem>>, %arg3: memref<1x128xf32, #tpu.memory_space<vmem>>, %arg4: memref<128x128xbf16, #tpu.memory_space<vmem>>, %arg5: memref<1x128xf32, #tpu.memory_space<vmem>>, %arg6: memref<128x256xbf16, #tpu.memory_space<vmem>>, %arg7: memref<1x256xf32, #tpu.memory_space<vmem>>, %arg8: memref<256x256xbf16, #tpu.memory_space<vmem>>, %arg9: memref<1x256xf32, #tpu.memory_space<vmem>>, %arg10: memref<256x128xbf16, #tpu.memory_space<vmem>>, %arg11: memref<1x128xf32, #tpu.memory_space<vmem>>, %arg12: memref<128x4xbf16, #tpu.memory_space<vmem>>, %arg13: memref<1x4xf32, #tpu.memory_space<vmem>>, %arg14: memref<4x128xbf16, #tpu.memory_space<vmem>>, %arg15: memref<1x128xf32, #tpu.memory_space<vmem>>, %arg16: memref<128x256xbf16, #tpu.memory_space<vmem>>, %arg17: memref<1x256xf32, #tpu.memory_space<vmem>>, %arg18: memref<256x512xbf16, #tpu.memory_space<vmem>>, %arg19: memref<1x512xf32, #tpu.memory_space<vmem>>, %arg20: memref<512x512xbf16, #tpu.memory_space<vmem>>, %arg21: memref<1x512xf32, #tpu.memory_space<vmem>>, %arg22: memref<512x256xbf16, #tpu.memory_space<vmem>>, %arg23: memref<1x256xf32, #tpu.memory_space<vmem>>, %arg24: memref<256x30xbf16, #tpu.memory_space<vmem>>, %arg25: memref<1x30xf32, #tpu.memory_space<vmem>>, %arg26: memref<1x1x4xf32, #tpu.memory_space<vmem>>, %arg27: memref<1x1x30xf32, #tpu.memory_space<vmem>>) attributes {dimension_semantics = [#tpu.dimension_semantics<parallel>], iteration_bounds = array<i64: 2>, scalar_prefetch = 0 : i64, scratch_operands = 0 : i64, tpu.core_type = #tpu.core_type<tc>, window_params = [{transform_indices = @transform_0, window_bounds = array<i64: 1, 256, 4>}, {pipeline_mode = #tpu.pipeline_mode<synchronous>, transform_indices = @transform_1, window_bounds = array<i64: 4, 128>}, {pipeline_mode = #tpu.pipeline_mode<synchronous>, transform_indices = @transform_2, window_bounds = array<i64: 1, 128>}, {pipeline_mode = #tpu.pipeline_mode<synchronous>, transform_indices = @transform_3, window_bounds = array<i64: 128, 128>}, {pipeline_mode = #tpu.pipeline_mode<synchronous>, transform_indices = @transform_4, window_bounds = array<i64: 1, 128>}, {pipeline_mode = #tpu.pipeline_mode<synchronous>, transform_indices = @transform_5, window_bounds = array<i64: 128, 256>}, {pipeline_mode = #tpu.pipeline_mode<synchronous>, transform_indices = @transform_6, window_bounds = array<i64: 1, 256>}, {pipeline_mode = #tpu.pipeline_mode<synchronous>, transform_indices = @transform_7, window_bounds = array<i64: 256, 256>}, {pipeline_mode = #tpu.pipeline_mode<synchronous>, transform_indices = @transform_8, window_bounds = array<i64: 1, 256>}, {pipeline_mode = #tpu.pipeline_mode<synchronous>, transform_indices = @transform_9, window_bounds = array<i64: 256, 128>}, {pipeline_mode = #tpu.pipeline_mode<synchronous>, transform_indices = @transform_10, window_bounds = array<i64: 1, 128>}, {pipeline_mode = #tpu.pipeline_mode<synchronous>, transform_indices = @transform_11, window_bounds = array<i64: 128, 4>}, {pipeline_mode = #tpu.pipeline_mode<synchronous>, transform_indices = @transform_12, window_bounds = array<i64: 1, 4>}, {pipeline_mode = #tpu.pipeline_mode<synchronous>, transform_indices = @transform_13, window_bounds = array<i64: 4, 128>}, {pipeline_mode = #tpu.pipeline_mode<synchronous>, transform_indices = @transform_14, window_bounds = array<i64: 1, 128>}, {pipeline_mode = #tpu.pipeline_mode<synchronous>, transform_indices = @transform_15, window_bounds = array<i64: 128, 256>}, {pipeline_mode = #tpu.pipeline_mode<synchronous>, transform_indices = @transform_16, window_bounds = array<i64: 1, 256>}, {pipeline_mode = #tpu.pipeline_mode<synchronous>, transform_indices = @transform_17, window_bounds = array<i64: 256, 512>}, {pipeline_mode = #tpu.pipeline_mode<synchronous>, transform_indices = @transform_18, window_bounds = array<i64: 1, 512>}, {pipeline_mode = #tpu.pipeline_mode<synchronous>, transform_indices = @transform_19, window_bounds = array<i64: 512, 512>}, {pipeline_mode = #tpu.pipeline_mode<synchronous>, transform_indices = @transform_20, window_bounds = array<i64: 1, 512>}, {pipeline_mode = #tpu.pipeline_mode<synchronous>, transform_indices = @transform_21, window_bounds = array<i64: 512, 256>}, {pipeline_mode = #tpu.pipeline_mode<synchronous>, transform_indices = @transform_22, window_bounds = array<i64: 1, 256>}, {pipeline_mode = #tpu.pipeline_mode<synchronous>, transform_indices = @transform_23, window_bounds = array<i64: 256, 30>}, {pipeline_mode = #tpu.pipeline_mode<synchronous>, transform_indices = @transform_24, window_bounds = array<i64: 1, 30>}, {transform_indices = @transform_25, window_bounds = array<i64: 1, 1, 4>}, {transform_indices = @transform_26, window_bounds = array<i64: 1, 1, 30>}]} {
    %c0 = arith.constant 0 : index
    %c0_0 = arith.constant 0 : index
    %c0_1 = arith.constant 0 : index
    %0 = vector.load %arg1[%c0, %c0_0, %c0_1] : memref<1x256x4xbf16, #tpu.memory_space<vmem>>, vector<1x256x4xbf16>
    %1 = vector.shape_cast %0 : vector<1x256x4xbf16> to vector<256x4xbf16>
    %c0_2 = arith.constant 0 : index
    %c0_3 = arith.constant 0 : index
    %2 = vector.load %arg3[%c0_2, %c0_3] : memref<1x128xf32, #tpu.memory_space<vmem>>, vector<1x128xf32>
    %c0_4 = arith.constant 0 : index
    %c0_5 = arith.constant 0 : index
    %3 = vector.load %arg2[%c0_4, %c0_5] : memref<4x128xbf16, #tpu.memory_space<vmem>>, vector<4x128xbf16>
    %cst = arith.constant dense<0.000000e+00> : vector<256x128xf32>
    %4 = tpu.matmul %1, %3, %cst {dimension_numbers = #tpu.dot_dimension_numbers<[1], [0], [0], [1], [0, 0, 1, 1], [], []>} : vector<256x4xbf16>, vector<4x128xbf16>, vector<256x128xf32> -> vector<256x128xf32>
    %5 = vector.broadcast %2 : vector<1x128xf32> to vector<256x128xf32>
    %6 = arith.addf %4, %5 : vector<256x128xf32>
    %cst_6 = arith.constant 0.000000e+00 : f32
    %7 = vector.broadcast %cst_6 : f32 to vector<256x128xf32>
    %8 = arith.maximumf %6, %7 : vector<256x128xf32>
    %9 = arith.truncf %8 : vector<256x128xf32> to vector<256x128xbf16>
    %c0_7 = arith.constant 0 : index
    %c0_8 = arith.constant 0 : index
    %10 = vector.load %arg5[%c0_7, %c0_8] : memref<1x128xf32, #tpu.memory_space<vmem>>, vector<1x128xf32>
    %c0_9 = arith.constant 0 : index
    %c0_10 = arith.constant 0 : index
    %11 = vector.load %arg4[%c0_9, %c0_10] : memref<128x128xbf16, #tpu.memory_space<vmem>>, vector<128x128xbf16>
    %cst_11 = arith.constant dense<0.000000e+00> : vector<256x128xf32>
    %12 = tpu.matmul %9, %11, %cst_11 {dimension_numbers = #tpu.dot_dimension_numbers<[1], [0], [0], [1], [0, 0, 1, 1], [], []>} : vector<256x128xbf16>, vector<128x128xbf16>, vector<256x128xf32> -> vector<256x128xf32>
    %13 = vector.broadcast %10 : vector<1x128xf32> to vector<256x128xf32>
    %14 = arith.addf %12, %13 : vector<256x128xf32>
    %cst_12 = arith.constant 0.000000e+00 : f32
    %15 = vector.broadcast %cst_12 : f32 to vector<256x128xf32>
    %16 = arith.maximumf %14, %15 : vector<256x128xf32>
    %17 = arith.truncf %16 : vector<256x128xf32> to vector<256x128xbf16>
    %c0_13 = arith.constant 0 : index
    %c0_14 = arith.constant 0 : index
    %18 = vector.load %arg7[%c0_13, %c0_14] : memref<1x256xf32, #tpu.memory_space<vmem>>, vector<1x256xf32>
    %c0_15 = arith.constant 0 : index
    %c0_16 = arith.constant 0 : index
    %19 = vector.load %arg6[%c0_15, %c0_16] : memref<128x256xbf16, #tpu.memory_space<vmem>>, vector<128x256xbf16>
    %cst_17 = arith.constant dense<0.000000e+00> : vector<256x256xf32>
    %20 = tpu.matmul %17, %19, %cst_17 {dimension_numbers = #tpu.dot_dimension_numbers<[1], [0], [0], [1], [0, 0, 1, 1], [], []>} : vector<256x128xbf16>, vector<128x256xbf16>, vector<256x256xf32> -> vector<256x256xf32>
    %21 = vector.broadcast %18 : vector<1x256xf32> to vector<256x256xf32>
    %22 = arith.addf %20, %21 : vector<256x256xf32>
    %cst_18 = arith.constant 0.000000e+00 : f32
    %23 = vector.broadcast %cst_18 : f32 to vector<256x256xf32>
    %24 = arith.maximumf %22, %23 : vector<256x256xf32>
    %cst_19 = arith.constant dense<0xFF800000> : vector<256xf32>
    %25 = vector.multi_reduction <maximumf>, %24, %cst_19 [0] : vector<256x256xf32> to vector<256xf32>
    %26 = vector.shape_cast %25 : vector<256xf32> to vector<1x256xf32>
    %27 = arith.truncf %26 : vector<1x256xf32> to vector<1x256xbf16>
    %c0_20 = arith.constant 0 : index
    %c0_21 = arith.constant 0 : index
    %28 = vector.load %arg9[%c0_20, %c0_21] : memref<1x256xf32, #tpu.memory_space<vmem>>, vector<1x256xf32>
    %c0_22 = arith.constant 0 : index
    %c0_23 = arith.constant 0 : index
    %29 = vector.load %arg8[%c0_22, %c0_23] : memref<256x256xbf16, #tpu.memory_space<vmem>>, vector<256x256xbf16>
    %cst_24 = arith.constant dense<0.000000e+00> : vector<1x256xf32>
    %30 = tpu.matmul %27, %29, %cst_24 {dimension_numbers = #tpu.dot_dimension_numbers<[1], [0], [0], [1], [0, 0, 1, 1], [], []>} : vector<1x256xbf16>, vector<256x256xbf16>, vector<1x256xf32> -> vector<1x256xf32>
    %31 = arith.addf %30, %28 : vector<1x256xf32>
    %cst_25 = arith.constant 0.000000e+00 : f32
    %32 = vector.broadcast %cst_25 : f32 to vector<1x256xf32>
    %33 = arith.maximumf %31, %32 : vector<1x256xf32>
    %34 = arith.truncf %33 : vector<1x256xf32> to vector<1x256xbf16>
    %c0_26 = arith.constant 0 : index
    %c0_27 = arith.constant 0 : index
    %35 = vector.load %arg11[%c0_26, %c0_27] : memref<1x128xf32, #tpu.memory_space<vmem>>, vector<1x128xf32>
    %c0_28 = arith.constant 0 : index
    %c0_29 = arith.constant 0 : index
    %36 = vector.load %arg10[%c0_28, %c0_29] : memref<256x128xbf16, #tpu.memory_space<vmem>>, vector<256x128xbf16>
    %cst_30 = arith.constant dense<0.000000e+00> : vector<1x128xf32>
    %37 = tpu.matmul %34, %36, %cst_30 {dimension_numbers = #tpu.dot_dimension_numbers<[1], [0], [0], [1], [0, 0, 1, 1], [], []>} : vector<1x256xbf16>, vector<256x128xbf16>, vector<1x128xf32> -> vector<1x128xf32>
    %38 = arith.addf %37, %35 : vector<1x128xf32>
    %cst_31 = arith.constant 0.000000e+00 : f32
    %39 = vector.broadcast %cst_31 : f32 to vector<1x128xf32>
    %40 = arith.maximumf %38, %39 : vector<1x128xf32>
    %41 = arith.truncf %40 : vector<1x128xf32> to vector<1x128xbf16>
    %c0_32 = arith.constant 0 : index
    %c0_33 = arith.constant 0 : index
    %42 = vector.load %arg13[%c0_32, %c0_33] : memref<1x4xf32, #tpu.memory_space<vmem>>, vector<1x4xf32>
    %c0_34 = arith.constant 0 : index
    %c0_35 = arith.constant 0 : index
    %43 = vector.load %arg12[%c0_34, %c0_35] : memref<128x4xbf16, #tpu.memory_space<vmem>>, vector<128x4xbf16>
    %cst_36 = arith.constant dense<0.000000e+00> : vector<1x4xf32>
    %44 = tpu.matmul %41, %43, %cst_36 {dimension_numbers = #tpu.dot_dimension_numbers<[1], [0], [0], [1], [0, 0, 1, 1], [], []>} : vector<1x128xbf16>, vector<128x4xbf16>, vector<1x4xf32> -> vector<1x4xf32>
    %45 = arith.addf %44, %42 : vector<1x4xf32>
    %c0_37 = arith.constant 0 : index
    %c0_38 = arith.constant 0 : index
    %c0_39 = arith.constant 0 : index
    %46 = vector.load %arg26[%c0_37, %c0_38, %c0_39] : memref<1x1x4xf32, #tpu.memory_space<vmem>>, vector<1x1x4xf32>
    %47 = vector.shape_cast %46 : vector<1x1x4xf32> to vector<1x4xf32>
    %48 = vector.shape_cast %45 : vector<1x4xf32> to vector<1x1x4xf32>
    tpu.vector_store %arg26[%c0_37, %c0_38, %c0_39], %48 {strides = array<i32>} : memref<1x1x4xf32, #tpu.memory_space<vmem>>, vector<1x1x4xf32>,
    %c0_40 = arith.constant 0 : index
    %c0_41 = arith.constant 0 : index
    %49 = vector.load %arg15[%c0_40, %c0_41] : memref<1x128xf32, #tpu.memory_space<vmem>>, vector<1x128xf32>
    %50 = arith.truncf %45 : vector<1x4xf32> to vector<1x4xbf16>
    %c0_42 = arith.constant 0 : index
    %c0_43 = arith.constant 0 : index
    %51 = vector.load %arg14[%c0_42, %c0_43] : memref<4x128xbf16, #tpu.memory_space<vmem>>, vector<4x128xbf16>
    %cst_44 = arith.constant dense<0.000000e+00> : vector<1x128xf32>
    %52 = tpu.matmul %50, %51, %cst_44 {dimension_numbers = #tpu.dot_dimension_numbers<[1], [0], [0], [1], [0, 0, 1, 1], [], []>} : vector<1x4xbf16>, vector<4x128xbf16>, vector<1x128xf32> -> vector<1x128xf32>
    %53 = arith.subf %49, %52 : vector<1x128xf32>
    %c0_45 = arith.constant 0 : index
    %c0_46 = arith.constant 0 : index
    %54 = vector.load %arg14[%c0_45, %c0_46] : memref<4x128xbf16, #tpu.memory_space<vmem>>, vector<4x128xbf16>
    %cst_47 = arith.constant dense<0.000000e+00> : vector<256x128xf32>
    %55 = tpu.matmul %1, %54, %cst_47 {dimension_numbers = #tpu.dot_dimension_numbers<[1], [0], [0], [1], [0, 0, 1, 1], [], []>} : vector<256x4xbf16>, vector<4x128xbf16>, vector<256x128xf32> -> vector<256x128xf32>
    %56 = vector.broadcast %53 : vector<1x128xf32> to vector<256x128xf32>
    %57 = arith.addf %55, %56 : vector<256x128xf32>
    %cst_48 = arith.constant 0.000000e+00 : f32
    %58 = vector.broadcast %cst_48 : f32 to vector<256x128xf32>
    %59 = arith.maximumf %57, %58 : vector<256x128xf32>
    %60 = arith.truncf %59 : vector<256x128xf32> to vector<256x128xbf16>
    %c0_49 = arith.constant 0 : index
    %c0_50 = arith.constant 0 : index
    %61 = vector.load %arg17[%c0_49, %c0_50] : memref<1x256xf32, #tpu.memory_space<vmem>>, vector<1x256xf32>
    %c0_51 = arith.constant 0 : index
    %c0_52 = arith.constant 0 : index
    %62 = vector.load %arg16[%c0_51, %c0_52] : memref<128x256xbf16, #tpu.memory_space<vmem>>, vector<128x256xbf16>
    %cst_53 = arith.constant dense<0.000000e+00> : vector<256x256xf32>
    %63 = tpu.matmul %60, %62, %cst_53 {dimension_numbers = #tpu.dot_dimension_numbers<[1], [0], [0], [1], [0, 0, 1, 1], [], []>} : vector<256x128xbf16>, vector<128x256xbf16>, vector<256x256xf32> -> vector<256x256xf32>
    %64 = vector.broadcast %61 : vector<1x256xf32> to vector<256x256xf32>
    %65 = arith.addf %63, %64 : vector<256x256xf32>
    %cst_54 = arith.constant 0.000000e+00 : f32
    %66 = vector.broadcast %cst_54 : f32 to vector<256x256xf32>
    %67 = arith.maximumf %65, %66 : vector<256x256xf32>
    %68 = arith.truncf %67 : vector<256x256xf32> to vector<256x256xbf16>
    %c0_55 = arith.constant 0 : index
    %c0_56 = arith.constant 0 : index
    %69 = vector.load %arg19[%c0_55, %c0_56] : memref<1x512xf32, #tpu.memory_space<vmem>>, vector<1x512xf32>
    %c0_57 = arith.constant 0 : index
    %c0_58 = arith.constant 0 : index
    %70 = vector.load %arg18[%c0_57, %c0_58] : memref<256x512xbf16, #tpu.memory_space<vmem>>, vector<256x512xbf16>
    %cst_59 = arith.constant dense<0.000000e+00> : vector<256x512xf32>
    %71 = tpu.matmul %68, %70, %cst_59 {dimension_numbers = #tpu.dot_dimension_numbers<[1], [0], [0], [1], [0, 0, 1, 1], [], []>} : vector<256x256xbf16>, vector<256x512xbf16>, vector<256x512xf32> -> vector<256x512xf32>
    %72 = vector.broadcast %69 : vector<1x512xf32> to vector<256x512xf32>
    %73 = arith.addf %71, %72 : vector<256x512xf32>
    %cst_60 = arith.constant 0.000000e+00 : f32
    %74 = vector.broadcast %cst_60 : f32 to vector<256x512xf32>
    %75 = arith.maximumf %73, %74 : vector<256x512xf32>
    %cst_61 = arith.constant dense<0xFF800000> : vector<512xf32>
    %76 = vector.multi_reduction <maximumf>, %75, %cst_61 [0] : vector<256x512xf32> to vector<512xf32>
    %77 = vector.shape_cast %76 : vector<512xf32> to vector<1x512xf32>
    %78 = arith.truncf %77 : vector<1x512xf32> to vector<1x512xbf16>
    %c0_62 = arith.constant 0 : index
    %c0_63 = arith.constant 0 : index
    %79 = vector.load %arg21[%c0_62, %c0_63] : memref<1x512xf32, #tpu.memory_space<vmem>>, vector<1x512xf32>
    %c0_64 = arith.constant 0 : index
    %c0_65 = arith.constant 0 : index
    %80 = vector.load %arg20[%c0_64, %c0_65] : memref<512x512xbf16, #tpu.memory_space<vmem>>, vector<512x512xbf16>
    %cst_66 = arith.constant dense<0.000000e+00> : vector<1x512xf32>
    %81 = tpu.matmul %78, %80, %cst_66 {dimension_numbers = #tpu.dot_dimension_numbers<[1], [0], [0], [1], [0, 0, 1, 1], [], []>} : vector<1x512xbf16>, vector<512x512xbf16>, vector<1x512xf32> -> vector<1x512xf32>
    %82 = arith.addf %81, %79 : vector<1x512xf32>
    %cst_67 = arith.constant 0.000000e+00 : f32
    %83 = vector.broadcast %cst_67 : f32 to vector<1x512xf32>
    %84 = arith.maximumf %82, %83 : vector<1x512xf32>
    %85 = arith.truncf %84 : vector<1x512xf32> to vector<1x512xbf16>
    %c0_68 = arith.constant 0 : index
    %c0_69 = arith.constant 0 : index
    %86 = vector.load %arg23[%c0_68, %c0_69] : memref<1x256xf32, #tpu.memory_space<vmem>>, vector<1x256xf32>
    %c0_70 = arith.constant 0 : index
    %c0_71 = arith.constant 0 : index
    %87 = vector.load %arg22[%c0_70, %c0_71] : memref<512x256xbf16, #tpu.memory_space<vmem>>, vector<512x256xbf16>
    %cst_72 = arith.constant dense<0.000000e+00> : vector<1x256xf32>
    %88 = tpu.matmul %85, %87, %cst_72 {dimension_numbers = #tpu.dot_dimension_numbers<[1], [0], [0], [1], [0, 0, 1, 1], [], []>} : vector<1x512xbf16>, vector<512x256xbf16>, vector<1x256xf32> -> vector<1x256xf32>
    %89 = arith.addf %88, %86 : vector<1x256xf32>
    %cst_73 = arith.constant 0.000000e+00 : f32
    %90 = vector.broadcast %cst_73 : f32 to vector<1x256xf32>
    %91 = arith.maximumf %89, %90 : vector<1x256xf32>
    %92 = arith.truncf %91 : vector<1x256xf32> to vector<1x256xbf16>
    %c0_74 = arith.constant 0 : index
    %c0_75 = arith.constant 0 : index
    %93 = vector.load %arg25[%c0_74, %c0_75] : memref<1x30xf32, #tpu.memory_space<vmem>>, vector<1x30xf32>
    %c0_76 = arith.constant 0 : index
    %c0_77 = arith.constant 0 : index
    %94 = vector.load %arg24[%c0_76, %c0_77] : memref<256x30xbf16, #tpu.memory_space<vmem>>, vector<256x30xbf16>
    %cst_78 = arith.constant dense<0.000000e+00> : vector<1x30xf32>
    %95 = tpu.matmul %92, %94, %cst_78 {dimension_numbers = #tpu.dot_dimension_numbers<[1], [0], [0], [1], [0, 0, 1, 1], [], []>} : vector<1x256xbf16>, vector<256x30xbf16>, vector<1x30xf32> -> vector<1x30xf32>
    %96 = arith.addf %95, %93 : vector<1x30xf32>
    %c0_79 = arith.constant 0 : index
    %c0_80 = arith.constant 0 : index
    %c0_81 = arith.constant 0 : index
    %97 = vector.load %arg27[%c0_79, %c0_80, %c0_81] : memref<1x1x30xf32, #tpu.memory_space<vmem>>, vector<1x1x30xf32>
    %98 = vector.shape_cast %97 : vector<1x1x30xf32> to vector<1x30xf32>
    %99 = vector.shape_cast %96 : vector<1x30xf32> to vector<1x1x30xf32>
    tpu.vector_store %arg27[%c0_79, %c0_80, %c0_81], %99 {strides = array<i32>} : memref<1x1x30xf32, #tpu.memory_space<vmem>>, vector<1x1x30xf32>,
    return
  }
  func.func @transform_0(%arg0: i32) -> (i32, i32, i32) {
    %c0_i32 = arith.constant 0 : i32
    %c0_i32_0 = arith.constant 0 : i32
    %c0_i32_1 = arith.constant 0 : i32
    return %arg0, %c0_i32, %c0_i32_0 : i32, i32, i32
  }
  func.func @transform_1(%arg0: i32) -> (i32, i32) {
    %c0_i32 = arith.constant 0 : i32
    %c0_i32_0 = arith.constant 0 : i32
    %c0_i32_1 = arith.constant 0 : i32
    return %c0_i32, %c0_i32_0 : i32, i32
  }
  func.func @transform_2(%arg0: i32) -> (i32, i32) {
    %c0_i32 = arith.constant 0 : i32
    %c0_i32_0 = arith.constant 0 : i32
    %c0_i32_1 = arith.constant 0 : i32
    return %c0_i32, %c0_i32_0 : i32, i32
  }
  func.func @transform_3(%arg0: i32) -> (i32, i32) {
    %c0_i32 = arith.constant 0 : i32
    %c0_i32_0 = arith.constant 0 : i32
    %c0_i32_1 = arith.constant 0 : i32
    return %c0_i32, %c0_i32_0 : i32, i32
  }
  func.func @transform_4(%arg0: i32) -> (i32, i32) {
    %c0_i32 = arith.constant 0 : i32
    %c0_i32_0 = arith.constant 0 : i32
    %c0_i32_1 = arith.constant 0 : i32
    return %c0_i32, %c0_i32_0 : i32, i32
  }
  func.func @transform_5(%arg0: i32) -> (i32, i32) {
    %c0_i32 = arith.constant 0 : i32
    %c0_i32_0 = arith.constant 0 : i32
    %c0_i32_1 = arith.constant 0 : i32
    return %c0_i32, %c0_i32_0 : i32, i32
  }
  func.func @transform_6(%arg0: i32) -> (i32, i32) {
    %c0_i32 = arith.constant 0 : i32
    %c0_i32_0 = arith.constant 0 : i32
    %c0_i32_1 = arith.constant 0 : i32
    return %c0_i32, %c0_i32_0 : i32, i32
  }
  func.func @transform_7(%arg0: i32) -> (i32, i32) {
    %c0_i32 = arith.constant 0 : i32
    %c0_i32_0 = arith.constant 0 : i32
    %c0_i32_1 = arith.constant 0 : i32
    return %c0_i32, %c0_i32_0 : i32, i32
  }
  func.func @transform_8(%arg0: i32) -> (i32, i32) {
    %c0_i32 = arith.constant 0 : i32
    %c0_i32_0 = arith.constant 0 : i32
    %c0_i32_1 = arith.constant 0 : i32
    return %c0_i32, %c0_i32_0 : i32, i32
  }
  func.func @transform_9(%arg0: i32) -> (i32, i32) {
    %c0_i32 = arith.constant 0 : i32
    %c0_i32_0 = arith.constant 0 : i32
    %c0_i32_1 = arith.constant 0 : i32
    return %c0_i32, %c0_i32_0 : i32, i32
  }
  func.func @transform_10(%arg0: i32) -> (i32, i32) {
    %c0_i32 = arith.constant 0 : i32
    %c0_i32_0 = arith.constant 0 : i32
    %c0_i32_1 = arith.constant 0 : i32
    return %c0_i32, %c0_i32_0 : i32, i32
  }
  func.func @transform_11(%arg0: i32) -> (i32, i32) {
    %c0_i32 = arith.constant 0 : i32
    %c0_i32_0 = arith.constant 0 : i32
    %c0_i32_1 = arith.constant 0 : i32
    return %c0_i32, %c0_i32_0 : i32, i32
  }
  func.func @transform_12(%arg0: i32) -> (i32, i32) {
    %c0_i32 = arith.constant 0 : i32
    %c0_i32_0 = arith.constant 0 : i32
    %c0_i32_1 = arith.constant 0 : i32
    return %c0_i32, %c0_i32_0 : i32, i32
  }
  func.func @transform_13(%arg0: i32) -> (i32, i32) {
    %c0_i32 = arith.constant 0 : i32
    %c0_i32_0 = arith.constant 0 : i32
    %c0_i32_1 = arith.constant 0 : i32
    return %c0_i32, %c0_i32_0 : i32, i32
  }
  func.func @transform_14(%arg0: i32) -> (i32, i32) {
    %c0_i32 = arith.constant 0 : i32
    %c0_i32_0 = arith.constant 0 : i32
    %c0_i32_1 = arith.constant 0 : i32
    return %c0_i32, %c0_i32_0 : i32, i32
  }
  func.func @transform_15(%arg0: i32) -> (i32, i32) {
    %c0_i32 = arith.constant 0 : i32
    %c0_i32_0 = arith.constant 0 : i32
    %c0_i32_1 = arith.constant 0 : i32
    return %c0_i32, %c0_i32_0 : i32, i32
  }
  func.func @transform_16(%arg0: i32) -> (i32, i32) {
    %c0_i32 = arith.constant 0 : i32
    %c0_i32_0 = arith.constant 0 : i32
    %c0_i32_1 = arith.constant 0 : i32
    return %c0_i32, %c0_i32_0 : i32, i32
  }
  func.func @transform_17(%arg0: i32) -> (i32, i32) {
    %c0_i32 = arith.constant 0 : i32
    %c0_i32_0 = arith.constant 0 : i32
    %c0_i32_1 = arith.constant 0 : i32
    return %c0_i32, %c0_i32_0 : i32, i32
  }
  func.func @transform_18(%arg0: i32) -> (i32, i32) {
    %c0_i32 = arith.constant 0 : i32
    %c0_i32_0 = arith.constant 0 : i32
    %c0_i32_1 = arith.constant 0 : i32
    return %c0_i32, %c0_i32_0 : i32, i32
  }
  func.func @transform_19(%arg0: i32) -> (i32, i32) {
    %c0_i32 = arith.constant 0 : i32
    %c0_i32_0 = arith.constant 0 : i32
    %c0_i32_1 = arith.constant 0 : i32
    return %c0_i32, %c0_i32_0 : i32, i32
  }
  func.func @transform_20(%arg0: i32) -> (i32, i32) {
    %c0_i32 = arith.constant 0 : i32
    %c0_i32_0 = arith.constant 0 : i32
    %c0_i32_1 = arith.constant 0 : i32
    return %c0_i32, %c0_i32_0 : i32, i32
  }
  func.func @transform_21(%arg0: i32) -> (i32, i32) {
    %c0_i32 = arith.constant 0 : i32
    %c0_i32_0 = arith.constant 0 : i32
    %c0_i32_1 = arith.constant 0 : i32
    return %c0_i32, %c0_i32_0 : i32, i32
  }
  func.func @transform_22(%arg0: i32) -> (i32, i32) {
    %c0_i32 = arith.constant 0 : i32
    %c0_i32_0 = arith.constant 0 : i32
    %c0_i32_1 = arith.constant 0 : i32
    return %c0_i32, %c0_i32_0 : i32, i32
  }
  func.func @transform_23(%arg0: i32) -> (i32, i32) {
    %c0_i32 = arith.constant 0 : i32
    %c0_i32_0 = arith.constant 0 : i32
    %c0_i32_1 = arith.constant 0 : i32
    return %c0_i32, %c0_i32_0 : i32, i32
  }
  func.func @transform_24(%arg0: i32) -> (i32, i32) {
    %c0_i32 = arith.constant 0 : i32
    %c0_i32_0 = arith.constant 0 : i32
    %c0_i32_1 = arith.constant 0 : i32
    return %c0_i32, %c0_i32_0 : i32, i32
  }
  func.func @transform_25(%arg0: i32) -> (i32, i32, i32) {
    %c0_i32 = arith.constant 0 : i32
    %c0_i32_0 = arith.constant 0 : i32
    %c0_i32_1 = arith.constant 0 : i32
    return %arg0, %c0_i32, %c0_i32_0 : i32, i32, i32
  }
  func.func @transform_26(%arg0: i32) -> (i32, i32, i32) {
    %c0_i32 = arith.constant 0 : i32
    %c0_i32_0 = arith.constant 0 : i32
    %c0_i32_1 = arith.constant 0 : i32
    return %arg0, %c0_i32, %c0_i32_0 : i32, i32, i32
  }
}

</mosaic_0001>

<llo_original>
// kernel: front_pointnet_forward.1
$region0: #{front_pointnet_forward.1}
  #allocation0 [shape = 'u32[]', space=smem, size = 0x4, offset = 0x4, fixed_abs, tag = 'smem constant byte address 0x4 - core index']
  #allocation1 [shape = 'u32[72,128]{1,0:T(1,128)}', space=vmem, size = 0x9000, scoped, tag = 'internal scratch']
  %s0 = inlined_call_operand.vmem [shape: bf16[2,256,4], index: 0, kind: input, shape index: {}]
  %s1 = inlined_call_operand.vmem [shape: bf16[4,128], index: 1, kind: input, shape index: {}]
  %s2 = inlined_call_operand.vmem [shape: f32[1,128], index: 2, kind: input, shape index: {}]
  %s3 = inlined_call_operand.vmem [shape: bf16[128,128], index: 3, kind: input, shape index: {}]
  %s4 = inlined_call_operand.vmem [shape: f32[1,128], index: 4, kind: input, shape index: {}]
  %s5 = inlined_call_operand.vmem [shape: bf16[128,256], index: 5, kind: input, shape index: {}]
  %s6 = inlined_call_operand.vmem [shape: f32[1,256], index: 6, kind: input, shape index: {}]
  %s7 = inlined_call_operand.vmem [shape: bf16[256,256], index: 7, kind: input, shape index: {}]
  %s8 = inlined_call_operand.vmem [shape: f32[1,256], index: 8, kind: input, shape index: {}]
  %s9 = inlined_call_operand.vmem [shape: bf16[256,128], index: 9, kind: input, shape index: {}]
  %s10 = inlined_call_operand.vmem [shape: f32[1,128], index: 10, kind: input, shape index: {}]
  %s11 = inlined_call_operand.vmem [shape: bf16[128,4], index: 11, kind: input, shape index: {}]
  %s12 = inlined_call_operand.vmem [shape: f32[1,4], index: 12, kind: input, shape index: {}]
  %s13 = inlined_call_operand.vmem [shape: bf16[4,128], index: 13, kind: input, shape index: {}]
  %s14 = inlined_call_operand.vmem [shape: f32[1,128], index: 14, kind: input, shape index: {}]
  %s15 = inlined_call_operand.hbm [shape: bf16[128,256], index: 15, kind: input, shape index: {}]
  %s16 = inlined_call_operand.vmem [shape: f32[1,256], index: 16, kind: input, shape index: {}]
  %s17 = inlined_call_operand.hbm [shape: bf16[256,512], index: 17, kind: input, shape index: {}]
  %s18 = inlined_call_operand.vmem [shape: f32[1,512], index: 18, kind: input, shape index: {}]
  %s19 = inlined_call_operand.hbm [shape: bf16[512,512], index: 19, kind: input, shape index: {}]
  %s20 = inlined_call_operand.vmem [shape: f32[1,512], index: 20, kind: input, shape index: {}]
  %s21 = inlined_call_operand.hbm [shape: bf16[512,256], index: 21, kind: input, shape index: {}]
  %s22 = inlined_call_operand.vmem [shape: f32[1,256], index: 22, kind: input, shape index: {}]
  %s23 = inlined_call_operand.vmem [shape: bf16[256,30], index: 23, kind: input, shape index: {}]
  %s24 = inlined_call_operand.vmem [shape: f32[1,30], index: 24, kind: input, shape index: {}]
  %s25 = inlined_call_operand.vmem [shape: f32[2,1,4], index: 25, kind: output, shape index: {0}]
  %s26 = inlined_call_operand.vmem [shape: f32[2,1,30], index: 26, kind: output, shape index: {1}]
  %27 = xla_tuple %s25, %s26
  %s28 = sld [smem:[#allocation0]]
  $region157: #{front_pointnet_forward.1} parent=0
    _
  %s30 = ssub.s32 1, %s28
  %s31 = scalar_select 0, %s30, %s28
  $region1: #{front_pointnet_forward.1} parent=0
    #allocation2 [shape = 'u8[65536]{0}', space=vmem, size = 0x10000, scoped, tag = 'input window, operand 15, single buffered']
    #allocation3 [shape = 's32[2]{0}', space=sflag, size = 0x8, scoped, tag = 'scoped memory for front_pointnet_forward.1']
    #allocation4 [shape = 'u8[262144]{0}', space=vmem, size = 0x40000, scoped, tag = 'input window, operand 17, single buffered']
    #allocation5 [shape = 's32[1]{0}', space=sflag, size = 0x4, scoped, tag = 'scoped memory for front_pointnet_forward.1']
    #allocation6 [shape = 'u8[524288]{0}', space=vmem, size = 0x80000, scoped, tag = 'input window, operand 19, single buffered']
    #allocation7 [shape = 'u8[262144]{0}', space=vmem, size = 0x40000, scoped, tag = 'input window, operand 21, single buffered']
    #allocation8 [shape = 's32[1]{0}', space=sflag, size = 0x4, scoped, tag = 'scoped memory for front_pointnet_forward.1']
    %32 = vsyncpa [#allocation3], 0
    %33 = vsyncpa [#allocation5], 0
    %34 = vsyncpa [#allocation8], 0
    loop: start=0, step=1, limit=4
    $region2: #{front_pointnet_forward.1} parent=1 // loop_pre_header
      _
    $region3: #{front_pointnet_forward.1} parent=1 // loop_header
      %s36 = sphi 0, %s40
      %p37 = scmp.ge.s32.totalorder %s36, 4
      %s46 = sphi 0, %s48
      %s49 = sphi 0, %s46
      %s50 = sphi 0, %s49
      %s66 = sphi 0, %s50
      %s70 = sphi 0, %s70
      %s72 = sphi 0, %s70
      %s73 = sphi 0, %s72
      %s87 = sphi 0, %s73
      %s91 = sphi 0, %s91
      %s93 = sphi 0, %s91
      %s94 = sphi 0, %s93
      %s108 = sphi 0, %s94
      %s112 = sphi 0, %s112
      %s114 = sphi 0, %s112
      %s115 = sphi 0, %s114
      %s129 = sphi 0, %s115
      %s133 = sphi 0, %s133
      %s135 = sphi 0, %s133
      %s136 = sphi 0, %s135
      %s150 = sphi 0, %s136
      %s154 = sphi 0, %s154
      %s156 = sphi 0, %s154
      %s157 = sphi 0, %s156
      %s171 = sphi 0, %s157
      %s175 = sphi 0, %s175
      %s177 = sphi 0, %s175
      %s178 = sphi 0, %s177
      %s192 = sphi 0, %s178
      %s196 = sphi 0, %s196
      %s198 = sphi 0, %s196
      %s199 = sphi 0, %s198
      %s213 = sphi 0, %s199
      %s217 = sphi 0, %s217
      %s219 = sphi 0, %s217
      %s220 = sphi 0, %s219
      %s234 = sphi 0, %s220
      %s238 = sphi 0, %s238
      %s240 = sphi 0, %s238
      %s241 = sphi 0, %s240
      %s255 = sphi 0, %s241
      %s259 = sphi 0, %s259
      %s261 = sphi 0, %s259
      %s262 = sphi 0, %s261
      %s276 = sphi 0, %s262
      %s280 = sphi 0, %s280
      %s282 = sphi 0, %s280
      %s283 = sphi 0, %s282
      %s297 = sphi 0, %s283
      %s301 = sphi 0, %s301
      %s303 = sphi 0, %s301
      %s304 = sphi 0, %s303
      %s318 = sphi 0, %s304
      %s322 = sphi 0, %s322
      %s324 = sphi 0, %s322
      %s325 = sphi 0, %s324
      %s339 = sphi 0, %s325
      %s343 = sphi 0, %s343
      %s345 = sphi 0, %s343
      %s346 = sphi 0, %s345
      %s360 = sphi 0, %s346
      %s364 = sphi 0, %s364
      %s366 = sphi 0, %s364
      %s367 = sphi 0, %s366
      %s381 = sphi 0, %s367
      %s385 = sphi 0, %s385
      %s387 = sphi 0, %s385
      %s388 = sphi 0, %s387
      %s402 = sphi 0, %s388
      %s406 = sphi 0, %s406
      %s408 = sphi 0, %s406
      %s409 = sphi 0, %s408
      %s423 = sphi 0, %s409
      %s427 = sphi 0, %s427
      %s429 = sphi 0, %s427
      %s430 = sphi 0, %s429
      %s444 = sphi 0, %s430
      %s448 = sphi 0, %s448
      %s450 = sphi 0, %s448
      %s451 = sphi 0, %s450
      %s465 = sphi 0, %s451
      %s469 = sphi 0, %s469
      %s471 = sphi 0, %s469
      %s472 = sphi 0, %s471
      %s486 = sphi 0, %s472
      %s490 = sphi 0, %s490
      %s492 = sphi 0, %s490
      %s493 = sphi 0, %s492
      %s507 = sphi 0, %s493
      %s511 = sphi 0, %s511
      %s513 = sphi 0, %s511
      %s514 = sphi 0, %s513
      %s528 = sphi 0, %s514
      %s532 = sphi 0, %s532
      %s534 = sphi 0, %s532
      %s535 = sphi 0, %s534
      %s549 = sphi 0, %s535
      %s553 = sphi 0, %s553
      %s555 = sphi 0, %s553
      %s556 = sphi 0, %s555
      %s570 = sphi 0, %s556
      %s576 = sphi 0, %s578
      %s579 = sphi 0, %s576
      %s580 = sphi 0, %s579
      %s596 = sphi 0, %s580
      %s602 = sphi 0, %s604
      %s605 = sphi 0, %s602
      %s606 = sphi 0, %s605
      %s622 = sphi 0, %s606
    $region4: #{front_pointnet_forward.1} parent=1 // loop_header_branch
      %39 = sbr.rel (%p37) target = $region8
    $region5: #{front_pointnet_forward.1} parent=1 // loop_body
      %s41 = ssub.s32 %s36, 1
      %s42 = ssub.s32 %s36, 2
      %s43 = sadd.s32 %s36, 1
      %s44 = ssub.s32 %s36, %s43
      %p45 = scmp.eq.s32.totalorder %s44, 0
      %s47 = sadd.s32 %s46, 1
      %s48 = scalar_select %p45, %s46, %s47
      %p51 = pneg %p45
      %p52 = scmp.eq.s32.totalorder %s36, 1
      %p53 = por %p51, %p52
      %p54 = scmp.ne.s32.totalorder %s46, %s49
      %p55 = scmp.eq.s32.totalorder %s36, 0
      %p56 = por %p54, %p55
      %p57 = scmp.ne.s32.totalorder %s46, %s49
      %p58 = scmp.eq.s32.totalorder %s41, 1
      %p59 = por %p57, %p58
      %p60 = scmp.ne.s32.totalorder %s49, %s50
      %p61 = scmp.eq.s32.totalorder %s41, 0
      %p62 = por %p60, %p61
      %p63 = scmp.ne.s32.totalorder %s49, %s50
      %p64 = scmp.eq.s32.totalorder %s42, 1
      %p65 = por %p63, %p64
      %p67 = scmp.ne.s32.totalorder %s50, %s66
      %p68 = scmp.eq.s32.totalorder %s42, 0
      %p69 = por %p67, %p68
      %s71 = sadd.s32 %s70, 1
      %p74 = scmp.eq.s32.totalorder %s36, 1
      %p75 = scmp.ne.s32.totalorder %s70, %s72
      %p76 = scmp.eq.s32.totalorder %s36, 0
      %p77 = por %p75, %p76
      %p78 = scmp.ne.s32.totalorder %s70, %s72
      %p79 = scmp.eq.s32.totalorder %s41, 1
      %p80 = por %p78, %p79
      %p81 = scmp.ne.s32.totalorder %s72, %s73
      %p82 = scmp.eq.s32.totalorder %s41, 0
      %p83 = por %p81, %p82
      %p84 = scmp.ne.s32.totalorder %s72, %s73
      %p85 = scmp.eq.s32.totalorder %s42, 1
      %p86 = por %p84, %p85
      %p88 = scmp.ne.s32.totalorder %s73, %s87
      %p89 = scmp.eq.s32.totalorder %s42, 0
      %p90 = por %p88, %p89
      %s92 = sadd.s32 %s91, 1
      %p95 = scmp.eq.s32.totalorder %s36, 1
      %p96 = scmp.ne.s32.totalorder %s91, %s93
      %p97 = scmp.eq.s32.totalorder %s36, 0
      %p98 = por %p96, %p97
      %p99 = scmp.ne.s32.totalorder %s91, %s93
      %p100 = scmp.eq.s32.totalorder %s41, 1
      %p101 = por %p99, %p100
      %p102 = scmp.ne.s32.totalorder %s93, %s94
      %p103 = scmp.eq.s32.totalorder %s41, 0
      %p104 = por %p102, %p103
      %p105 = scmp.ne.s32.totalorder %s93, %s94
      %p106 = scmp.eq.s32.totalorder %s42, 1
      %p107 = por %p105, %p106
      %p109 = scmp.ne.s32.totalorder %s94, %s108
      %p110 = scmp.eq.s32.totalorder %s42, 0
      %p111 = por %p109, %p110
      %s113 = sadd.s32 %s112, 1
      %p116 = scmp.eq.s32.totalorder %s36, 1
      %p117 = scmp.ne.s32.totalorder %s112, %s114
      %p118 = scmp.eq.s32.totalorder %s36, 0
      %p119 = por %p117, %p118
      %p120 = scmp.ne.s32.totalorder %s112, %s114
      %p121 = scmp.eq.s32.totalorder %s41, 1
      %p122 = por %p120, %p121
      %p123 = scmp.ne.s32.totalorder %s114, %s115
      %p124 = scmp.eq.s32.totalorder %s41, 0
      %p125 = por %p123, %p124
      %p126 = scmp.ne.s32.totalorder %s114, %s115
      %p127 = scmp.eq.s32.totalorder %s42, 1
      %p128 = por %p126, %p127
      %p130 = scmp.ne.s32.totalorder %s115, %s129
      %p131 = scmp.eq.s32.totalorder %s42, 0
      %p132 = por %p130, %p131
      %s134 = sadd.s32 %s133, 1
      %p137 = scmp.eq.s32.totalorder %s36, 1
      %p138 = scmp.ne.s32.totalorder %s133, %s135
      %p139 = scmp.eq.s32.totalorder %s36, 0
      %p140 = por %p138, %p139
      %p141 = scmp.ne.s32.totalorder %s133, %s135
      %p142 = scmp.eq.s32.totalorder %s41, 1
      %p143 = por %p141, %p142
      %p144 = scmp.ne.s32.totalorder %s135, %s136
      %p145 = scmp.eq.s32.totalorder %s41, 0
      %p146 = por %p144, %p145
      %p147 = scmp.ne.s32.totalorder %s135, %s136
      %p148 = scmp.eq.s32.totalorder %s42, 1
      %p149 = por %p147, %p148
      %p151 = scmp.ne.s32.totalorder %s136, %s150
      %p152 = scmp.eq.s32.totalorder %s42, 0
      %p153 = por %p151, %p152
      %s155 = sadd.s32 %s154, 1
      %p158 = scmp.eq.s32.totalorder %s36, 1
      %p159 = scmp.ne.s32.totalorder %s154, %s156
      %p160 = scmp.eq.s32.totalorder %s36, 0
      %p161 = por %p159, %p160
      %p162 = scmp.ne.s32.totalorder %s154, %s156
      %p163 = scmp.eq.s32.totalorder %s41, 1
      %p164 = por %p162, %p163
      %p165 = scmp.ne.s32.totalorder %s156, %s157
      %p166 = scmp.eq.s32.totalorder %s41, 0
      %p167 = por %p165, %p166
      %p168 = scmp.ne.s32.totalorder %s156, %s157
      %p169 = scmp.eq.s32.totalorder %s42, 1
      %p170 = por %p168, %p169
      %p172 = scmp.ne.s32.totalorder %s157, %s171
      %p173 = scmp.eq.s32.totalorder %s42, 0
      %p174 = por %p172, %p173
      %s176 = sadd.s32 %s175, 1
      %p179 = scmp.eq.s32.totalorder %s36, 1
      %p180 = scmp.ne.s32.totalorder %s175, %s177
      %p181 = scmp.eq.s32.totalorder %s36, 0
      %p182 = por %p180, %p181
      %p183 = scmp.ne.s32.totalorder %s175, %s177
      %p184 = scmp.eq.s32.totalorder %s41, 1
      %p185 = por %p183, %p184
      %p186 = scmp.ne.s32.totalorder %s177, %s178
      %p187 = scmp.eq.s32.totalorder %s41, 0
      %p188 = por %p186, %p187
      %p189 = scmp.ne.s32.totalorder %s177, %s178
      %p190 = scmp.eq.s32.totalorder %s42, 1
      %p191 = por %p189, %p190
      %p193 = scmp.ne.s32.totalorder %s178, %s192
      %p194 = scmp.eq.s32.totalorder %s42, 0
      %p195 = por %p193, %p194
      %s197 = sadd.s32 %s196, 1
      %p200 = scmp.eq.s32.totalorder %s36, 1
      %p201 = scmp.ne.s32.totalorder %s196, %s198
      %p202 = scmp.eq.s32.totalorder %s36, 0
      %p203 = por %p201, %p202
      %p204 = scmp.ne.s32.totalorder %s196, %s198
      %p205 = scmp.eq.s32.totalorder %s41, 1
      %p206 = por %p204, %p205
      %p207 = scmp.ne.s32.totalorder %s198, %s199
      %p208 = scmp.eq.s32.totalorder %s41, 0
      %p209 = por %p207, %p208
      %p210 = scmp.ne.s32.totalorder %s198, %s199
      %p211 = scmp.eq.s32.totalorder %s42, 1
      %p212 = por %p210, %p211
      %p214 = scmp.ne.s32.totalorder %s199, %s213
      %p215 = scmp.eq.s32.totalorder %s42, 0
      %p216 = por %p214, %p215
      %s218 = sadd.s32 %s217, 1
      %p221 = scmp.eq.s32.totalorder %s36, 1
      %p222 = scmp.ne.s32.totalorder %s217, %s219
      %p223 = scmp.eq.s32.totalorder %s36, 0
      %p224 = por %p222, %p223
      %p225 = scmp.ne.s32.totalorder %s217, %s219
      %p226 = scmp.eq.s32.totalorder %s41, 1
      %p227 = por %p225, %p226
      %p228 = scmp.ne.s32.totalorder %s219, %s220
      %p229 = scmp.eq.s32.totalorder %s41, 0
      %p230 = por %p228, %p229
      %p231 = scmp.ne.s32.totalorder %s219, %s220
      %p232 = scmp.eq.s32.totalorder %s42, 1
      %p233 = por %p231, %p232
      %p235 = scmp.ne.s32.totalorder %s220, %s234
      %p236 = scmp.eq.s32.totalorder %s42, 0
      %p237 = por %p235, %p236
      %s239 = sadd.s32 %s238, 1
      %p242 = scmp.eq.s32.totalorder %s36, 1
      %p243 = scmp.ne.s32.totalorder %s238, %s240
      %p244 = scmp.eq.s32.totalorder %s36, 0
      %p245 = por %p243, %p244
      %p246 = scmp.ne.s32.totalorder %s238, %s240
      %p247 = scmp.eq.s32.totalorder %s41, 1
      %p248 = por %p246, %p247
      %p249 = scmp.ne.s32.totalorder %s240, %s241
      %p250 = scmp.eq.s32.totalorder %s41, 0
      %p251 = por %p249, %p250
      %p252 = scmp.ne.s32.totalorder %s240, %s241
      %p253 = scmp.eq.s32.totalorder %s42, 1
      %p254 = por %p252, %p253
      %p256 = scmp.ne.s32.totalorder %s241, %s255
      %p257 = scmp.eq.s32.totalorder %s42, 0
      %p258 = por %p256, %p257
      %s260 = sadd.s32 %s259, 1
      %p263 = scmp.eq.s32.totalorder %s36, 1
      %p264 = scmp.ne.s32.totalorder %s259, %s261
      %p265 = scmp.eq.s32.totalorder %s36, 0
      %p266 = por %p264, %p265
      %p267 = scmp.ne.s32.totalorder %s259, %s261
      %p268 = scmp.eq.s32.totalorder %s41, 1
      %p269 = por %p267, %p268
      %p270 = scmp.ne.s32.totalorder %s261, %s262
      %p271 = scmp.eq.s32.totalorder %s41, 0
      %p272 = por %p270, %p271
      %p273 = scmp.ne.s32.totalorder %s261, %s262
      %p274 = scmp.eq.s32.totalorder %s42, 1
      %p275 = por %p273, %p274
      %p277 = scmp.ne.s32.totalorder %s262, %s276
      %p278 = scmp.eq.s32.totalorder %s42, 0
      %p279 = por %p277, %p278
      %s281 = sadd.s32 %s280, 1
      %p284 = scmp.eq.s32.totalorder %s36, 1
      %p285 = scmp.ne.s32.totalorder %s280, %s282
      %p286 = scmp.eq.s32.totalorder %s36, 0
      %p287 = por %p285, %p286
      %p288 = scmp.ne.s32.totalorder %s280, %s282
      %p289 = scmp.eq.s32.totalorder %s41, 1
      %p290 = por %p288, %p289
      %p291 = scmp.ne.s32.totalorder %s282, %s283
      %p292 = scmp.eq.s32.totalorder %s41, 0
      %p293 = por %p291, %p292
      %p294 = scmp.ne.s32.totalorder %s282, %s283
      %p295 = scmp.eq.s32.totalorder %s42, 1
      %p296 = por %p294, %p295
      %p298 = scmp.ne.s32.totalorder %s283, %s297
      %p299 = scmp.eq.s32.totalorder %s42, 0
      %p300 = por %p298, %p299
      %s302 = sadd.s32 %s301, 1
      %p305 = scmp.eq.s32.totalorder %s36, 1
      %p306 = scmp.ne.s32.totalorder %s301, %s303
      %p307 = scmp.eq.s32.totalorder %s36, 0
      %p308 = por %p306, %p307
      %p309 = scmp.ne.s32.totalorder %s301, %s303
      %p310 = scmp.eq.s32.totalorder %s41, 1
      %p311 = por %p309, %p310
      %p312 = scmp.ne.s32.totalorder %s303, %s304
      %p313 = scmp.eq.s32.totalorder %s41, 0
      %p314 = por %p312, %p313
      %p315 = scmp.ne.s32.totalorder %s303, %s304
      %p316 = scmp.eq.s32.totalorder %s42, 1
      %p317 = por %p315, %p316
      %p319 = scmp.ne.s32.totalorder %s304, %s318
      %p320 = scmp.eq.s32.totalorder %s42, 0
      %p321 = por %p319, %p320
      %s323 = sadd.s32 %s322, 1
      %p326 = scmp.eq.s32.totalorder %s36, 1
      %p327 = scmp.ne.s32.totalorder %s322, %s324
      %p328 = scmp.eq.s32.totalorder %s36, 0
      %p329 = por %p327, %p328
      %p330 = scmp.ne.s32.totalorder %s322, %s324
      %p331 = scmp.eq.s32.totalorder %s41, 1
      %p332 = por %p330, %p331
      %p333 = scmp.ne.s32.totalorder %s324, %s325
      %p334 = scmp.eq.s32.totalorder %s41, 0
      %p335 = por %p333, %p334
      %p336 = scmp.ne.s32.totalorder %s324, %s325
      %p337 = scmp.eq.s32.totalorder %s42, 1
      %p338 = por %p336, %p337
      %p340 = scmp.ne.s32.totalorder %s325, %s339
      %p341 = scmp.eq.s32.totalorder %s42, 0
      %p342 = por %p340, %p341
      %s344 = sadd.s32 %s343, 1
      %p347 = scmp.eq.s32.totalorder %s36, 1
      %p348 = scmp.ne.s32.totalorder %s343, %s345
      %p349 = scmp.eq.s32.totalorder %s36, 0
      %p350 = por %p348, %p349
      %p351 = scmp.ne.s32.totalorder %s343, %s345
      %p352 = scmp.eq.s32.totalorder %s41, 1
      %p353 = por %p351, %p352
      %p354 = scmp.ne.s32.totalorder %s345, %s346
      %p355 = scmp.eq.s32.totalorder %s41, 0
      %p356 = por %p354, %p355
      %p357 = scmp.ne.s32.totalorder %s345, %s346
      %p358 = scmp.eq.s32.totalorder %s42, 1
      %p359 = por %p357, %p358
      %p361 = scmp.ne.s32.totalorder %s346, %s360
      %p362 = scmp.eq.s32.totalorder %s42, 0
      %p363 = por %p361, %p362
      %s365 = sadd.s32 %s364, 1
      %p368 = scmp.eq.s32.totalorder %s36, 1
      %p369 = scmp.ne.s32.totalorder %s364, %s366
      %p370 = scmp.eq.s32.totalorder %s36, 0
      %p371 = por %p369, %p370
      %p372 = scmp.ne.s32.totalorder %s364, %s366
      %p373 = scmp.eq.s32.totalorder %s41, 1
      %p374 = por %p372, %p373
      %p375 = scmp.ne.s32.totalorder %s366, %s367
      %p376 = scmp.eq.s32.totalorder %s41, 0
      %p377 = por %p375, %p376
      %p378 = scmp.ne.s32.totalorder %s366, %s367
      %p379 = scmp.eq.s32.totalorder %s42, 1
      %p380 = por %p378, %p379
      %p382 = scmp.ne.s32.totalorder %s367, %s381
      %p383 = scmp.eq.s32.totalorder %s42, 0
      %p384 = por %p382, %p383
      %s386 = sadd.s32 %s385, 1
      %p389 = scmp.eq.s32.totalorder %s36, 1
      %p390 = scmp.ne.s32.totalorder %s385, %s387
      %p391 = scmp.eq.s32.totalorder %s36, 0
      %p392 = por %p390, %p391
      %p393 = scmp.ne.s32.totalorder %s385, %s387
      %p394 = scmp.eq.s32.totalorder %s41, 1
      %p395 = por %p393, %p394
      %p396 = scmp.ne.s32.totalorder %s387, %s388
      %p397 = scmp.eq.s32.totalorder %s41, 0
      %p398 = por %p396, %p397
      %p399 = scmp.ne.s32.totalorder %s387, %s388
      %p400 = scmp.eq.s32.totalorder %s42, 1
      %p401 = por %p399, %p400
      %p403 = scmp.ne.s32.totalorder %s388, %s402
      %p404 = scmp.eq.s32.totalorder %s42, 0
      %p405 = por %p403, %p404
      %s407 = sadd.s32 %s406, 1
      %p410 = scmp.eq.s32.totalorder %s36, 1
      %p411 = scmp.ne.s32.totalorder %s406, %s408
      %p412 = scmp.eq.s32.totalorder %s36, 0
      %p413 = por %p411, %p412
      %p414 = scmp.ne.s32.totalorder %s406, %s408
      %p415 = scmp.eq.s32.totalorder %s41, 1
      %p416 = por %p414, %p415
      %p417 = scmp.ne.s32.totalorder %s408, %s409
      %p418 = scmp.eq.s32.totalorder %s41, 0
      %p419 = por %p417, %p418
      %p420 = scmp.ne.s32.totalorder %s408, %s409
      %p421 = scmp.eq.s32.totalorder %s42, 1
      %p422 = por %p420, %p421
      %p424 = scmp.ne.s32.totalorder %s409, %s423
      %p425 = scmp.eq.s32.totalorder %s42, 0
      %p426 = por %p424, %p425
      %s428 = sadd.s32 %s427, 1
      %p431 = scmp.eq.s32.totalorder %s36, 1
      %p432 = scmp.ne.s32.totalorder %s427, %s429
      %p433 = scmp.eq.s32.totalorder %s36, 0
      %p434 = por %p432, %p433
      %p435 = scmp.ne.s32.totalorder %s427, %s429
      %p436 = scmp.eq.s32.totalorder %s41, 1
      %p437 = por %p435, %p436
      %p438 = scmp.ne.s32.totalorder %s429, %s430
      %p439 = scmp.eq.s32.totalorder %s41, 0
      %p440 = por %p438, %p439
      %p441 = scmp.ne.s32.totalorder %s429, %s430
      %p442 = scmp.eq.s32.totalorder %s42, 1
      %p443 = por %p441, %p442
      %p445 = scmp.ne.s32.totalorder %s430, %s444
      %p446 = scmp.eq.s32.totalorder %s42, 0
      %p447 = por %p445, %p446
      %s449 = sadd.s32 %s448, 1
      %p452 = scmp.eq.s32.totalorder %s36, 1
      %p453 = scmp.ne.s32.totalorder %s448, %s450
      %p454 = scmp.eq.s32.totalorder %s36, 0
      %p455 = por %p453, %p454
      %p456 = scmp.ne.s32.totalorder %s448, %s450
      %p457 = scmp.eq.s32.totalorder %s41, 1
      %p458 = por %p456, %p457
      %p459 = scmp.ne.s32.totalorder %s450, %s451
      %p460 = scmp.eq.s32.totalorder %s41, 0
      %p461 = por %p459, %p460
      %p462 = scmp.ne.s32.totalorder %s450, %s451
      %p463 = scmp.eq.s32.totalorder %s42, 1
      %p464 = por %p462, %p463
      %p466 = scmp.ne.s32.totalorder %s451, %s465
      %p467 = scmp.eq.s32.totalorder %s42, 0
      %p468 = por %p466, %p467
      %s470 = sadd.s32 %s469, 1
      %p473 = scmp.eq.s32.totalorder %s36, 1
      %p474 = scmp.ne.s32.totalorder %s469, %s471
      %p475 = scmp.eq.s32.totalorder %s36, 0
      %p476 = por %p474, %p475
      %p477 = scmp.ne.s32.totalorder %s469, %s471
      %p478 = scmp.eq.s32.totalorder %s41, 1
      %p479 = por %p477, %p478
      %p480 = scmp.ne.s32.totalorder %s471, %s472
      %p481 = scmp.eq.s32.totalorder %s41, 0
      %p482 = por %p480, %p481
      %p483 = scmp.ne.s32.totalorder %s471, %s472
      %p484 = scmp.eq.s32.totalorder %s42, 1
      %p485 = por %p483, %p484
      %p487 = scmp.ne.s32.totalorder %s472, %s486
      %p488 = scmp.eq.s32.totalorder %s42, 0
      %p489 = por %p487, %p488
      %s491 = sadd.s32 %s490, 1
      %p494 = scmp.eq.s32.totalorder %s36, 1
      %p495 = scmp.ne.s32.totalorder %s490, %s492
      %p496 = scmp.eq.s32.totalorder %s36, 0
      %p497 = por %p495, %p496
      %p498 = scmp.ne.s32.totalorder %s490, %s492
      %p499 = scmp.eq.s32.totalorder %s41, 1
      %p500 = por %p498, %p499
      %p501 = scmp.ne.s32.totalorder %s492, %s493
      %p502 = scmp.eq.s32.totalorder %s41, 0
      %p503 = por %p501, %p502
      %p504 = scmp.ne.s32.totalorder %s492, %s493
      %p505 = scmp.eq.s32.totalorder %s42, 1
      %p506 = por %p504, %p505
      %p508 = scmp.ne.s32.totalorder %s493, %s507
      %p509 = scmp.eq.s32.totalorder %s42, 0
      %p510 = por %p508, %p509
      %s512 = sadd.s32 %s511, 1
      %p515 = scmp.eq.s32.totalorder %s36, 1
      %p516 = scmp.ne.s32.totalorder %s511, %s513
      %p517 = scmp.eq.s32.totalorder %s36, 0
      %p518 = por %p516, %p517
      %p519 = scmp.ne.s32.totalorder %s511, %s513
      %p520 = scmp.eq.s32.totalorder %s41, 1
      %p521 = por %p519, %p520
      %p522 = scmp.ne.s32.totalorder %s513, %s514
      %p523 = scmp.eq.s32.totalorder %s41, 0
      %p524 = por %p522, %p523
      %p525 = scmp.ne.s32.totalorder %s513, %s514
      %p526 = scmp.eq.s32.totalorder %s42, 1
      %p527 = por %p525, %p526
      %p529 = scmp.ne.s32.totalorder %s514, %s528
      %p530 = scmp.eq.s32.totalorder %s42, 0
      %p531 = por %p529, %p530
      %s533 = sadd.s32 %s532, 1
      %p536 = scmp.eq.s32.totalorder %s36, 1
      %p537 = scmp.ne.s32.totalorder %s532, %s534
      %p538 = scmp.eq.s32.totalorder %s36, 0
      %p539 = por %p537, %p538
      %p540 = scmp.ne.s32.totalorder %s532, %s534
      %p541 = scmp.eq.s32.totalorder %s41, 1
      %p542 = por %p540, %p541
      %p543 = scmp.ne.s32.totalorder %s534, %s535
      %p544 = scmp.eq.s32.totalorder %s41, 0
      %p545 = por %p543, %p544
      %p546 = scmp.ne.s32.totalorder %s534, %s535
      %p547 = scmp.eq.s32.totalorder %s42, 1
      %p548 = por %p546, %p547
      %p550 = scmp.ne.s32.totalorder %s535, %s549
      %p551 = scmp.eq.s32.totalorder %s42, 0
      %p552 = por %p550, %p551
      %s554 = sadd.s32 %s553, 1
      %p557 = scmp.eq.s32.totalorder %s36, 1
      %p558 = scmp.ne.s32.totalorder %s553, %s555
      %p559 = scmp.eq.s32.totalorder %s36, 0
      %p560 = por %p558, %p559
      %p561 = scmp.ne.s32.totalorder %s553, %s555
      %p562 = scmp.eq.s32.totalorder %s41, 1
      %p563 = por %p561, %p562
      %p564 = scmp.ne.s32.totalorder %s555, %s556
      %p565 = scmp.eq.s32.totalorder %s41, 0
      %p566 = por %p564, %p565
      %p567 = scmp.ne.s32.totalorder %s555, %s556
      %p568 = scmp.eq.s32.totalorder %s42, 1
      %p569 = por %p567, %p568
      %p571 = scmp.ne.s32.totalorder %s556, %s570
      %p572 = scmp.eq.s32.totalorder %s42, 0
      %p573 = por %p571, %p572
      %s574 = ssub.s32 %s36, %s43
      %p575 = scmp.eq.s32.totalorder %s574, 0
      %s577 = sadd.s32 %s576, 1
      %s578 = scalar_select %p575, %s576, %s577
      %p581 = pneg %p575
      %p582 = scmp.eq.s32.totalorder %s36, 1
      %p583 = por %p581, %p582
      %p584 = scmp.ne.s32.totalorder %s576, %s579
      %p585 = scmp.eq.s32.totalorder %s36, 0
      %p586 = por %p584, %p585
      %p587 = scmp.ne.s32.totalorder %s576, %s579
      %p588 = scmp.eq.s32.totalorder %s41, 1
      %p589 = por %p587, %p588
      %p590 = scmp.ne.s32.totalorder %s579, %s580
      %p591 = scmp.eq.s32.totalorder %s41, 0
      %p592 = por %p590, %p591
      %p593 = scmp.ne.s32.totalorder %s579, %s580
      %p594 = scmp.eq.s32.totalorder %s42, 1
      %p595 = por %p593, %p594
      %p597 = scmp.ne.s32.totalorder %s580, %s596
      %p598 = scmp.eq.s32.totalorder %s42, 0
      %p599 = por %p597, %p598
      %s600 = ssub.s32 %s36, %s43
      %p601 = scmp.eq.s32.totalorder %s600, 0
      %s603 = sadd.s32 %s602, 1
      %s604 = scalar_select %p601, %s602, %s603
      %p607 = pneg %p601
      %p608 = scmp.eq.s32.totalorder %s36, 1
      %p609 = por %p607, %p608
      %p610 = scmp.ne.s32.totalorder %s602, %s605
      %p611 = scmp.eq.s32.totalorder %s36, 0
      %p612 = por %p610, %p611
      %p613 = scmp.ne.s32.totalorder %s602, %s605
      %p614 = scmp.eq.s32.totalorder %s41, 1
      %p615 = por %p613, %p614
      %p616 = scmp.ne.s32.totalorder %s605, %s606
      %p617 = scmp.eq.s32.totalorder %s41, 0
      %p618 = por %p616, %p617
      %p619 = scmp.ne.s32.totalorder %s605, %s606
      %p620 = scmp.eq.s32.totalorder %s42, 1
      %p621 = por %p619, %p620
      %p623 = scmp.ne.s32.totalorder %s606, %s622
      %p624 = scmp.eq.s32.totalorder %s42, 0
      %p625 = por %p623, %p624
      %p626 = scmp.le.s32.totalorder 1, %s36
      %p627 = scmp.lt.s32.totalorder %s36, 3
      %p628 = pnand %p626, %p627
      %p629 = pneg %p628
      // Predicated region
      $region9: #{front_pointnet_forward.1} parent=5 // pred_check
        _
      $region10: #{front_pointnet_forward.1} parent=5 // pred_check_branch
        %631 = sbr.rel (%p628) target = $region12
      $region11: #{front_pointnet_forward.1} parent=5 // pred_region
        %s632 = ssub.s32 %s36, 1
        // Predicated region
        $region13: #{front_pointnet_forward.1} parent=11 // pred_check
          %p633 = pneg %p83
        $region14: #{front_pointnet_forward.1} parent=11 // pred_check_branch
          %635 = sbr.rel (%p633) target = $region16
        $region15: #{front_pointnet_forward.1} parent=11 // pred_region
          _
        $region16: #{front_pointnet_forward.1} parent=11 // pred_fallthru
          _
        // Predicated region
        $region17: #{front_pointnet_forward.1} parent=11 // pred_check
          %p636 = pneg %p104
        $region18: #{front_pointnet_forward.1} parent=11 // pred_check_branch
          %638 = sbr.rel (%p636) target = $region20
        $region19: #{front_pointnet_forward.1} parent=11 // pred_region
          _
        $region20: #{front_pointnet_forward.1} parent=11 // pred_fallthru
          _
        // Predicated region
        $region21: #{front_pointnet_forward.1} parent=11 // pred_check
          %p639 = pneg %p125
        $region22: #{front_pointnet_forward.1} parent=11 // pred_check_branch
          %641 = sbr.rel (%p639) target = $region24
        $region23: #{front_pointnet_forward.1} parent=11 // pred_region
          _
        $region24: #{front_pointnet_forward.1} parent=11 // pred_fallthru
          _
        // Predicated region
        $region25: #{front_pointnet_forward.1} parent=11 // pred_check
          %p642 = pneg %p146
        $region26: #{front_pointnet_forward.1} parent=11 // pred_check_branch
          %644 = sbr.rel (%p642) target = $region28
        $region27: #{front_pointnet_forward.1} parent=11 // pred_region
          _
        $region28: #{front_pointnet_forward.1} parent=11 // pred_fallthru
          _
        // Predicated region
        $region29: #{front_pointnet_forward.1} parent=11 // pred_check
          %p645 = pneg %p167
        $region30: #{front_pointnet_forward.1} parent=11 // pred_check_branch
          %647 = sbr.rel (%p645) target = $region32
        $region31: #{front_pointnet_forward.1} parent=11 // pred_region
          _
        $region32: #{front_pointnet_forward.1} parent=11 // pred_fallthru
          _
        // Predicated region
        $region33: #{front_pointnet_forward.1} parent=11 // pred_check
          %p648 = pneg %p188
        $region34: #{front_pointnet_forward.1} parent=11 // pred_check_branch
          %650 = sbr.rel (%p648) target = $region36
        $region35: #{front_pointnet_forward.1} parent=11 // pred_region
          _
        $region36: #{front_pointnet_forward.1} parent=11 // pred_fallthru
          _
        // Predicated region
        $region37: #{front_pointnet_forward.1} parent=11 // pred_check
          %p651 = pneg %p209
        $region38: #{front_pointnet_forward.1} parent=11 // pred_check_branch
          %653 = sbr.rel (%p651) target = $region40
        $region39: #{front_pointnet_forward.1} parent=11 // pred_region
          _
        $region40: #{front_pointnet_forward.1} parent=11 // pred_fallthru
          _
        // Predicated region
        $region41: #{front_pointnet_forward.1} parent=11 // pred_check
          %p654 = pneg %p230
        $region42: #{front_pointnet_forward.1} parent=11 // pred_check_branch
          %656 = sbr.rel (%p654) target = $region44
        $region43: #{front_pointnet_forward.1} parent=11 // pred_region
          _
        $region44: #{front_pointnet_forward.1} parent=11 // pred_fallthru
          _
        // Predicated region
        $region45: #{front_pointnet_forward.1} parent=11 // pred_check
          %p657 = pneg %p251
        $region46: #{front_pointnet_forward.1} parent=11 // pred_check_branch
          %659 = sbr.rel (%p657) target = $region48
        $region47: #{front_pointnet_forward.1} parent=11 // pred_region
          _
        $region48: #{front_pointnet_forward.1} parent=11 // pred_fallthru
          _
        // Predicated region
        $region49: #{front_pointnet_forward.1} parent=11 // pred_check
          %p660 = pneg %p272
        $region50: #{front_pointnet_forward.1} parent=11 // pred_check_branch
          %662 = sbr.rel (%p660) target = $region52
        $region51: #{front_pointnet_forward.1} parent=11 // pred_region
          _
        $region52: #{front_pointnet_forward.1} parent=11 // pred_fallthru
          _
        // Predicated region
        $region53: #{front_pointnet_forward.1} parent=11 // pred_check
          %p663 = pneg %p293
        $region54: #{front_pointnet_forward.1} parent=11 // pred_check_branch
          %665 = sbr.rel (%p663) target = $region56
        $region55: #{front_pointnet_forward.1} parent=11 // pred_region
          _
        $region56: #{front_pointnet_forward.1} parent=11 // pred_fallthru
          _
        // Predicated region
        $region57: #{front_pointnet_forward.1} parent=11 // pred_check
          %p666 = pneg %p314
        $region58: #{front_pointnet_forward.1} parent=11 // pred_check_branch
          %668 = sbr.rel (%p666) target = $region60
        $region59: #{front_pointnet_forward.1} parent=11 // pred_region
          _
        $region60: #{front_pointnet_forward.1} parent=11 // pred_fallthru
          _
        // Predicated region
        $region61: #{front_pointnet_forward.1} parent=11 // pred_check
          %p669 = pneg %p335
        $region62: #{front_pointnet_forward.1} parent=11 // pred_check_branch
          %671 = sbr.rel (%p669) target = $region64
        $region63: #{front_pointnet_forward.1} parent=11 // pred_region
          _
        $region64: #{front_pointnet_forward.1} parent=11 // pred_fallthru
          _
        // Predicated region
        $region65: #{front_pointnet_forward.1} parent=11 // pred_check
          %p672 = pneg %p356
        $region66: #{front_pointnet_forward.1} parent=11 // pred_check_branch
          %674 = sbr.rel (%p672) target = $region68
        $region67: #{front_pointnet_forward.1} parent=11 // pred_region
          _
        $region68: #{front_pointnet_forward.1} parent=11 // pred_fallthru
          _
        // Predicated region
        $region69: #{front_pointnet_forward.1} parent=11 // pred_check
          %p675 = pneg %p377
        $region70: #{front_pointnet_forward.1} parent=11 // pred_check_branch
          %677 = sbr.rel (%p675) target = $region72
        $region71: #{front_pointnet_forward.1} parent=11 // pred_region
          %679 = vsyncadd [#allocation3], 0
          %s680 = sshll.u32 %s15, 4
          %s681 = int_to_ptr.hbm [resolvable:$true] %s680
          %s682 = sshll.u32 [#allocation2], 4
          %s683 = int_to_ptr.vmem [resolvable:$true] %s682
          %688 = dma.hbm_to_vmem [thread:$0]  %s681, 2048, %s683, [#allocation3], 128, 128, 8
        $region72: #{front_pointnet_forward.1} parent=11 // pred_fallthru
          _
        // Predicated region
        $region73: #{front_pointnet_forward.1} parent=11 // pred_check
          %p689 = pneg %p398
        $region74: #{front_pointnet_forward.1} parent=11 // pred_check_branch
          %691 = sbr.rel (%p689) target = $region76
        $region75: #{front_pointnet_forward.1} parent=11 // pred_region
          _
        $region76: #{front_pointnet_forward.1} parent=11 // pred_fallthru
          _
        // Predicated region
        $region77: #{front_pointnet_forward.1} parent=11 // pred_check
          %p692 = pneg %p419
        $region78: #{front_pointnet_forward.1} parent=11 // pred_check_branch
          %694 = sbr.rel (%p692) target = $region80
        $region79: #{front_pointnet_forward.1} parent=11 // pred_region
          %696 = vsyncadd [#allocation5], 0
          %s697 = sshll.u32 %s17, 4
          %s698 = int_to_ptr.hbm [resolvable:$true] %s697
          %s699 = sshll.u32 [#allocation4], 4
          %s700 = int_to_ptr.vmem [resolvable:$true] %s699
          %705 = dma.hbm_to_vmem [thread:$0]  %s698, 8192, %s700, [#allocation5], 256, 256, 16
        $region80: #{front_pointnet_forward.1} parent=11 // pred_fallthru
          _
        // Predicated region
        $region81: #{front_pointnet_forward.1} parent=11 // pred_check
          %p706 = pneg %p440
        $region82: #{front_pointnet_forward.1} parent=11 // pred_check_branch
          %708 = sbr.rel (%p706) target = $region84
        $region83: #{front_pointnet_forward.1} parent=11 // pred_region
          _
        $region84: #{front_pointnet_forward.1} parent=11 // pred_fallthru
          _
        // Predicated region
        $region85: #{front_pointnet_forward.1} parent=11 // pred_check
          %p709 = pneg %p461
        $region86: #{front_pointnet_forward.1} parent=11 // pred_check_branch
          %711 = sbr.rel (%p709) target = $region88
        $region87: #{front_pointnet_forward.1} parent=11 // pred_region
          %713 = vsyncadd [#allocation5], 0
          %s714 = sshll.u32 %s19, 4
          %s715 = int_to_ptr.hbm [resolvable:$true] %s714
          %s716 = sshll.u32 [#allocation6], 4
          %s717 = int_to_ptr.vmem [resolvable:$true] %s716
          %722 = dma.hbm_to_vmem [thread:$0]  %s715, 16384, %s717, [#allocation5], 256, 256, 16
        $region88: #{front_pointnet_forward.1} parent=11 // pred_fallthru
          _
        // Predicated region
        $region89: #{front_pointnet_forward.1} parent=11 // pred_check
          %p723 = pneg %p482
        $region90: #{front_pointnet_forward.1} parent=11 // pred_check_branch
          %725 = sbr.rel (%p723) target = $region92
        $region91: #{front_pointnet_forward.1} parent=11 // pred_region
          _
        $region92: #{front_pointnet_forward.1} parent=11 // pred_fallthru
          _
        // Predicated region
        $region93: #{front_pointnet_forward.1} parent=11 // pred_check
          %p726 = pneg %p503
        $region94: #{front_pointnet_forward.1} parent=11 // pred_check_branch
          %728 = sbr.rel (%p726) target = $region96
        $region95: #{front_pointnet_forward.1} parent=11 // pred_region
          %730 = vsyncadd [#allocation8], 0
          %s731 = sshll.u32 %s21, 4
          %s732 = int_to_ptr.hbm [resolvable:$true] %s731
          %s733 = sshll.u32 [#allocation7], 4
          %s734 = int_to_ptr.vmem [resolvable:$true] %s733
          %739 = dma.hbm_to_vmem [thread:$0]  %s732, 8192, %s734, [#allocation8], 128, 128, 8
        $region96: #{front_pointnet_forward.1} parent=11 // pred_fallthru
          _
        // Predicated region
        $region97: #{front_pointnet_forward.1} parent=11 // pred_check
          %p740 = pneg %p524
        $region98: #{front_pointnet_forward.1} parent=11 // pred_check_branch
          %742 = sbr.rel (%p740) target = $region100
        $region99: #{front_pointnet_forward.1} parent=11 // pred_region
          _
        $region100: #{front_pointnet_forward.1} parent=11 // pred_fallthru
          _
        // Predicated region
        $region101: #{front_pointnet_forward.1} parent=11 // pred_check
          %p743 = pneg %p545
        $region102: #{front_pointnet_forward.1} parent=11 // pred_check_branch
          %745 = sbr.rel (%p743) target = $region104
        $region103: #{front_pointnet_forward.1} parent=11 // pred_region
          _
        $region104: #{front_pointnet_forward.1} parent=11 // pred_fallthru
          _
        // Predicated region
        $region105: #{front_pointnet_forward.1} parent=11 // pred_check
          %p746 = pneg %p566
        $region106: #{front_pointnet_forward.1} parent=11 // pred_check_branch
          %748 = sbr.rel (%p746) target = $region108
        $region107: #{front_pointnet_forward.1} parent=11 // pred_region
          _
        $region108: #{front_pointnet_forward.1} parent=11 // pred_fallthru
          _
      $region12: #{front_pointnet_forward.1} parent=5 // pred_fallthru
        _
      %p749 = scmp.lt.s32.totalorder %s36, 2
      // Predicated region
      $region109: #{front_pointnet_forward.1} parent=5 // pred_check
        %p750 = pneg %p749
      $region110: #{front_pointnet_forward.1} parent=5 // pred_check_branch
        %752 = sbr.rel (%p750) target = $region112
      $region111: #{front_pointnet_forward.1} parent=5 // pred_region
        // Predicated region
        $region113: #{front_pointnet_forward.1} parent=111 // pred_check
          %p753 = pneg %p56
        $region114: #{front_pointnet_forward.1} parent=111 // pred_check_branch
          %755 = sbr.rel (%p753) target = $region116
        $region115: #{front_pointnet_forward.1} parent=111 // pred_region
          %p756 = scmp.lt.s32.totalorder %s36, 1
          %s757 = scalar_select %p756, %s36, 1
          %s758 = smul.addr %s757, 32
          %s759 = smul.addr %s758, 4
          %s760 = scalar_lea.vmem %s0, %s759
        $region116: #{front_pointnet_forward.1} parent=111 // pred_fallthru
          _
      $region112: #{front_pointnet_forward.1} parent=5 // pred_fallthru
        _
      %p761 = scmp.le.s32.totalorder 1, %s36
      %p762 = scmp.lt.s32.totalorder %s36, 3
      %p763 = pnand %p761, %p762
      %p764 = pneg %p763
      // Predicated region
      $region117: #{front_pointnet_forward.1} parent=5 // pred_check
        _
      $region118: #{front_pointnet_forward.1} parent=5 // pred_check_branch
        %766 = sbr.rel (%p763) target = $region120
      $region119: #{front_pointnet_forward.1} parent=5 // pred_region
        %s767 = ssub.s32 %s36, 1
        // Predicated region
        $region121: #{front_pointnet_forward.1} parent=119 // pred_check
          %p768 = pneg %p377
        $region122: #{front_pointnet_forward.1} parent=119 // pred_check_branch
          %770 = sbr.rel (%p768) target = $region124
        $region123: #{front_pointnet_forward.1} parent=119 // pred_region
          %772 = dma.done [#allocation3], 2048
        $region124: #{front_pointnet_forward.1} parent=119 // pred_fallthru
          _
        // Predicated region
        $region125: #{front_pointnet_forward.1} parent=119 // pred_check
          %p773 = pneg %p419
        $region126: #{front_pointnet_forward.1} parent=119 // pred_check_branch
          %775 = sbr.rel (%p773) target = $region128
        $region127: #{front_pointnet_forward.1} parent=119 // pred_region
          %777 = dma.done [#allocation5], 8192
        $region128: #{front_pointnet_forward.1} parent=119 // pred_fallthru
          _
        // Predicated region
        $region129: #{front_pointnet_forward.1} parent=119 // pred_check
          %p778 = pneg %p461
        $region130: #{front_pointnet_forward.1} parent=119 // pred_check_branch
          %780 = sbr.rel (%p778) target = $region132
        $region131: #{front_pointnet_forward.1} parent=119 // pred_region
          %782 = dma.done [#allocation5], 16384
        $region132: #{front_pointnet_forward.1} parent=119 // pred_fallthru
          _
        // Predicated region
        $region133: #{front_pointnet_forward.1} parent=119 // pred_check
          %p783 = pneg %p503
        $region134: #{front_pointnet_forward.1} parent=119 // pred_check_branch
          %785 = sbr.rel (%p783) target = $region136
        $region135: #{front_pointnet_forward.1} parent=119 // pred_region
          %787 = dma.done [#allocation8], 8192
        $region136: #{front_pointnet_forward.1} parent=119 // pred_fallthru
          _
        %p788 = scmp.lt.s32.totalorder %s41, 1
        %s789 = scalar_select %p788, %s41, 1
        %s790 = smul.addr %s789, 32
        %s791 = smul.addr %s790, 4
        %s792 = scalar_lea.vmem %s0, %s791
        %p793 = pneg %p62
        %p794 = pneg %p59
        %p795 = pneg %p83
        %p796 = pneg %p80
        %p797 = pneg %p104
        %p798 = pneg %p101
        %p799 = pneg %p125
        %p800 = pneg %p122
        %p801 = pneg %p146
        %p802 = pneg %p143
        %p803 = pneg %p167
        %p804 = pneg %p164
        %p805 = pneg %p188
        %p806 = pneg %p185
        %p807 = pneg %p209
        %p808 = pneg %p206
        %p809 = pneg %p230
        %p810 = pneg %p227
        %p811 = pneg %p251
        %p812 = pneg %p248
        %p813 = pneg %p272
        %p814 = pneg %p269
        %p815 = pneg %p293
        %p816 = pneg %p290
        %p817 = pneg %p314
        %p818 = pneg %p311
        %p819 = pneg %p335
        %p820 = pneg %p332
        %p821 = pneg %p356
        %p822 = pneg %p353
        %p823 = pneg %p377
        %p824 = pneg %p374
        %p825 = pneg %p398
        %p826 = pneg %p395
        %p827 = pneg %p419
        %p828 = pneg %p416
        %p829 = pneg %p440
        %p830 = pneg %p437
        %p831 = pneg %p461
        %p832 = pneg %p458
        %p833 = pneg %p482
        %p834 = pneg %p479
        %p835 = pneg %p503
        %p836 = pneg %p500
        %p837 = pneg %p524
        %p838 = pneg %p521
        %p839 = pneg %p545
        %p840 = pneg %p542
        %p841 = pneg %p566
        %p842 = pneg %p563
        %p843 = pneg %p592
        %p844 = pneg %p589
        %p845 = scmp.lt.s32.totalorder %s41, 1
        %s846 = scalar_select %p845, %s41, 1
        %s847 = scalar_lea.vmem %s25, %s846
        %p848 = pneg %p618
        %p849 = pneg %p615
        %p850 = scmp.lt.s32.totalorder %s41, 1
        %s851 = scalar_select %p850, %s41, 1
        %s852 = scalar_lea.vmem %s26, %s851
        %p853 = scmp.lt.s32.totalorder %s41, 1
        %s854 = scalar_select %p853, %s41, 1
        %s855 = smul.addr %s854, 32
        %s856 = smul.addr %s855, 4
        %s857 = scalar_lea.vmem %s0, %s856
        %p858 = scmp.lt.s32.totalorder %s41, 1
        %s859 = scalar_select %p858, %s41, 1
        %s860 = scalar_lea.vmem %s25, %s859
        %p861 = scmp.lt.s32.totalorder %s41, 1
        %s862 = scalar_select %p861, %s41, 1
        %s863 = scalar_lea.vmem %s26, %s862
        %v865 = vld [vmem:[%s857] sm:$0xf]
        %v866 = vld [vmem:[%s857 + $0x4] sm:$0xf]
        %v867 = vld [vmem:[%s857 + $0x8] sm:$0xf]
        %v868 = vld [vmem:[%s857 + $0xc] sm:$0xf]
        %v869 = vld [vmem:[%s857 + $0x10] sm:$0xf]
        %v870 = vld [vmem:[%s857 + $0x14] sm:$0xf]
        %v871 = vld [vmem:[%s857 + $0x18] sm:$0xf]
        %v872 = vld [vmem:[%s857 + $0x1c] sm:$0xf]
        %v873 = vld [vmem:[%s857 + $0x20] sm:$0xf]
        %v874 = vld [vmem:[%s857 + $0x24] sm:$0xf]
        %v875 = vld [vmem:[%s857 + $0x28] sm:$0xf]
        %v876 = vld [vmem:[%s857 + $0x2c] sm:$0xf]
        %v877 = vld [vmem:[%s857 + $0x30] sm:$0xf]
        %v878 = vld [vmem:[%s857 + $0x34] sm:$0xf]
        %v879 = vld [vmem:[%s857 + $0x38] sm:$0xf]
        %v880 = vld [vmem:[%s857 + $0x3c] sm:$0xf]
        %v881 = vld [vmem:[%s857 + $0x40] sm:$0xf]
        %v882 = vld [vmem:[%s857 + $0x44] sm:$0xf]
        %v883 = vld [vmem:[%s857 + $0x48] sm:$0xf]
        %v884 = vld [vmem:[%s857 + $0x4c] sm:$0xf]
        %v885 = vld [vmem:[%s857 + $0x50] sm:$0xf]
        %v886 = vld [vmem:[%s857 + $0x54] sm:$0xf]
        %v887 = vld [vmem:[%s857 + $0x58] sm:$0xf]
        %v888 = vld [vmem:[%s857 + $0x5c] sm:$0xf]
        %v889 = vld [vmem:[%s857 + $0x60] sm:$0xf]
        %v890 = vld [vmem:[%s857 + $0x64] sm:$0xf]
        %v891 = vld [vmem:[%s857 + $0x68] sm:$0xf]
        %v892 = vld [vmem:[%s857 + $0x6c] sm:$0xf]
        %v893 = vld [vmem:[%s857 + $0x70] sm:$0xf]
        %v894 = vld [vmem:[%s857 + $0x74] sm:$0xf]
        %v895 = vld [vmem:[%s857 + $0x78] sm:$0xf]
        %v896 = vld [vmem:[%s857 + $0x7c] sm:$0xf]
        %v897 = vld [vmem:[%s2] sm:$0x1]
        %v898 = vld [vmem:[%s1] sm:$0x3]
        %v900 = vperm.slane %v897, 0
        %v934 = vunpack.c.l.b16 %v865
        %v935 = vunpack.c.l.b16 %v866
        %v936 = vunpack.c.l.b16 %v867
        %v937 = vunpack.c.l.b16 %v868
        %v938 = vunpack.c.l.b16 %v869
        %v939 = vunpack.c.l.b16 %v870
        %v940 = vunpack.c.l.b16 %v871
        %v941 = vunpack.c.l.b16 %v872
        %v942 = vunpack.c.l.b16 %v873
        %v943 = vunpack.c.l.b16 %v874
        %v944 = vunpack.c.l.b16 %v875
        %v945 = vunpack.c.l.b16 %v876
        %v946 = vunpack.c.l.b16 %v877
        %v947 = vunpack.c.l.b16 %v878
        %v948 = vunpack.c.l.b16 %v879
        %v949 = vunpack.c.l.b16 %v880
        %v950 = vunpack.c.l.b16 %v881
        %v951 = vunpack.c.l.b16 %v882
        %v952 = vunpack.c.l.b16 %v883
        %v953 = vunpack.c.l.b16 %v884
        %v954 = vunpack.c.l.b16 %v885
        %v955 = vunpack.c.l.b16 %v886
        %v956 = vunpack.c.l.b16 %v887
        %v957 = vunpack.c.l.b16 %v888
        %v958 = vunpack.c.l.b16 %v889
        %v959 = vunpack.c.l.b16 %v890
        %v960 = vunpack.c.l.b16 %v891
        %v961 = vunpack.c.l.b16 %v892
        %v962 = vunpack.c.l.b16 %v893
        %v963 = vunpack.c.l.b16 %v894
        %v964 = vunpack.c.l.b16 %v895
        %v965 = vunpack.c.l.b16 %v896
        %v966 = vpack.c.b16 %v935, %v934
        %v967 = vpack.c.b16 %v937, %v936
        %v968 = vpack.c.b16 %v939, %v938
        %v969 = vpack.c.b16 %v941, %v940
        %v970 = vpack.c.b16 %v943, %v942
        %v971 = vpack.c.b16 %v945, %v944
        %v972 = vpack.c.b16 %v947, %v946
        %v973 = vpack.c.b16 %v949, %v948
        %v974 = vpack.c.b16 %v951, %v950
        %v975 = vpack.c.b16 %v953, %v952
        %v976 = vpack.c.b16 %v955, %v954
        %v977 = vpack.c.b16 %v957, %v956
        %v978 = vpack.c.b16 %v959, %v958
        %v979 = vpack.c.b16 %v961, %v960
        %v980 = vpack.c.b16 %v963, %v962
        %v981 = vpack.c.b16 %v965, %v964
        %vm982 = vcmask 31744
        %v984 = vsel %vm982, %v966, 0
        %v987 = vsel %vm982, %v967, 0
        %v990 = vsel %vm982, %v968, 0
        %v993 = vsel %vm982, %v969, 0
        %v996 = vsel %vm982, %v970, 0
        %v999 = vsel %vm982, %v971, 0
        %v1002 = vsel %vm982, %v972, 0
        %v1005 = vsel %vm982, %v973, 0
        %v1008 = vsel %vm982, %v974, 0
        %v1011 = vsel %vm982, %v975, 0
        %v1014 = vsel %vm982, %v976, 0
        %v1017 = vsel %vm982, %v977, 0
        %v1020 = vsel %vm982, %v978, 0
        %v1023 = vsel %vm982, %v979, 0
        %v1026 = vsel %vm982, %v980, 0
        %v1029 = vsel %vm982, %v981, 0
        %vm1031 = vcmask 1041408
        %v1033 = vsel %vm1031, %v898, 0
        %1035 = vmatpush.bf16.msra.mxu0 0
        %1036 = vmatpush.bf16.msra.mxu0 0
        %1037 = vmatpush.bf16.msra.mxu0 0
        %1038 = vmatpush.bf16.msra.mxu0 0
        %1039 = vmatpush.bf16.msra.mxu0 0
        %1040 = vmatpush.bf16.msra.mxu0 0
        %1041 = vmatpush.bf16.msra.mxu0 0
        %1042 = vmatpush.bf16.msra.mxu0 %v1033
        %1043 = vmatmul.bf16.gmra.mxu0 %v984
        %v1044 = vpop.f32.mrf.mxu0
        %v1045 = vadd.f32 %v900, %v1044
        %v1046 = vpop.f32.mrf.mxu0
        %v1047 = vadd.f32 %v900, %v1046
        %1048 = vmatmul.bf16.gmra.mxu0 %v987
        %v1049 = vpop.f32.mrf.mxu0
        %v1050 = vadd.f32 %v900, %v1049
        %v1051 = vpop.f32.mrf.mxu0
        %v1052 = vadd.f32 %v900, %v1051
        %1053 = vmatmul.bf16.gmra.mxu0 %v990
        %v1054 = vpop.f32.mrf.mxu0
        %v1055 = vadd.f32 %v900, %v1054
        %v1056 = vpop.f32.mrf.mxu0
        %v1057 = vadd.f32 %v900, %v1056
        %1058 = vmatmul.bf16.gmra.mxu0 %v993
        %v1059 = vpop.f32.mrf.mxu0
        %v1060 = vadd.f32 %v900, %v1059
        %v1061 = vpop.f32.mrf.mxu0
        %v1062 = vadd.f32 %v900, %v1061
        %1063 = vmatmul.bf16.gmra.mxu0 %v996
        %v1064 = vpop.f32.mrf.mxu0
        %v1065 = vadd.f32 %v900, %v1064
        %v1066 = vpop.f32.mrf.mxu0
        %v1067 = vadd.f32 %v900, %v1066
        %1068 = vmatmul.bf16.gmra.mxu0 %v999
        %v1069 = vpop.f32.mrf.mxu0
        %v1070 = vadd.f32 %v900, %v1069
        %v1071 = vpop.f32.mrf.mxu0
        %v1072 = vadd.f32 %v900, %v1071
        %1073 = vmatmul.bf16.gmra.mxu0 %v1002
        %v1074 = vpop.f32.mrf.mxu0
        %v1075 = vadd.f32 %v900, %v1074
        %v1076 = vpop.f32.mrf.mxu0
        %v1077 = vadd.f32 %v900, %v1076
        %1078 = vmatmul.bf16.gmra.mxu0 %v1005
        %v1079 = vpop.f32.mrf.mxu0
        %v1080 = vadd.f32 %v900, %v1079
        %v1081 = vpop.f32.mrf.mxu0
        %v1082 = vadd.f32 %v900, %v1081
        %1083 = vmatmul.bf16.gmra.mxu0 %v1008
        %v1084 = vpop.f32.mrf.mxu0
        %v1085 = vadd.f32 %v900, %v1084
        %v1086 = vpop.f32.mrf.mxu0
        %v1087 = vadd.f32 %v900, %v1086
        %1088 = vmatmul.bf16.gmra.mxu0 %v1011
        %v1089 = vpop.f32.mrf.mxu0
        %v1090 = vadd.f32 %v900, %v1089
        %v1091 = vpop.f32.mrf.mxu0
        %v1092 = vadd.f32 %v900, %v1091
        %1093 = vmatmul.bf16.gmra.mxu0 %v1014
        %v1094 = vpop.f32.mrf.mxu0
        %v1095 = vadd.f32 %v900, %v1094
        %v1096 = vpop.f32.mrf.mxu0
        %v1097 = vadd.f32 %v900, %v1096
        %1098 = vmatmul.bf16.gmra.mxu0 %v1017
        %v1099 = vpop.f32.mrf.mxu0
        %v1100 = vadd.f32 %v900, %v1099
        %v1101 = vpop.f32.mrf.mxu0
        %v1102 = vadd.f32 %v900, %v1101
        %1103 = vmatmul.bf16.gmra.mxu0 %v1020
        %v1104 = vpop.f32.mrf.mxu0
        %v1105 = vadd.f32 %v900, %v1104
        %v1106 = vpop.f32.mrf.mxu0
        %v1107 = vadd.f32 %v900, %v1106
        %1108 = vmatmul.bf16.gmra.mxu0 %v1023
        %v1109 = vpop.f32.mrf.mxu0
        %v1110 = vadd.f32 %v900, %v1109
        %v1111 = vpop.f32.mrf.mxu0
        %v1112 = vadd.f32 %v900, %v1111
        %1113 = vmatmul.bf16.gmra.mxu0 %v1026
        %v1114 = vpop.f32.mrf.mxu0
        %v1115 = vadd.f32 %v900, %v1114
        %v1116 = vpop.f32.mrf.mxu0
        %v1117 = vadd.f32 %v900, %v1116
        %1118 = vmatmul.bf16.gmra.mxu0 %v1029
        %v1119 = vpop.f32.mrf.mxu0
        %v1120 = vadd.f32 %v900, %v1119
        %v1121 = vpop.f32.mrf.mxu0
        %v1122 = vadd.f32 %v900, %v1121
        %1123 = vdwg.mxu0
        %v1124 = vmax.f32 %v1045, 0.0
        %v1125 = vmax.f32 %v1047, 0.0
        %v1126 = vmax.f32 %v1050, 0.0
        %v1127 = vmax.f32 %v1052, 0.0
        %v1128 = vmax.f32 %v1055, 0.0
        %v1129 = vmax.f32 %v1057, 0.0
        %v1130 = vmax.f32 %v1060, 0.0
        %v1131 = vmax.f32 %v1062, 0.0
        %v1132 = vmax.f32 %v1065, 0.0
        %v1133 = vmax.f32 %v1067, 0.0
        %v1134 = vmax.f32 %v1070, 0.0
        %v1135 = vmax.f32 %v1072, 0.0
        %v1136 = vmax.f32 %v1075, 0.0
        %v1137 = vmax.f32 %v1077, 0.0
        %v1138 = vmax.f32 %v1080, 0.0
        %v1139 = vmax.f32 %v1082, 0.0
        %v1140 = vmax.f32 %v1085, 0.0
        %v1141 = vmax.f32 %v1087, 0.0
        %v1142 = vmax.f32 %v1090, 0.0
        %v1143 = vmax.f32 %v1092, 0.0
        %v1144 = vmax.f32 %v1095, 0.0
        %v1145 = vmax.f32 %v1097, 0.0
        %v1146 = vmax.f32 %v1100, 0.0
        %v1147 = vmax.f32 %v1102, 0.0
        %v1148 = vmax.f32 %v1105, 0.0
        %v1149 = vmax.f32 %v1107, 0.0
        %v1150 = vmax.f32 %v1110, 0.0
        %v1151 = vmax.f32 %v1112, 0.0
        %v1152 = vmax.f32 %v1115, 0.0
        %v1153 = vmax.f32 %v1117, 0.0
        %v1154 = vmax.f32 %v1120, 0.0
        %v1155 = vmax.f32 %v1122, 0.0
        %v1156 = vpack.c.bf16 %v1125, %v1124
        %v1157 = vpack.c.bf16 %v1127, %v1126
        %v1158 = vpack.c.bf16 %v1129, %v1128
        %v1159 = vpack.c.bf16 %v1131, %v1130
        %v1160 = vpack.c.bf16 %v1133, %v1132
        %v1161 = vpack.c.bf16 %v1135, %v1134
        %v1162 = vpack.c.bf16 %v1137, %v1136
        %v1163 = vpack.c.bf16 %v1139, %v1138
        %v1164 = vpack.c.bf16 %v1141, %v1140
        %v1165 = vpack.c.bf16 %v1143, %v1142
        %v1166 = vpack.c.bf16 %v1145, %v1144
        %v1167 = vpack.c.bf16 %v1147, %v1146
        %v1168 = vpack.c.bf16 %v1149, %v1148
        %v1169 = vpack.c.bf16 %v1151, %v1150
        %v1170 = vpack.c.bf16 %v1153, %v1152
        %v1171 = vpack.c.bf16 %v1155, %v1154
        %v1172 = vld [vmem:[%s4] sm:$0x1]
        %v1173 = vld [vmem:[%s3] sm:$0xf]
        %v1174 = vld [vmem:[%s3 + $0x4] sm:$0xf]
        %v1175 = vld [vmem:[%s3 + $0x8] sm:$0xf]
        %v1176 = vld [vmem:[%s3 + $0xc] sm:$0xf]
        %v1177 = vld [vmem:[%s3 + $0x10] sm:$0xf]
        %v1178 = vld [vmem:[%s3 + $0x14] sm:$0xf]
        %v1179 = vld [vmem:[%s3 + $0x18] sm:$0xf]
        %v1180 = vld [vmem:[%s3 + $0x1c] sm:$0xf]
        %v1181 = vld [vmem:[%s3 + $0x20] sm:$0xf]
        %v1182 = vld [vmem:[%s3 + $0x24] sm:$0xf]
        %v1183 = vld [vmem:[%s3 + $0x28] sm:$0xf]
        %v1184 = vld [vmem:[%s3 + $0x2c] sm:$0xf]
        %v1185 = vld [vmem:[%s3 + $0x30] sm:$0xf]
        %v1186 = vld [vmem:[%s3 + $0x34] sm:$0xf]
        %v1187 = vld [vmem:[%s3 + $0x38] sm:$0xf]
        %v1188 = vld [vmem:[%s3 + $0x3c] sm:$0xf]
        %v1190 = vperm.slane %v1172, 0
        %v1208 = vunpack.c.l.b16 %v1173
        %v1209 = vunpack.c.l.b16 %v1174
        %v1210 = vunpack.c.l.b16 %v1175
        %v1211 = vunpack.c.l.b16 %v1176
        %v1212 = vunpack.c.l.b16 %v1177
        %v1213 = vunpack.c.l.b16 %v1178
        %v1214 = vunpack.c.l.b16 %v1179
        %v1215 = vunpack.c.l.b16 %v1180
        %v1216 = vunpack.c.l.b16 %v1181
        %v1217 = vunpack.c.l.b16 %v1182
        %v1218 = vunpack.c.l.b16 %v1183
        %v1219 = vunpack.c.l.b16 %v1184
        %v1220 = vunpack.c.l.b16 %v1185
        %v1221 = vunpack.c.l.b16 %v1186
        %v1222 = vunpack.c.l.b16 %v1187
        %v1223 = vunpack.c.l.b16 %v1188
        %v1224 = vpack.c.b16 %v1209, %v1208
        %v1225 = vpack.c.b16 %v1211, %v1210
        %v1226 = vpack.c.b16 %v1213, %v1212
        %v1227 = vpack.c.b16 %v1215, %v1214
        %v1228 = vpack.c.b16 %v1217, %v1216
        %v1229 = vpack.c.b16 %v1219, %v1218
        %v1230 = vpack.c.b16 %v1221, %v1220
        %v1231 = vpack.c.b16 %v1223, %v1222
        %1240 = vmatpush.bf16.msra.mxu0 %v1231
        %1241 = vmatpush.bf16.msra.mxu0 %v1230
        %1242 = vmatpush.bf16.msra.mxu0 %v1229
        %1243 = vmatpush.bf16.msra.mxu0 %v1228
        %1244 = vmatpush.bf16.msra.mxu0 %v1227
        %1245 = vmatpush.bf16.msra.mxu0 %v1226
        %1246 = vmatpush.bf16.msra.mxu0 %v1225
        %1247 = vmatpush.bf16.msra.mxu0 %v1224
        %1248 = vmatmul.bf16.gmra.mxu0 %v1156
        %v1249 = vpop.f32.mrf.mxu0
        %v1250 = vadd.f32 %v1190, %v1249
        %v1251 = vpop.f32.mrf.mxu0
        %v1252 = vadd.f32 %v1190, %v1251
        %1253 = vmatmul.bf16.gmra.mxu0 %v1157
        %v1254 = vpop.f32.mrf.mxu0
        %v1255 = vadd.f32 %v1190, %v1254
        %v1256 = vpop.f32.mrf.mxu0
        %v1257 = vadd.f32 %v1190, %v1256
        %1258 = vmatmul.bf16.gmra.mxu0 %v1158
        %v1259 = vpop.f32.mrf.mxu0
        %v1260 = vadd.f32 %v1190, %v1259
        %v1261 = vpop.f32.mrf.mxu0
        %v1262 = vadd.f32 %v1190, %v1261
        %1263 = vmatmul.bf16.gmra.mxu0 %v1159
        %v1264 = vpop.f32.mrf.mxu0
        %v1265 = vadd.f32 %v1190, %v1264
        %v1266 = vpop.f32.mrf.mxu0
        %v1267 = vadd.f32 %v1190, %v1266
        %1268 = vmatmul.bf16.gmra.mxu0 %v1160
        %v1269 = vpop.f32.mrf.mxu0
        %v1270 = vadd.f32 %v1190, %v1269
        %v1271 = vpop.f32.mrf.mxu0
        %v1272 = vadd.f32 %v1190, %v1271
        %1273 = vmatmul.bf16.gmra.mxu0 %v1161
        %v1274 = vpop.f32.mrf.mxu0
        %v1275 = vadd.f32 %v1190, %v1274
        %v1276 = vpop.f32.mrf.mxu0
        %v1277 = vadd.f32 %v1190, %v1276
        %1278 = vmatmul.bf16.gmra.mxu0 %v1162
        %v1279 = vpop.f32.mrf.mxu0
        %v1280 = vadd.f32 %v1190, %v1279
        %v1281 = vpop.f32.mrf.mxu0
        %v1282 = vadd.f32 %v1190, %v1281
        %1283 = vmatmul.bf16.gmra.mxu0 %v1163
        %v1284 = vpop.f32.mrf.mxu0
        %v1285 = vadd.f32 %v1190, %v1284
        %v1286 = vpop.f32.mrf.mxu0
        %v1287 = vadd.f32 %v1190, %v1286
        %1288 = vmatmul.bf16.gmra.mxu0 %v1164
        %v1289 = vpop.f32.mrf.mxu0
        %v1290 = vadd.f32 %v1190, %v1289
        %v1291 = vpop.f32.mrf.mxu0
        %v1292 = vadd.f32 %v1190, %v1291
        %1293 = vmatmul.bf16.gmra.mxu0 %v1165
        %v1294 = vpop.f32.mrf.mxu0
        %v1295 = vadd.f32 %v1190, %v1294
        %v1296 = vpop.f32.mrf.mxu0
        %v1297 = vadd.f32 %v1190, %v1296
        %1298 = vmatmul.bf16.gmra.mxu0 %v1166
        %v1299 = vpop.f32.mrf.mxu0
        %v1300 = vadd.f32 %v1190, %v1299
        %v1301 = vpop.f32.mrf.mxu0
        %v1302 = vadd.f32 %v1190, %v1301
        %1303 = vmatmul.bf16.gmra.mxu0 %v1167
        %v1304 = vpop.f32.mrf.mxu0
        %v1305 = vadd.f32 %v1190, %v1304
        %v1306 = vpop.f32.mrf.mxu0
        %v1307 = vadd.f32 %v1190, %v1306
        %1308 = vmatmul.bf16.gmra.mxu0 %v1168
        %v1309 = vpop.f32.mrf.mxu0
        %v1310 = vadd.f32 %v1190, %v1309
        %v1311 = vpop.f32.mrf.mxu0
        %v1312 = vadd.f32 %v1190, %v1311
        %1313 = vmatmul.bf16.gmra.mxu0 %v1169
        %v1314 = vpop.f32.mrf.mxu0
        %v1315 = vadd.f32 %v1190, %v1314
        %v1316 = vpop.f32.mrf.mxu0
        %v1317 = vadd.f32 %v1190, %v1316
        %1318 = vmatmul.bf16.gmra.mxu0 %v1170
        %v1319 = vpop.f32.mrf.mxu0
        %v1320 = vadd.f32 %v1190, %v1319
        %v1321 = vpop.f32.mrf.mxu0
        %v1322 = vadd.f32 %v1190, %v1321
        %1323 = vmatmul.bf16.gmra.mxu0 %v1171
        %v1324 = vpop.f32.mrf.mxu0
        %v1325 = vadd.f32 %v1190, %v1324
        %v1326 = vpop.f32.mrf.mxu0
        %v1327 = vadd.f32 %v1190, %v1326
        %1328 = vdwg.mxu0
        %v1329 = vmax.f32 %v1250, 0.0
        %v1330 = vmax.f32 %v1252, 0.0
        %v1331 = vmax.f32 %v1255, 0.0
        %v1332 = vmax.f32 %v1257, 0.0
        %v1333 = vmax.f32 %v1260, 0.0
        %v1334 = vmax.f32 %v1262, 0.0
        %v1335 = vmax.f32 %v1265, 0.0
        %v1336 = vmax.f32 %v1267, 0.0
        %v1337 = vmax.f32 %v1270, 0.0
        %v1338 = vmax.f32 %v1272, 0.0
        %v1339 = vmax.f32 %v1275, 0.0
        %v1340 = vmax.f32 %v1277, 0.0
        %v1341 = vmax.f32 %v1280, 0.0
        %v1342 = vmax.f32 %v1282, 0.0
        %v1343 = vmax.f32 %v1285, 0.0
        %v1344 = vmax.f32 %v1287, 0.0
        %v1345 = vmax.f32 %v1290, 0.0
        %v1346 = vmax.f32 %v1292, 0.0
        %v1347 = vmax.f32 %v1295, 0.0
        %v1348 = vmax.f32 %v1297, 0.0
        %v1349 = vmax.f32 %v1300, 0.0
        %v1350 = vmax.f32 %v1302, 0.0
        %v1351 = vmax.f32 %v1305, 0.0
        %v1352 = vmax.f32 %v1307, 0.0
        %v1353 = vmax.f32 %v1310, 0.0
        %v1354 = vmax.f32 %v1312, 0.0
        %v1355 = vmax.f32 %v1315, 0.0
        %v1356 = vmax.f32 %v1317, 0.0
        %v1357 = vmax.f32 %v1320, 0.0
        %v1358 = vmax.f32 %v1322, 0.0
        %v1359 = vmax.f32 %v1325, 0.0
        %v1360 = vmax.f32 %v1327, 0.0
        %v1361 = vpack.c.bf16 %v1330, %v1329
        %v1362 = vpack.c.bf16 %v1332, %v1331
        %v1363 = vpack.c.bf16 %v1334, %v1333
        %v1364 = vpack.c.bf16 %v1336, %v1335
        %v1365 = vpack.c.bf16 %v1338, %v1337
        %v1366 = vpack.c.bf16 %v1340, %v1339
        %v1367 = vpack.c.bf16 %v1342, %v1341
        %v1368 = vpack.c.bf16 %v1344, %v1343
        %v1369 = vpack.c.bf16 %v1346, %v1345
        %v1370 = vpack.c.bf16 %v1348, %v1347
        %v1371 = vpack.c.bf16 %v1350, %v1349
        %v1372 = vpack.c.bf16 %v1352, %v1351
        %v1373 = vpack.c.bf16 %v1354, %v1353
        %v1374 = vpack.c.bf16 %v1356, %v1355
        %v1375 = vpack.c.bf16 %v1358, %v1357
        %v1376 = vpack.c.bf16 %v1360, %v1359
        %v1377 = vld [vmem:[%s6] sm:$0x3]
        %v1378 = vld [vmem:[%s5] sm:$0xff]
        %v1379 = vld [vmem:[%s5 + $0x8] sm:$0xff]
        %v1380 = vld [vmem:[%s5 + $0x10] sm:$0xff]
        %v1381 = vld [vmem:[%s5 + $0x18] sm:$0xff]
        %v1382 = vld [vmem:[%s5 + $0x20] sm:$0xff]
        %v1383 = vld [vmem:[%s5 + $0x28] sm:$0xff]
        %v1384 = vld [vmem:[%s5 + $0x30] sm:$0xff]
        %v1385 = vld [vmem:[%s5 + $0x38] sm:$0xff]
        %v1386 = vld [vmem:[%s5 + $0x40] sm:$0xff]
        %v1387 = vld [vmem:[%s5 + $0x48] sm:$0xff]
        %v1388 = vld [vmem:[%s5 + $0x50] sm:$0xff]
        %v1389 = vld [vmem:[%s5 + $0x58] sm:$0xff]
        %v1390 = vld [vmem:[%s5 + $0x60] sm:$0xff]
        %v1391 = vld [vmem:[%s5 + $0x68] sm:$0xff]
        %v1392 = vld [vmem:[%s5 + $0x70] sm:$0xff]
        %v1393 = vld [vmem:[%s5 + $0x78] sm:$0xff]
        %v1395 = vperm.slane %v1377, 0
        %v1396 = vperm.slane %v1377, 1
        %v1415 = vunpack.c.l.b16 %v1378
        %v1416 = vunpack.c.h.b16 %v1378
        %v1417 = vunpack.c.l.b16 %v1379
        %v1418 = vunpack.c.h.b16 %v1379
        %v1419 = vunpack.c.l.b16 %v1380
        %v1420 = vunpack.c.h.b16 %v1380
        %v1421 = vunpack.c.l.b16 %v1381
        %v1422 = vunpack.c.h.b16 %v1381
        %v1423 = vunpack.c.l.b16 %v1382
        %v1424 = vunpack.c.h.b16 %v1382
        %v1425 = vunpack.c.l.b16 %v1383
        %v1426 = vunpack.c.h.b16 %v1383
        %v1427 = vunpack.c.l.b16 %v1384
        %v1428 = vunpack.c.h.b16 %v1384
        %v1429 = vunpack.c.l.b16 %v1385
        %v1430 = vunpack.c.h.b16 %v1385
        %v1431 = vunpack.c.l.b16 %v1386
        %v1432 = vunpack.c.h.b16 %v1386
        %v1433 = vunpack.c.l.b16 %v1387
        %v1434 = vunpack.c.h.b16 %v1387
        %v1435 = vunpack.c.l.b16 %v1388
        %v1436 = vunpack.c.h.b16 %v1388
        %v1437 = vunpack.c.l.b16 %v1389
        %v1438 = vunpack.c.h.b16 %v1389
        %v1439 = vunpack.c.l.b16 %v1390
        %v1440 = vunpack.c.h.b16 %v1390
        %v1441 = vunpack.c.l.b16 %v1391
        %v1442 = vunpack.c.h.b16 %v1391
        %v1443 = vunpack.c.l.b16 %v1392
        %v1444 = vunpack.c.h.b16 %v1392
        %v1445 = vunpack.c.l.b16 %v1393
        %v1446 = vunpack.c.h.b16 %v1393
        %v1447 = vpack.c.b16 %v1417, %v1415
        %v1448 = vpack.c.b16 %v1418, %v1416
        %v1449 = vpack.c.b16 %v1421, %v1419
        %v1450 = vpack.c.b16 %v1422, %v1420
        %v1451 = vpack.c.b16 %v1425, %v1423
        %v1452 = vpack.c.b16 %v1426, %v1424
        %v1453 = vpack.c.b16 %v1429, %v1427
        %v1454 = vpack.c.b16 %v1430, %v1428
        %v1455 = vpack.c.b16 %v1433, %v1431
        %v1456 = vpack.c.b16 %v1434, %v1432
        %v1457 = vpack.c.b16 %v1437, %v1435
        %v1458 = vpack.c.b16 %v1438, %v1436
        %v1459 = vpack.c.b16 %v1441, %v1439
        %v1460 = vpack.c.b16 %v1442, %v1440
        %v1461 = vpack.c.b16 %v1445, %v1443
        %v1462 = vpack.c.b16 %v1446, %v1444
        %1479 = vmatpush.bf16.msra.mxu0 %v1461
        %1480 = vmatpush.bf16.msra.mxu0 %v1459
        %1481 = vmatpush.bf16.msra.mxu0 %v1457
        %1482 = vmatpush.bf16.msra.mxu0 %v1455
        %1483 = vmatpush.bf16.msra.mxu0 %v1453
        %1484 = vmatpush.bf16.msra.mxu0 %v1451
        %1485 = vmatpush.bf16.msra.mxu0 %v1449
        %1486 = vmatpush.bf16.msra.mxu0 %v1447
        %1487 = vmatmul.bf16.gmra.mxu0 %v1361
        %v1488 = vpop.f32.mrf.mxu0
        %v1489 = vadd.f32 %v1395, %v1488
        %v1490 = vpop.f32.mrf.mxu0
        %v1491 = vadd.f32 %v1395, %v1490
        %1492 = vmatmul.bf16.gmra.mxu0 %v1362
        %v1493 = vpop.f32.mrf.mxu0
        %v1494 = vadd.f32 %v1395, %v1493
        %v1495 = vpop.f32.mrf.mxu0
        %v1496 = vadd.f32 %v1395, %v1495
        %1497 = vmatmul.bf16.gmra.mxu0 %v1363
        %v1498 = vpop.f32.mrf.mxu0
        %v1499 = vadd.f32 %v1395, %v1498
        %v1500 = vpop.f32.mrf.mxu0
        %v1501 = vadd.f32 %v1395, %v1500
        %1502 = vmatmul.bf16.gmra.mxu0 %v1364
        %v1503 = vpop.f32.mrf.mxu0
        %v1504 = vadd.f32 %v1395, %v1503
        %v1505 = vpop.f32.mrf.mxu0
        %v1506 = vadd.f32 %v1395, %v1505
        %1507 = vmatmul.bf16.gmra.mxu0 %v1365
        %v1508 = vpop.f32.mrf.mxu0
        %v1509 = vadd.f32 %v1395, %v1508
        %v1510 = vpop.f32.mrf.mxu0
        %v1511 = vadd.f32 %v1395, %v1510
        %1512 = vmatmul.bf16.gmra.mxu0 %v1366
        %v1513 = vpop.f32.mrf.mxu0
        %v1514 = vadd.f32 %v1395, %v1513
        %v1515 = vpop.f32.mrf.mxu0
        %v1516 = vadd.f32 %v1395, %v1515
        %1517 = vmatmul.bf16.gmra.mxu0 %v1367
        %v1518 = vpop.f32.mrf.mxu0
        %v1519 = vadd.f32 %v1395, %v1518
        %v1520 = vpop.f32.mrf.mxu0
        %v1521 = vadd.f32 %v1395, %v1520
        %1522 = vmatmul.bf16.gmra.mxu0 %v1368
        %v1523 = vpop.f32.mrf.mxu0
        %v1524 = vadd.f32 %v1395, %v1523
        %v1525 = vpop.f32.mrf.mxu0
        %v1526 = vadd.f32 %v1395, %v1525
        %1527 = vmatmul.bf16.gmra.mxu0 %v1369
        %v1528 = vpop.f32.mrf.mxu0
        %v1529 = vadd.f32 %v1395, %v1528
        %v1530 = vpop.f32.mrf.mxu0
        %v1531 = vadd.f32 %v1395, %v1530
        %1532 = vmatmul.bf16.gmra.mxu0 %v1370
        %v1533 = vpop.f32.mrf.mxu0
        %v1534 = vadd.f32 %v1395, %v1533
        %v1535 = vpop.f32.mrf.mxu0
        %v1536 = vadd.f32 %v1395, %v1535
        %1537 = vmatmul.bf16.gmra.mxu0 %v1371
        %v1538 = vpop.f32.mrf.mxu0
        %v1539 = vadd.f32 %v1395, %v1538
        %v1540 = vpop.f32.mrf.mxu0
        %v1541 = vadd.f32 %v1395, %v1540
        %1542 = vmatmul.bf16.gmra.mxu0 %v1372
        %v1543 = vpop.f32.mrf.mxu0
        %v1544 = vadd.f32 %v1395, %v1543
        %v1545 = vpop.f32.mrf.mxu0
        %v1546 = vadd.f32 %v1395, %v1545
        %1547 = vmatmul.bf16.gmra.mxu0 %v1373
        %v1548 = vpop.f32.mrf.mxu0
        %v1549 = vadd.f32 %v1395, %v1548
        %v1550 = vpop.f32.mrf.mxu0
        %v1551 = vadd.f32 %v1395, %v1550
        %1552 = vmatmul.bf16.gmra.mxu0 %v1374
        %v1553 = vpop.f32.mrf.mxu0
        %v1554 = vadd.f32 %v1395, %v1553
        %v1555 = vpop.f32.mrf.mxu0
        %v1556 = vadd.f32 %v1395, %v1555
        %1557 = vmatmul.bf16.gmra.mxu0 %v1375
        %v1558 = vpop.f32.mrf.mxu0
        %v1559 = vadd.f32 %v1395, %v1558
        %v1560 = vpop.f32.mrf.mxu0
        %v1561 = vadd.f32 %v1395, %v1560
        %1562 = vmatmul.bf16.gmra.mxu0 %v1376
        %v1563 = vpop.f32.mrf.mxu0
        %v1564 = vadd.f32 %v1395, %v1563
        %v1565 = vpop.f32.mrf.mxu0
        %v1566 = vadd.f32 %v1395, %v1565
        %1567 = vdwg.mxu0
        %1568 = vmatpush.bf16.msra.mxu0 %v1462
        %1569 = vmatpush.bf16.msra.mxu0 %v1460
        %1570 = vmatpush.bf16.msra.mxu0 %v1458
        %1571 = vmatpush.bf16.msra.mxu0 %v1456
        %1572 = vmatpush.bf16.msra.mxu0 %v1454
        %1573 = vmatpush.bf16.msra.mxu0 %v1452
        %1574 = vmatpush.bf16.msra.mxu0 %v1450
        %1575 = vmatpush.bf16.msra.mxu0 %v1448
        %1576 = vmatmul.bf16.gmra.mxu0 %v1361
        %v1577 = vpop.f32.mrf.mxu0
        %v1578 = vadd.f32 %v1396, %v1577
        %v1579 = vpop.f32.mrf.mxu0
        %v1580 = vadd.f32 %v1396, %v1579
        %1581 = vmatmul.bf16.gmra.mxu0 %v1362
        %v1582 = vpop.f32.mrf.mxu0
        %v1583 = vadd.f32 %v1396, %v1582
        %v1584 = vpop.f32.mrf.mxu0
        %v1585 = vadd.f32 %v1396, %v1584
        %1586 = vmatmul.bf16.gmra.mxu0 %v1363
        %v1587 = vpop.f32.mrf.mxu0
        %v1588 = vadd.f32 %v1396, %v1587
        %v1589 = vpop.f32.mrf.mxu0
        %v1590 = vadd.f32 %v1396, %v1589
        %1591 = vmatmul.bf16.gmra.mxu0 %v1364
        %v1592 = vpop.f32.mrf.mxu0
        %v1593 = vadd.f32 %v1396, %v1592
        %v1594 = vpop.f32.mrf.mxu0
        %v1595 = vadd.f32 %v1396, %v1594
        %1596 = vmatmul.bf16.gmra.mxu0 %v1365
        %v1597 = vpop.f32.mrf.mxu0
        %v1598 = vadd.f32 %v1396, %v1597
        %v1599 = vpop.f32.mrf.mxu0
        %v1600 = vadd.f32 %v1396, %v1599
        %1601 = vmatmul.bf16.gmra.mxu0 %v1366
        %v1602 = vpop.f32.mrf.mxu0
        %v1603 = vadd.f32 %v1396, %v1602
        %v1604 = vpop.f32.mrf.mxu0
        %v1605 = vadd.f32 %v1396, %v1604
        %1606 = vmatmul.bf16.gmra.mxu0 %v1367
        %v1607 = vpop.f32.mrf.mxu0
        %v1608 = vadd.f32 %v1396, %v1607
        %v1609 = vpop.f32.mrf.mxu0
        %v1610 = vadd.f32 %v1396, %v1609
        %1611 = vmatmul.bf16.gmra.mxu0 %v1368
        %v1612 = vpop.f32.mrf.mxu0
        %v1613 = vadd.f32 %v1396, %v1612
        %v1614 = vpop.f32.mrf.mxu0
        %v1615 = vadd.f32 %v1396, %v1614
        %1616 = vmatmul.bf16.gmra.mxu0 %v1369
        %v1617 = vpop.f32.mrf.mxu0
        %v1618 = vadd.f32 %v1396, %v1617
        %v1619 = vpop.f32.mrf.mxu0
        %v1620 = vadd.f32 %v1396, %v1619
        %1621 = vmatmul.bf16.gmra.mxu0 %v1370
        %v1622 = vpop.f32.mrf.mxu0
        %v1623 = vadd.f32 %v1396, %v1622
        %v1624 = vpop.f32.mrf.mxu0
        %v1625 = vadd.f32 %v1396, %v1624
        %1626 = vmatmul.bf16.gmra.mxu0 %v1371
        %v1627 = vpop.f32.mrf.mxu0
        %v1628 = vadd.f32 %v1396, %v1627
        %v1629 = vpop.f32.mrf.mxu0
        %v1630 = vadd.f32 %v1396, %v1629
        %1631 = vmatmul.bf16.gmra.mxu0 %v1372
        %v1632 = vpop.f32.mrf.mxu0
        %v1633 = vadd.f32 %v1396, %v1632
        %v1634 = vpop.f32.mrf.mxu0
        %v1635 = vadd.f32 %v1396, %v1634
        %1636 = vmatmul.bf16.gmra.mxu0 %v1373
        %v1637 = vpop.f32.mrf.mxu0
        %v1638 = vadd.f32 %v1396, %v1637
        %v1639 = vpop.f32.mrf.mxu0
        %v1640 = vadd.f32 %v1396, %v1639
        %1641 = vmatmul.bf16.gmra.mxu0 %v1374
        %v1642 = vpop.f32.mrf.mxu0
        %v1643 = vadd.f32 %v1396, %v1642
        %v1644 = vpop.f32.mrf.mxu0
        %v1645 = vadd.f32 %v1396, %v1644
        %1646 = vmatmul.bf16.gmra.mxu0 %v1375
        %v1647 = vpop.f32.mrf.mxu0
        %v1648 = vadd.f32 %v1396, %v1647
        %v1649 = vpop.f32.mrf.mxu0
        %v1650 = vadd.f32 %v1396, %v1649
        %1651 = vmatmul.bf16.gmra.mxu0 %v1376
        %v1652 = vpop.f32.mrf.mxu0
        %v1653 = vadd.f32 %v1396, %v1652
        %v1654 = vpop.f32.mrf.mxu0
        %v1655 = vadd.f32 %v1396, %v1654
        %1656 = vdwg.mxu0
        %v1657 = vmax.f32 %v1489, 0.0
        %v1658 = vmax.f32 %v1578, 0.0
        %v1659 = vmax.f32 %v1491, 0.0
        %v1660 = vmax.f32 %v1580, 0.0
        %v1661 = vmax.f32 %v1494, 0.0
        %v1662 = vmax.f32 %v1583, 0.0
        %v1663 = vmax.f32 %v1496, 0.0
        %v1664 = vmax.f32 %v1585, 0.0
        %v1665 = vmax.f32 %v1499, 0.0
        %v1666 = vmax.f32 %v1588, 0.0
        %v1667 = vmax.f32 %v1501, 0.0
        %v1668 = vmax.f32 %v1590, 0.0
        %v1669 = vmax.f32 %v1504, 0.0
        %v1670 = vmax.f32 %v1593, 0.0
        %v1671 = vmax.f32 %v1506, 0.0
        %v1672 = vmax.f32 %v1595, 0.0
        %v1673 = vmax.f32 %v1509, 0.0
        %v1674 = vmax.f32 %v1598, 0.0
        %v1675 = vmax.f32 %v1511, 0.0
        %v1676 = vmax.f32 %v1600, 0.0
        %v1677 = vmax.f32 %v1514, 0.0
        %v1678 = vmax.f32 %v1603, 0.0
        %v1679 = vmax.f32 %v1516, 0.0
        %v1680 = vmax.f32 %v1605, 0.0
        %v1681 = vmax.f32 %v1519, 0.0
        %v1682 = vmax.f32 %v1608, 0.0
        %v1683 = vmax.f32 %v1521, 0.0
        %v1684 = vmax.f32 %v1610, 0.0
        %v1685 = vmax.f32 %v1524, 0.0
        %v1686 = vmax.f32 %v1613, 0.0
        %v1687 = vmax.f32 %v1526, 0.0
        %v1688 = vmax.f32 %v1615, 0.0
        %v1689 = vmax.f32 %v1529, 0.0
        %v1690 = vmax.f32 %v1618, 0.0
        %v1691 = vmax.f32 %v1531, 0.0
        %v1692 = vmax.f32 %v1620, 0.0
        %v1693 = vmax.f32 %v1534, 0.0
        %v1694 = vmax.f32 %v1623, 0.0
        %v1695 = vmax.f32 %v1536, 0.0
        %v1696 = vmax.f32 %v1625, 0.0
        %v1697 = vmax.f32 %v1539, 0.0
        %v1698 = vmax.f32 %v1628, 0.0
        %v1699 = vmax.f32 %v1541, 0.0
        %v1700 = vmax.f32 %v1630, 0.0
        %v1701 = vmax.f32 %v1544, 0.0
        %v1702 = vmax.f32 %v1633, 0.0
        %v1703 = vmax.f32 %v1546, 0.0
        %v1704 = vmax.f32 %v1635, 0.0
        %v1705 = vmax.f32 %v1549, 0.0
        %v1706 = vmax.f32 %v1638, 0.0
        %v1707 = vmax.f32 %v1551, 0.0
        %v1708 = vmax.f32 %v1640, 0.0
        %v1709 = vmax.f32 %v1554, 0.0
        %v1710 = vmax.f32 %v1643, 0.0
        %v1711 = vmax.f32 %v1556, 0.0
        %v1712 = vmax.f32 %v1645, 0.0
        %v1713 = vmax.f32 %v1559, 0.0
        %v1714 = vmax.f32 %v1648, 0.0
        %v1715 = vmax.f32 %v1561, 0.0
        %v1716 = vmax.f32 %v1650, 0.0
        %v1717 = vmax.f32 %v1564, 0.0
        %v1718 = vmax.f32 %v1653, 0.0
        %v1719 = vmax.f32 %v1566, 0.0
        %v1720 = vmax.f32 %v1655, 0.0
        %v1721 = vmax.f32 %v1657, %v1661
        %v1722 = vmax.f32 %v1659, %v1663
        %v1723 = vmax.f32 %v1721, %v1665
        %v1724 = vmax.f32 %v1722, %v1667
        %v1725 = vmax.f32 %v1723, %v1669
        %v1726 = vmax.f32 %v1724, %v1671
        %v1727 = vmax.f32 %v1725, %v1673
        %v1728 = vmax.f32 %v1726, %v1675
        %v1729 = vmax.f32 %v1727, %v1677
        %v1730 = vmax.f32 %v1728, %v1679
        %v1731 = vmax.f32 %v1729, %v1681
        %v1732 = vmax.f32 %v1730, %v1683
        %v1733 = vmax.f32 %v1731, %v1685
        %v1734 = vmax.f32 %v1732, %v1687
        %v1735 = vmax.f32 %v1733, %v1689
        %v1736 = vmax.f32 %v1734, %v1691
        %v1737 = vmax.f32 %v1735, %v1693
        %v1738 = vmax.f32 %v1736, %v1695
        %v1739 = vmax.f32 %v1737, %v1697
        %v1740 = vmax.f32 %v1738, %v1699
        %v1741 = vmax.f32 %v1739, %v1701
        %v1742 = vmax.f32 %v1740, %v1703
        %v1743 = vmax.f32 %v1741, %v1705
        %v1744 = vmax.f32 %v1742, %v1707
        %v1745 = vmax.f32 %v1743, %v1709
        %v1746 = vmax.f32 %v1744, %v1711
        %v1747 = vmax.f32 %v1745, %v1713
        %v1748 = vmax.f32 %v1746, %v1715
        %v1749 = vmax.f32 %v1747, %v1717
        %v1750 = vmax.f32 %v1748, %v1719
        %v1751 = vmax.f32 %v1749, %v1750
        %v1752 = vrot.slane %v1751, 4
        %v1753 = vmax.f32 %v1751, %v1752
        %v1754 = vrot.slane %v1753, 2
        %v1755 = vmax.f32 %v1753, %v1754
        %v1756 = vrot.slane %v1755, 1
        %v1757 = vmax.f32 %v1755, %v1756
        %v1758 = vmax.f32 %v1658, %v1662
        %v1759 = vmax.f32 %v1660, %v1664
        %v1760 = vmax.f32 %v1758, %v1666
        %v1761 = vmax.f32 %v1759, %v1668
        %v1762 = vmax.f32 %v1760, %v1670
        %v1763 = vmax.f32 %v1761, %v1672
        %v1764 = vmax.f32 %v1762, %v1674
        %v1765 = vmax.f32 %v1763, %v1676
        %v1766 = vmax.f32 %v1764, %v1678
        %v1767 = vmax.f32 %v1765, %v1680
        %v1768 = vmax.f32 %v1766, %v1682
        %v1769 = vmax.f32 %v1767, %v1684
        %v1770 = vmax.f32 %v1768, %v1686
        %v1771 = vmax.f32 %v1769, %v1688
        %v1772 = vmax.f32 %v1770, %v1690
        %v1773 = vmax.f32 %v1771, %v1692
        %v1774 = vmax.f32 %v1772, %v1694
        %v1775 = vmax.f32 %v1773, %v1696
        %v1776 = vmax.f32 %v1774, %v1698
        %v1777 = vmax.f32 %v1775, %v1700
        %v1778 = vmax.f32 %v1776, %v1702
        %v1779 = vmax.f32 %v1777, %v1704
        %v1780 = vmax.f32 %v1778, %v1706
        %v1781 = vmax.f32 %v1779, %v1708
        %v1782 = vmax.f32 %v1780, %v1710
        %v1783 = vmax.f32 %v1781, %v1712
        %v1784 = vmax.f32 %v1782, %v1714
        %v1785 = vmax.f32 %v1783, %v1716
        %v1786 = vmax.f32 %v1784, %v1718
        %v1787 = vmax.f32 %v1785, %v1720
        %v1788 = vmax.f32 %v1786, %v1787
        %v1789 = vrot.slane %v1788, 4
        %v1790 = vmax.f32 %v1788, %v1789
        %v1791 = vrot.slane %v1790, 2
        %v1792 = vmax.f32 %v1790, %v1791
        %v1793 = vrot.slane %v1792, 1
        %v1794 = vmax.f32 %v1792, %v1793
        %v1795 = vpack.c.bf16 %v1757, %v1757
        %v1796 = vpack.c.bf16 %v1794, %v1794
        %v1797 = vld [vmem:[%s8] sm:$0x3]
        %v1798 = vld [vmem:[%s7] sm:$0xff]
        %v1799 = vld [vmem:[%s7 + $0x8] sm:$0xff]
        %v1800 = vld [vmem:[%s7 + $0x10] sm:$0xff]
        %v1801 = vld [vmem:[%s7 + $0x18] sm:$0xff]
        %v1802 = vld [vmem:[%s7 + $0x20] sm:$0xff]
        %v1803 = vld [vmem:[%s7 + $0x28] sm:$0xff]
        %v1804 = vld [vmem:[%s7 + $0x30] sm:$0xff]
        %v1805 = vld [vmem:[%s7 + $0x38] sm:$0xff]
        %v1806 = vld [vmem:[%s7 + $0x40] sm:$0xff]
        %v1807 = vld [vmem:[%s7 + $0x48] sm:$0xff]
        %v1808 = vld [vmem:[%s7 + $0x50] sm:$0xff]
        %v1809 = vld [vmem:[%s7 + $0x58] sm:$0xff]
        %v1810 = vld [vmem:[%s7 + $0x60] sm:$0xff]
        %v1811 = vld [vmem:[%s7 + $0x68] sm:$0xff]
        %v1812 = vld [vmem:[%s7 + $0x70] sm:$0xff]
        %v1813 = vld [vmem:[%s7 + $0x78] sm:$0xff]
        %v1814 = vld [vmem:[%s7 + $0x80] sm:$0xff]
        %v1815 = vld [vmem:[%s7 + $0x88] sm:$0xff]
        %v1816 = vld [vmem:[%s7 + $0x90] sm:$0xff]
        %v1817 = vld [vmem:[%s7 + $0x98] sm:$0xff]
        %v1818 = vld [vmem:[%s7 + $0xa0] sm:$0xff]
        %v1819 = vld [vmem:[%s7 + $0xa8] sm:$0xff]
        %v1820 = vld [vmem:[%s7 + $0xb0] sm:$0xff]
        %v1821 = vld [vmem:[%s7 + $0xb8] sm:$0xff]
        %v1822 = vld [vmem:[%s7 + $0xc0] sm:$0xff]
        %v1823 = vld [vmem:[%s7 + $0xc8] sm:$0xff]
        %v1824 = vld [vmem:[%s7 + $0xd0] sm:$0xff]
        %v1825 = vld [vmem:[%s7 + $0xd8] sm:$0xff]
        %v1826 = vld [vmem:[%s7 + $0xe0] sm:$0xff]
        %v1827 = vld [vmem:[%s7 + $0xe8] sm:$0xff]
        %v1828 = vld [vmem:[%s7 + $0xf0] sm:$0xff]
        %v1829 = vld [vmem:[%s7 + $0xf8] sm:$0xff]
        %v1862 = vunpack.c.l.b16 %v1798
        %v1863 = vunpack.c.h.b16 %v1798
        %v1864 = vunpack.c.l.b16 %v1799
        %v1865 = vunpack.c.h.b16 %v1799
        %v1866 = vunpack.c.l.b16 %v1800
        %v1867 = vunpack.c.h.b16 %v1800
        %v1868 = vunpack.c.l.b16 %v1801
        %v1869 = vunpack.c.h.b16 %v1801
        %v1870 = vunpack.c.l.b16 %v1802
        %v1871 = vunpack.c.h.b16 %v1802
        %v1872 = vunpack.c.l.b16 %v1803
        %v1873 = vunpack.c.h.b16 %v1803
        %v1874 = vunpack.c.l.b16 %v1804
        %v1875 = vunpack.c.h.b16 %v1804
        %v1876 = vunpack.c.l.b16 %v1805
        %v1877 = vunpack.c.h.b16 %v1805
        %v1878 = vunpack.c.l.b16 %v1806
        %v1879 = vunpack.c.h.b16 %v1806
        %v1880 = vunpack.c.l.b16 %v1807
        %v1881 = vunpack.c.h.b16 %v1807
        %v1882 = vunpack.c.l.b16 %v1808
        %v1883 = vunpack.c.h.b16 %v1808
        %v1884 = vunpack.c.l.b16 %v1809
        %v1885 = vunpack.c.h.b16 %v1809
        %v1886 = vunpack.c.l.b16 %v1810
        %v1887 = vunpack.c.h.b16 %v1810
        %v1888 = vunpack.c.l.b16 %v1811
        %v1889 = vunpack.c.h.b16 %v1811
        %v1890 = vunpack.c.l.b16 %v1812
        %v1891 = vunpack.c.h.b16 %v1812
        %v1892 = vunpack.c.l.b16 %v1813
        %v1893 = vunpack.c.h.b16 %v1813
        %v1894 = vunpack.c.l.b16 %v1814
        %v1895 = vunpack.c.h.b16 %v1814
        %v1896 = vunpack.c.l.b16 %v1815
        %v1897 = vunpack.c.h.b16 %v1815
        %v1898 = vunpack.c.l.b16 %v1816
        %v1899 = vunpack.c.h.b16 %v1816
        %v1900 = vunpack.c.l.b16 %v1817
        %v1901 = vunpack.c.h.b16 %v1817
        %v1902 = vunpack.c.l.b16 %v1818
        %v1903 = vunpack.c.h.b16 %v1818
        %v1904 = vunpack.c.l.b16 %v1819
        %v1905 = vunpack.c.h.b16 %v1819
        %v1906 = vunpack.c.l.b16 %v1820
        %v1907 = vunpack.c.h.b16 %v1820
        %v1908 = vunpack.c.l.b16 %v1821
        %v1909 = vunpack.c.h.b16 %v1821
        %v1910 = vunpack.c.l.b16 %v1822
        %v1911 = vunpack.c.h.b16 %v1822
        %v1912 = vunpack.c.l.b16 %v1823
        %v1913 = vunpack.c.h.b16 %v1823
        %v1914 = vunpack.c.l.b16 %v1824
        %v1915 = vunpack.c.h.b16 %v1824
        %v1916 = vunpack.c.l.b16 %v1825
        %v1917 = vunpack.c.h.b16 %v1825
        %v1918 = vunpack.c.l.b16 %v1826
        %v1919 = vunpack.c.h.b16 %v1826
        %v1920 = vunpack.c.l.b16 %v1827
        %v1921 = vunpack.c.h.b16 %v1827
        %v1922 = vunpack.c.l.b16 %v1828
        %v1923 = vunpack.c.h.b16 %v1828
        %v1924 = vunpack.c.l.b16 %v1829
        %v1925 = vunpack.c.h.b16 %v1829
        %v1926 = vpack.c.b16 %v1864, %v1862
        %v1927 = vpack.c.b16 %v1865, %v1863
        %v1928 = vpack.c.b16 %v1868, %v1866
        %v1929 = vpack.c.b16 %v1869, %v1867
        %v1930 = vpack.c.b16 %v1872, %v1870
        %v1931 = vpack.c.b16 %v1873, %v1871
        %v1932 = vpack.c.b16 %v1876, %v1874
        %v1933 = vpack.c.b16 %v1877, %v1875
        %v1934 = vpack.c.b16 %v1880, %v1878
        %v1935 = vpack.c.b16 %v1881, %v1879
        %v1936 = vpack.c.b16 %v1884, %v1882
        %v1937 = vpack.c.b16 %v1885, %v1883
        %v1938 = vpack.c.b16 %v1888, %v1886
        %v1939 = vpack.c.b16 %v1889, %v1887
        %v1940 = vpack.c.b16 %v1892, %v1890
        %v1941 = vpack.c.b16 %v1893, %v1891
        %v1942 = vpack.c.b16 %v1896, %v1894
        %v1943 = vpack.c.b16 %v1897, %v1895
        %v1944 = vpack.c.b16 %v1900, %v1898
        %v1945 = vpack.c.b16 %v1901, %v1899
        %v1946 = vpack.c.b16 %v1904, %v1902
        %v1947 = vpack.c.b16 %v1905, %v1903
        %v1948 = vpack.c.b16 %v1908, %v1906
        %v1949 = vpack.c.b16 %v1909, %v1907
        %v1950 = vpack.c.b16 %v1912, %v1910
        %v1951 = vpack.c.b16 %v1913, %v1911
        %v1952 = vpack.c.b16 %v1916, %v1914
        %v1953 = vpack.c.b16 %v1917, %v1915
        %v1954 = vpack.c.b16 %v1920, %v1918
        %v1955 = vpack.c.b16 %v1921, %v1919
        %v1956 = vpack.c.b16 %v1924, %v1922
        %v1957 = vpack.c.b16 %v1925, %v1923
        %v1991 = vperm.slane %v1797, 0
        %v1992 = vperm.slane %v1797, 1
        %1995 = vmatpush.bf16.msra.mxu0 %v1940
        %1996 = vmatpush.bf16.msra.mxu0 %v1938
        %1997 = vmatpush.bf16.msra.mxu0 %v1936
        %1998 = vmatpush.bf16.msra.mxu0 %v1934
        %1999 = vmatpush.bf16.msra.mxu0 %v1932
        %2000 = vmatpush.bf16.msra.mxu0 %v1930
        %2001 = vmatpush.bf16.msra.mxu0 %v1928
        %2002 = vmatpush.bf16.msra.mxu0 %v1926
        %2003 = vmatmul.bf16.gmra.mxu0 %v1795
        %v2004 = vpop.f32.mrf.mxu0
        %v2005 = vadd.f32 %v1991, %v2004
        %v2006 = vpop.f32.mrf.mxu0
        %2007 = vdwg.mxu0
        %2008 = vmatpush.bf16.msra.mxu0 %v1956
        %2009 = vmatpush.bf16.msra.mxu0 %v1954
        %2010 = vmatpush.bf16.msra.mxu0 %v1952
        %2011 = vmatpush.bf16.msra.mxu0 %v1950
        %2012 = vmatpush.bf16.msra.mxu0 %v1948
        %2013 = vmatpush.bf16.msra.mxu0 %v1946
        %2014 = vmatpush.bf16.msra.mxu0 %v1944
        %2015 = vmatpush.bf16.msra.mxu0 %v1942
        %2016 = vmatmul.bf16.gmra.mxu0 %v1796
        %v2017 = vpop.f32.mrf.mxu0
        %v2018 = vadd.f32 %v2005, %v2017
        %v2019 = vpop.f32.mrf.mxu0
        %2020 = vdwg.mxu0
        %2021 = vmatpush.bf16.msra.mxu0 %v1941
        %2022 = vmatpush.bf16.msra.mxu0 %v1939
        %2023 = vmatpush.bf16.msra.mxu0 %v1937
        %2024 = vmatpush.bf16.msra.mxu0 %v1935
        %2025 = vmatpush.bf16.msra.mxu0 %v1933
        %2026 = vmatpush.bf16.msra.mxu0 %v1931
        %2027 = vmatpush.bf16.msra.mxu0 %v1929
        %2028 = vmatpush.bf16.msra.mxu0 %v1927
        %2029 = vmatmul.bf16.gmra.mxu0 %v1795
        %v2030 = vpop.f32.mrf.mxu0
        %v2031 = vadd.f32 %v1992, %v2030
        %v2032 = vpop.f32.mrf.mxu0
        %2033 = vdwg.mxu0
        %2034 = vmatpush.bf16.msra.mxu0 %v1957
        %2035 = vmatpush.bf16.msra.mxu0 %v1955
        %2036 = vmatpush.bf16.msra.mxu0 %v1953
        %2037 = vmatpush.bf16.msra.mxu0 %v1951
        %2038 = vmatpush.bf16.msra.mxu0 %v1949
        %2039 = vmatpush.bf16.msra.mxu0 %v1947
        %2040 = vmatpush.bf16.msra.mxu0 %v1945
        %2041 = vmatpush.bf16.msra.mxu0 %v1943
        %2042 = vmatmul.bf16.gmra.mxu0 %v1796
        %v2043 = vpop.f32.mrf.mxu0
        %v2044 = vadd.f32 %v2031, %v2043
        %v2045 = vpop.f32.mrf.mxu0
        %2046 = vdwg.mxu0
        %v2047 = vmax.f32 %v2018, 0.0
        %v2048 = vmax.f32 %v2044, 0.0
        %v2049 = vpack.c.bf16 %v2047, %v2047
        %v2050 = vpack.c.bf16 %v2048, %v2048
        %v2051 = vld [vmem:[%s10] sm:$0x1]
        %v2052 = vld [vmem:[%s9] sm:$0xf]
        %v2053 = vld [vmem:[%s9 + $0x4] sm:$0xf]
        %v2054 = vld [vmem:[%s9 + $0x8] sm:$0xf]
        %v2055 = vld [vmem:[%s9 + $0xc] sm:$0xf]
        %v2056 = vld [vmem:[%s9 + $0x10] sm:$0xf]
        %v2057 = vld [vmem:[%s9 + $0x14] sm:$0xf]
        %v2058 = vld [vmem:[%s9 + $0x18] sm:$0xf]
        %v2059 = vld [vmem:[%s9 + $0x1c] sm:$0xf]
        %v2060 = vld [vmem:[%s9 + $0x20] sm:$0xf]
        %v2061 = vld [vmem:[%s9 + $0x24] sm:$0xf]
        %v2062 = vld [vmem:[%s9 + $0x28] sm:$0xf]
        %v2063 = vld [vmem:[%s9 + $0x2c] sm:$0xf]
        %v2064 = vld [vmem:[%s9 + $0x30] sm:$0xf]
        %v2065 = vld [vmem:[%s9 + $0x34] sm:$0xf]
        %v2066 = vld [vmem:[%s9 + $0x38] sm:$0xf]
        %v2067 = vld [vmem:[%s9 + $0x3c] sm:$0xf]
        %v2068 = vld [vmem:[%s9 + $0x40] sm:$0xf]
        %v2069 = vld [vmem:[%s9 + $0x44] sm:$0xf]
        %v2070 = vld [vmem:[%s9 + $0x48] sm:$0xf]
        %v2071 = vld [vmem:[%s9 + $0x4c] sm:$0xf]
        %v2072 = vld [vmem:[%s9 + $0x50] sm:$0xf]
        %v2073 = vld [vmem:[%s9 + $0x54] sm:$0xf]
        %v2074 = vld [vmem:[%s9 + $0x58] sm:$0xf]
        %v2075 = vld [vmem:[%s9 + $0x5c] sm:$0xf]
        %v2076 = vld [vmem:[%s9 + $0x60] sm:$0xf]
        %v2077 = vld [vmem:[%s9 + $0x64] sm:$0xf]
        %v2078 = vld [vmem:[%s9 + $0x68] sm:$0xf]
        %v2079 = vld [vmem:[%s9 + $0x6c] sm:$0xf]
        %v2080 = vld [vmem:[%s9 + $0x70] sm:$0xf]
        %v2081 = vld [vmem:[%s9 + $0x74] sm:$0xf]
        %v2082 = vld [vmem:[%s9 + $0x78] sm:$0xf]
        %v2083 = vld [vmem:[%s9 + $0x7c] sm:$0xf]
        %v2116 = vunpack.c.l.b16 %v2052
        %v2117 = vunpack.c.l.b16 %v2053
        %v2118 = vunpack.c.l.b16 %v2054
        %v2119 = vunpack.c.l.b16 %v2055
        %v2120 = vunpack.c.l.b16 %v2056
        %v2121 = vunpack.c.l.b16 %v2057
        %v2122 = vunpack.c.l.b16 %v2058
        %v2123 = vunpack.c.l.b16 %v2059
        %v2124 = vunpack.c.l.b16 %v2060
        %v2125 = vunpack.c.l.b16 %v2061
        %v2126 = vunpack.c.l.b16 %v2062
        %v2127 = vunpack.c.l.b16 %v2063
        %v2128 = vunpack.c.l.b16 %v2064
        %v2129 = vunpack.c.l.b16 %v2065
        %v2130 = vunpack.c.l.b16 %v2066
        %v2131 = vunpack.c.l.b16 %v2067
        %v2132 = vunpack.c.l.b16 %v2068
        %v2133 = vunpack.c.l.b16 %v2069
        %v2134 = vunpack.c.l.b16 %v2070
        %v2135 = vunpack.c.l.b16 %v2071
        %v2136 = vunpack.c.l.b16 %v2072
        %v2137 = vunpack.c.l.b16 %v2073
        %v2138 = vunpack.c.l.b16 %v2074
        %v2139 = vunpack.c.l.b16 %v2075
        %v2140 = vunpack.c.l.b16 %v2076
        %v2141 = vunpack.c.l.b16 %v2077
        %v2142 = vunpack.c.l.b16 %v2078
        %v2143 = vunpack.c.l.b16 %v2079
        %v2144 = vunpack.c.l.b16 %v2080
        %v2145 = vunpack.c.l.b16 %v2081
        %v2146 = vunpack.c.l.b16 %v2082
        %v2147 = vunpack.c.l.b16 %v2083
        %v2148 = vpack.c.b16 %v2117, %v2116
        %v2149 = vpack.c.b16 %v2119, %v2118
        %v2150 = vpack.c.b16 %v2121, %v2120
        %v2151 = vpack.c.b16 %v2123, %v2122
        %v2152 = vpack.c.b16 %v2125, %v2124
        %v2153 = vpack.c.b16 %v2127, %v2126
        %v2154 = vpack.c.b16 %v2129, %v2128
        %v2155 = vpack.c.b16 %v2131, %v2130
        %v2156 = vpack.c.b16 %v2133, %v2132
        %v2157 = vpack.c.b16 %v2135, %v2134
        %v2158 = vpack.c.b16 %v2137, %v2136
        %v2159 = vpack.c.b16 %v2139, %v2138
        %v2160 = vpack.c.b16 %v2141, %v2140
        %v2161 = vpack.c.b16 %v2143, %v2142
        %v2162 = vpack.c.b16 %v2145, %v2144
        %v2163 = vpack.c.b16 %v2147, %v2146
        %2180 = vmatpush.bf16.msra.mxu0 %v2155
        %2181 = vmatpush.bf16.msra.mxu0 %v2154
        %2182 = vmatpush.bf16.msra.mxu0 %v2153
        %2183 = vmatpush.bf16.msra.mxu0 %v2152
        %2184 = vmatpush.bf16.msra.mxu0 %v2151
        %2185 = vmatpush.bf16.msra.mxu0 %v2150
        %2186 = vmatpush.bf16.msra.mxu0 %v2149
        %2187 = vmatpush.bf16.msra.mxu0 %v2148
        %2188 = vmatmul.bf16.gmra.mxu0 %v2049
        %v2189 = vpop.f32.mrf.mxu0
        %v2190 = vadd.f32 %v2051, %v2189
        %v2191 = vpop.f32.mrf.mxu0
        %2192 = vdwg.mxu0
        %2193 = vmatpush.bf16.msra.mxu0 %v2163
        %2194 = vmatpush.bf16.msra.mxu0 %v2162
        %2195 = vmatpush.bf16.msra.mxu0 %v2161
        %2196 = vmatpush.bf16.msra.mxu0 %v2160
        %2197 = vmatpush.bf16.msra.mxu0 %v2159
        %2198 = vmatpush.bf16.msra.mxu0 %v2158
        %2199 = vmatpush.bf16.msra.mxu0 %v2157
        %2200 = vmatpush.bf16.msra.mxu0 %v2156
        %2201 = vmatmul.bf16.gmra.mxu0 %v2050
        %v2202 = vpop.f32.mrf.mxu0
        %v2203 = vadd.f32 %v2190, %v2202
        %v2204 = vpop.f32.mrf.mxu0
        %2205 = vdwg.mxu0
        %v2206 = vmax.f32 %v2203, 0.0
        %v2207 = vpack.c.bf16 %v2206, %v2206
        %v2208 = vld [vmem:[%s12] sm:$0x1]
        %v2209 = vld [vmem:[%s11] sm:$0xf]
        %v2210 = vld [vmem:[%s11 + $0x4] sm:$0xf]
        %v2211 = vld [vmem:[%s11 + $0x8] sm:$0xf]
        %v2212 = vld [vmem:[%s11 + $0xc] sm:$0xf]
        %v2213 = vld [vmem:[%s11 + $0x10] sm:$0xf]
        %v2214 = vld [vmem:[%s11 + $0x14] sm:$0xf]
        %v2215 = vld [vmem:[%s11 + $0x18] sm:$0xf]
        %v2216 = vld [vmem:[%s11 + $0x1c] sm:$0xf]
        %v2217 = vld [vmem:[%s11 + $0x20] sm:$0xf]
        %v2218 = vld [vmem:[%s11 + $0x24] sm:$0xf]
        %v2219 = vld [vmem:[%s11 + $0x28] sm:$0xf]
        %v2220 = vld [vmem:[%s11 + $0x2c] sm:$0xf]
        %v2221 = vld [vmem:[%s11 + $0x30] sm:$0xf]
        %v2222 = vld [vmem:[%s11 + $0x34] sm:$0xf]
        %v2223 = vld [vmem:[%s11 + $0x38] sm:$0xf]
        %v2224 = vld [vmem:[%s11 + $0x3c] sm:$0xf]
        %v2241 = vunpack.c.l.b16 %v2209
        %v2242 = vunpack.c.l.b16 %v2210
        %v2243 = vunpack.c.l.b16 %v2211
        %v2244 = vunpack.c.l.b16 %v2212
        %v2245 = vunpack.c.l.b16 %v2213
        %v2246 = vunpack.c.l.b16 %v2214
        %v2247 = vunpack.c.l.b16 %v2215
        %v2248 = vunpack.c.l.b16 %v2216
        %v2249 = vunpack.c.l.b16 %v2217
        %v2250 = vunpack.c.l.b16 %v2218
        %v2251 = vunpack.c.l.b16 %v2219
        %v2252 = vunpack.c.l.b16 %v2220
        %v2253 = vunpack.c.l.b16 %v2221
        %v2254 = vunpack.c.l.b16 %v2222
        %v2255 = vunpack.c.l.b16 %v2223
        %v2256 = vunpack.c.l.b16 %v2224
        %v2257 = vpack.c.b16 %v2242, %v2241
        %v2258 = vpack.c.b16 %v2244, %v2243
        %v2259 = vpack.c.b16 %v2246, %v2245
        %v2260 = vpack.c.b16 %v2248, %v2247
        %v2261 = vpack.c.b16 %v2250, %v2249
        %v2262 = vpack.c.b16 %v2252, %v2251
        %v2263 = vpack.c.b16 %v2254, %v2253
        %v2264 = vpack.c.b16 %v2256, %v2255
        %2273 = vmatpush.bf16.msra.mxu0 %v2264
        %2274 = vmatpush.bf16.msra.mxu0 %v2263
        %2275 = vmatpush.bf16.msra.mxu0 %v2262
        %2276 = vmatpush.bf16.msra.mxu0 %v2261
        %2277 = vmatpush.bf16.msra.mxu0 %v2260
        %2278 = vmatpush.bf16.msra.mxu0 %v2259
        %2279 = vmatpush.bf16.msra.mxu0 %v2258
        %2280 = vmatpush.bf16.msra.mxu0 %v2257
        %2281 = vmatmul.bf16.gmra.mxu0 %v2207
        %v2282 = vpop.f32.mrf.mxu0
        %v2283 = vadd.f32 %v2208, %v2282
        %v2284 = vpop.f32.mrf.mxu0
        %2285 = vdwg.mxu0
        %vm2286 = vcmask 24576
        %2287 = vst.msk [vmem:[%s860] sm:$0x1] %vm2286, %v2283
        %v2288 = vld [vmem:[%s14] sm:$0x1]
        %v2289 = vpack.c.bf16 %v2283, %v2283
        %v2290 = vld [vmem:[%s13] sm:$0x3]
        %v2292 = vsel %vm982, %v2289, 0
        %v2295 = vsel %vm1031, %v2290, 0
        %2297 = vmatpush.bf16.msra.mxu0 0
        %2298 = vmatpush.bf16.msra.mxu0 0
        %2299 = vmatpush.bf16.msra.mxu0 0
        %2300 = vmatpush.bf16.msra.mxu0 0
        %2301 = vmatpush.bf16.msra.mxu0 0
        %2302 = vmatpush.bf16.msra.mxu0 0
        %2303 = vmatpush.bf16.msra.mxu0 0
        %2304 = vmatpush.bf16.msra.mxu0 %v2295
        %2305 = vmatmul.bf16.gmra.mxu0 %v2292
        %v2306 = vpop.f32.mrf.mxu0
        %v2307 = vadd.f32 0.0, %v2306
        %v2308 = vpop.f32.mrf.mxu0
        %2309 = vdwg.mxu0
        %v2310 = vsub.f32 %v2288, %v2307
        %v2312 = vperm.slane %v2310, 0
        %2314 = vmatpush.bf16.msra.mxu0 0
        %2315 = vmatpush.bf16.msra.mxu0 0
        %2316 = vmatpush.bf16.msra.mxu0 0
        %2317 = vmatpush.bf16.msra.mxu0 0
        %2318 = vmatpush.bf16.msra.mxu0 0
        %2319 = vmatpush.bf16.msra.mxu0 0
        %2320 = vmatpush.bf16.msra.mxu0 0
        %2321 = vmatpush.bf16.msra.mxu0 %v2295
        %2322 = vmatmul.bf16.gmra.mxu0 %v984
        %v2323 = vpop.f32.mrf.mxu0
        %v2324 = vadd.f32 %v2312, %v2323
        %v2325 = vpop.f32.mrf.mxu0
        %v2326 = vadd.f32 %v2312, %v2325
        %2327 = vmatmul.bf16.gmra.mxu0 %v987
        %v2328 = vpop.f32.mrf.mxu0
        %v2329 = vadd.f32 %v2312, %v2328
        %v2330 = vpop.f32.mrf.mxu0
        %v2331 = vadd.f32 %v2312, %v2330
        %2332 = vmatmul.bf16.gmra.mxu0 %v990
        %v2333 = vpop.f32.mrf.mxu0
        %v2334 = vadd.f32 %v2312, %v2333
        %v2335 = vpop.f32.mrf.mxu0
        %v2336 = vadd.f32 %v2312, %v2335
        %2337 = vmatmul.bf16.gmra.mxu0 %v993
        %v2338 = vpop.f32.mrf.mxu0
        %v2339 = vadd.f32 %v2312, %v2338
        %v2340 = vpop.f32.mrf.mxu0
        %v2341 = vadd.f32 %v2312, %v2340
        %2342 = vmatmul.bf16.gmra.mxu0 %v996
        %v2343 = vpop.f32.mrf.mxu0
        %v2344 = vadd.f32 %v2312, %v2343
        %v2345 = vpop.f32.mrf.mxu0
        %v2346 = vadd.f32 %v2312, %v2345
        %2347 = vmatmul.bf16.gmra.mxu0 %v999
        %v2348 = vpop.f32.mrf.mxu0
        %v2349 = vadd.f32 %v2312, %v2348
        %v2350 = vpop.f32.mrf.mxu0
        %v2351 = vadd.f32 %v2312, %v2350
        %2352 = vmatmul.bf16.gmra.mxu0 %v1002
        %v2353 = vpop.f32.mrf.mxu0
        %v2354 = vadd.f32 %v2312, %v2353
        %v2355 = vpop.f32.mrf.mxu0
        %v2356 = vadd.f32 %v2312, %v2355
        %2357 = vmatmul.bf16.gmra.mxu0 %v1005
        %v2358 = vpop.f32.mrf.mxu0
        %v2359 = vadd.f32 %v2312, %v2358
        %v2360 = vpop.f32.mrf.mxu0
        %v2361 = vadd.f32 %v2312, %v2360
        %2362 = vmatmul.bf16.gmra.mxu0 %v1008
        %v2363 = vpop.f32.mrf.mxu0
        %v2364 = vadd.f32 %v2312, %v2363
        %v2365 = vpop.f32.mrf.mxu0
        %v2366 = vadd.f32 %v2312, %v2365
        %2367 = vmatmul.bf16.gmra.mxu0 %v1011
        %v2368 = vpop.f32.mrf.mxu0
        %v2369 = vadd.f32 %v2312, %v2368
        %v2370 = vpop.f32.mrf.mxu0
        %v2371 = vadd.f32 %v2312, %v2370
        %2372 = vmatmul.bf16.gmra.mxu0 %v1014
        %v2373 = vpop.f32.mrf.mxu0
        %v2374 = vadd.f32 %v2312, %v2373
        %v2375 = vpop.f32.mrf.mxu0
        %v2376 = vadd.f32 %v2312, %v2375
        %2377 = vmatmul.bf16.gmra.mxu0 %v1017
        %v2378 = vpop.f32.mrf.mxu0
        %v2379 = vadd.f32 %v2312, %v2378
        %v2380 = vpop.f32.mrf.mxu0
        %v2381 = vadd.f32 %v2312, %v2380
        %2382 = vmatmul.bf16.gmra.mxu0 %v1020
        %v2383 = vpop.f32.mrf.mxu0
        %v2384 = vadd.f32 %v2312, %v2383
        %v2385 = vpop.f32.mrf.mxu0
        %v2386 = vadd.f32 %v2312, %v2385
        %2387 = vmatmul.bf16.gmra.mxu0 %v1023
        %v2388 = vpop.f32.mrf.mxu0
        %v2389 = vadd.f32 %v2312, %v2388
        %v2390 = vpop.f32.mrf.mxu0
        %v2391 = vadd.f32 %v2312, %v2390
        %2392 = vmatmul.bf16.gmra.mxu0 %v1026
        %v2393 = vpop.f32.mrf.mxu0
        %v2394 = vadd.f32 %v2312, %v2393
        %v2395 = vpop.f32.mrf.mxu0
        %v2396 = vadd.f32 %v2312, %v2395
        %2397 = vmatmul.bf16.gmra.mxu0 %v1029
        %v2398 = vpop.f32.mrf.mxu0
        %v2399 = vadd.f32 %v2312, %v2398
        %v2400 = vpop.f32.mrf.mxu0
        %v2401 = vadd.f32 %v2312, %v2400
        %2402 = vdwg.mxu0
        %v2403 = vmax.f32 %v2324, 0.0
        %v2404 = vmax.f32 %v2326, 0.0
        %v2405 = vmax.f32 %v2329, 0.0
        %v2406 = vmax.f32 %v2331, 0.0
        %v2407 = vmax.f32 %v2334, 0.0
        %v2408 = vmax.f32 %v2336, 0.0
        %v2409 = vmax.f32 %v2339, 0.0
        %v2410 = vmax.f32 %v2341, 0.0
        %v2411 = vmax.f32 %v2344, 0.0
        %v2412 = vmax.f32 %v2346, 0.0
        %v2413 = vmax.f32 %v2349, 0.0
        %v2414 = vmax.f32 %v2351, 0.0
        %v2415 = vmax.f32 %v2354, 0.0
        %v2416 = vmax.f32 %v2356, 0.0
        %v2417 = vmax.f32 %v2359, 0.0
        %v2418 = vmax.f32 %v2361, 0.0
        %v2419 = vmax.f32 %v2364, 0.0
        %v2420 = vmax.f32 %v2366, 0.0
        %v2421 = vmax.f32 %v2369, 0.0
        %v2422 = vmax.f32 %v2371, 0.0
        %v2423 = vmax.f32 %v2374, 0.0
        %v2424 = vmax.f32 %v2376, 0.0
        %v2425 = vmax.f32 %v2379, 0.0
        %v2426 = vmax.f32 %v2381, 0.0
        %v2427 = vmax.f32 %v2384, 0.0
        %v2428 = vmax.f32 %v2386, 0.0
        %v2429 = vmax.f32 %v2389, 0.0
        %v2430 = vmax.f32 %v2391, 0.0
        %v2431 = vmax.f32 %v2394, 0.0
        %v2432 = vmax.f32 %v2396, 0.0
        %v2433 = vmax.f32 %v2399, 0.0
        %v2434 = vmax.f32 %v2401, 0.0
        %v2435 = vpack.c.bf16 %v2404, %v2403
        %v2436 = vpack.c.bf16 %v2406, %v2405
        %v2437 = vpack.c.bf16 %v2408, %v2407
        %v2438 = vpack.c.bf16 %v2410, %v2409
        %v2439 = vpack.c.bf16 %v2412, %v2411
        %v2440 = vpack.c.bf16 %v2414, %v2413
        %v2441 = vpack.c.bf16 %v2416, %v2415
        %v2442 = vpack.c.bf16 %v2418, %v2417
        %v2443 = vpack.c.bf16 %v2420, %v2419
        %v2444 = vpack.c.bf16 %v2422, %v2421
        %v2445 = vpack.c.bf16 %v2424, %v2423
        %v2446 = vpack.c.bf16 %v2426, %v2425
        %v2447 = vpack.c.bf16 %v2428, %v2427
        %v2448 = vpack.c.bf16 %v2430, %v2429
        %v2449 = vpack.c.bf16 %v2432, %v2431
        %v2450 = vpack.c.bf16 %v2434, %v2433
        %v2451 = vld [vmem:[%s16] sm:$0x3]
        %v2452 = vld [vmem:[#allocation2] sm:$0xff]
        %v2453 = vld [vmem:[#allocation2 + $0x8] sm:$0xff]
        %v2454 = vld [vmem:[#allocation2 + $0x10] sm:$0xff]
        %v2455 = vld [vmem:[#allocation2 + $0x18] sm:$0xff]
        %v2456 = vld [vmem:[#allocation2 + $0x20] sm:$0xff]
        %v2457 = vld [vmem:[#allocation2 + $0x28] sm:$0xff]
        %v2458 = vld [vmem:[#allocation2 + $0x30] sm:$0xff]
        %v2459 = vld [vmem:[#allocation2 + $0x38] sm:$0xff]
        %v2460 = vld [vmem:[#allocation2 + $0x40] sm:$0xff]
        %v2461 = vld [vmem:[#allocation2 + $0x48] sm:$0xff]
        %v2462 = vld [vmem:[#allocation2 + $0x50] sm:$0xff]
        %v2463 = vld [vmem:[#allocation2 + $0x58] sm:$0xff]
        %v2464 = vld [vmem:[#allocation2 + $0x60] sm:$0xff]
        %v2465 = vld [vmem:[#allocation2 + $0x68] sm:$0xff]
        %v2466 = vld [vmem:[#allocation2 + $0x70] sm:$0xff]
        %v2467 = vld [vmem:[#allocation2 + $0x78] sm:$0xff]
        %v2469 = vperm.slane %v2451, 0
        %v2470 = vperm.slane %v2451, 1
        %v2489 = vunpack.c.l.b16 %v2452
        %v2490 = vunpack.c.h.b16 %v2452
        %v2491 = vunpack.c.l.b16 %v2453
        %v2492 = vunpack.c.h.b16 %v2453
        %v2493 = vunpack.c.l.b16 %v2454
        %v2494 = vunpack.c.h.b16 %v2454
        %v2495 = vunpack.c.l.b16 %v2455
        %v2496 = vunpack.c.h.b16 %v2455
        %v2497 = vunpack.c.l.b16 %v2456
        %v2498 = vunpack.c.h.b16 %v2456
        %v2499 = vunpack.c.l.b16 %v2457
        %v2500 = vunpack.c.h.b16 %v2457
        %v2501 = vunpack.c.l.b16 %v2458
        %v2502 = vunpack.c.h.b16 %v2458
        %v2503 = vunpack.c.l.b16 %v2459
        %v2504 = vunpack.c.h.b16 %v2459
        %v2505 = vunpack.c.l.b16 %v2460
        %v2506 = vunpack.c.h.b16 %v2460
        %v2507 = vunpack.c.l.b16 %v2461
        %v2508 = vunpack.c.h.b16 %v2461
        %v2509 = vunpack.c.l.b16 %v2462
        %v2510 = vunpack.c.h.b16 %v2462
        %v2511 = vunpack.c.l.b16 %v2463
        %v2512 = vunpack.c.h.b16 %v2463
        %v2513 = vunpack.c.l.b16 %v2464
        %v2514 = vunpack.c.h.b16 %v2464
        %v2515 = vunpack.c.l.b16 %v2465
        %v2516 = vunpack.c.h.b16 %v2465
        %v2517 = vunpack.c.l.b16 %v2466
        %v2518 = vunpack.c.h.b16 %v2466
        %v2519 = vunpack.c.l.b16 %v2467
        %v2520 = vunpack.c.h.b16 %v2467
        %v2521 = vpack.c.b16 %v2491, %v2489
        %v2522 = vpack.c.b16 %v2492, %v2490
        %v2523 = vpack.c.b16 %v2495, %v2493
        %v2524 = vpack.c.b16 %v2496, %v2494
        %v2525 = vpack.c.b16 %v2499, %v2497
        %v2526 = vpack.c.b16 %v2500, %v2498
        %v2527 = vpack.c.b16 %v2503, %v2501
        %v2528 = vpack.c.b16 %v2504, %v2502
        %v2529 = vpack.c.b16 %v2507, %v2505
        %v2530 = vpack.c.b16 %v2508, %v2506
        %v2531 = vpack.c.b16 %v2511, %v2509
        %v2532 = vpack.c.b16 %v2512, %v2510
        %v2533 = vpack.c.b16 %v2515, %v2513
        %v2534 = vpack.c.b16 %v2516, %v2514
        %v2535 = vpack.c.b16 %v2519, %v2517
        %v2536 = vpack.c.b16 %v2520, %v2518
        %2553 = vmatpush.bf16.msra.mxu0 %v2535
        %2554 = vmatpush.bf16.msra.mxu0 %v2533
        %2555 = vmatpush.bf16.msra.mxu0 %v2531
        %2556 = vmatpush.bf16.msra.mxu0 %v2529
        %2557 = vmatpush.bf16.msra.mxu0 %v2527
        %2558 = vmatpush.bf16.msra.mxu0 %v2525
        %2559 = vmatpush.bf16.msra.mxu0 %v2523
        %2560 = vmatpush.bf16.msra.mxu0 %v2521
        %2561 = vmatmul.bf16.gmra.mxu0 %v2435
        %v2562 = vpop.f32.mrf.mxu0
        %v2563 = vadd.f32 %v2469, %v2562
        %v2564 = vpop.f32.mrf.mxu0
        %v2565 = vadd.f32 %v2469, %v2564
        %2566 = vmatmul.bf16.gmra.mxu0 %v2436
        %v2567 = vpop.f32.mrf.mxu0
        %v2568 = vadd.f32 %v2469, %v2567
        %v2569 = vpop.f32.mrf.mxu0
        %v2570 = vadd.f32 %v2469, %v2569
        %2571 = vmatmul.bf16.gmra.mxu0 %v2437
        %v2572 = vpop.f32.mrf.mxu0
        %v2573 = vadd.f32 %v2469, %v2572
        %v2574 = vpop.f32.mrf.mxu0
        %v2575 = vadd.f32 %v2469, %v2574
        %2576 = vmatmul.bf16.gmra.mxu0 %v2438
        %v2577 = vpop.f32.mrf.mxu0
        %v2578 = vadd.f32 %v2469, %v2577
        %v2579 = vpop.f32.mrf.mxu0
        %v2580 = vadd.f32 %v2469, %v2579
        %2581 = vmatmul.bf16.gmra.mxu0 %v2439
        %v2582 = vpop.f32.mrf.mxu0
        %v2583 = vadd.f32 %v2469, %v2582
        %v2584 = vpop.f32.mrf.mxu0
        %v2585 = vadd.f32 %v2469, %v2584
        %2586 = vmatmul.bf16.gmra.mxu0 %v2440
        %v2587 = vpop.f32.mrf.mxu0
        %v2588 = vadd.f32 %v2469, %v2587
        %v2589 = vpop.f32.mrf.mxu0
        %v2590 = vadd.f32 %v2469, %v2589
        %2591 = vmatmul.bf16.gmra.mxu0 %v2441
        %v2592 = vpop.f32.mrf.mxu0
        %v2593 = vadd.f32 %v2469, %v2592
        %v2594 = vpop.f32.mrf.mxu0
        %v2595 = vadd.f32 %v2469, %v2594
        %2596 = vmatmul.bf16.gmra.mxu0 %v2442
        %v2597 = vpop.f32.mrf.mxu0
        %v2598 = vadd.f32 %v2469, %v2597
        %v2599 = vpop.f32.mrf.mxu0
        %v2600 = vadd.f32 %v2469, %v2599
        %2601 = vmatmul.bf16.gmra.mxu0 %v2443
        %v2602 = vpop.f32.mrf.mxu0
        %v2603 = vadd.f32 %v2469, %v2602
        %v2604 = vpop.f32.mrf.mxu0
        %v2605 = vadd.f32 %v2469, %v2604
        %2606 = vmatmul.bf16.gmra.mxu0 %v2444
        %v2607 = vpop.f32.mrf.mxu0
        %v2608 = vadd.f32 %v2469, %v2607
        %v2609 = vpop.f32.mrf.mxu0
        %v2610 = vadd.f32 %v2469, %v2609
        %2611 = vmatmul.bf16.gmra.mxu0 %v2445
        %v2612 = vpop.f32.mrf.mxu0
        %v2613 = vadd.f32 %v2469, %v2612
        %v2614 = vpop.f32.mrf.mxu0
        %v2615 = vadd.f32 %v2469, %v2614
        %2616 = vmatmul.bf16.gmra.mxu0 %v2446
        %v2617 = vpop.f32.mrf.mxu0
        %v2618 = vadd.f32 %v2469, %v2617
        %v2619 = vpop.f32.mrf.mxu0
        %v2620 = vadd.f32 %v2469, %v2619
        %2621 = vmatmul.bf16.gmra.mxu0 %v2447
        %v2622 = vpop.f32.mrf.mxu0
        %v2623 = vadd.f32 %v2469, %v2622
        %v2624 = vpop.f32.mrf.mxu0
        %v2625 = vadd.f32 %v2469, %v2624
        %2626 = vmatmul.bf16.gmra.mxu0 %v2448
        %v2627 = vpop.f32.mrf.mxu0
        %v2628 = vadd.f32 %v2469, %v2627
        %v2629 = vpop.f32.mrf.mxu0
        %v2630 = vadd.f32 %v2469, %v2629
        %2631 = vmatmul.bf16.gmra.mxu0 %v2449
        %v2632 = vpop.f32.mrf.mxu0
        %v2633 = vadd.f32 %v2469, %v2632
        %v2634 = vpop.f32.mrf.mxu0
        %v2635 = vadd.f32 %v2469, %v2634
        %2636 = vmatmul.bf16.gmra.mxu0 %v2450
        %v2637 = vpop.f32.mrf.mxu0
        %v2638 = vadd.f32 %v2469, %v2637
        %v2639 = vpop.f32.mrf.mxu0
        %v2640 = vadd.f32 %v2469, %v2639
        %2641 = vdwg.mxu0
        %2642 = vmatpush.bf16.msra.mxu0 %v2536
        %2643 = vmatpush.bf16.msra.mxu0 %v2534
        %2644 = vmatpush.bf16.msra.mxu0 %v2532
        %2645 = vmatpush.bf16.msra.mxu0 %v2530
        %2646 = vmatpush.bf16.msra.mxu0 %v2528
        %2647 = vmatpush.bf16.msra.mxu0 %v2526
        %2648 = vmatpush.bf16.msra.mxu0 %v2524
        %2649 = vmatpush.bf16.msra.mxu0 %v2522
        %2650 = vmatmul.bf16.gmra.mxu0 %v2435
        %v2651 = vpop.f32.mrf.mxu0
        %v2652 = vadd.f32 %v2470, %v2651
        %v2653 = vpop.f32.mrf.mxu0
        %v2654 = vadd.f32 %v2470, %v2653
        %2655 = vmatmul.bf16.gmra.mxu0 %v2436
        %v2656 = vpop.f32.mrf.mxu0
        %v2657 = vadd.f32 %v2470, %v2656
        %v2658 = vpop.f32.mrf.mxu0
        %v2659 = vadd.f32 %v2470, %v2658
        %2660 = vmatmul.bf16.gmra.mxu0 %v2437
        %v2661 = vpop.f32.mrf.mxu0
        %v2662 = vadd.f32 %v2470, %v2661
        %v2663 = vpop.f32.mrf.mxu0
        %v2664 = vadd.f32 %v2470, %v2663
        %2665 = vmatmul.bf16.gmra.mxu0 %v2438
        %v2666 = vpop.f32.mrf.mxu0
        %v2667 = vadd.f32 %v2470, %v2666
        %v2668 = vpop.f32.mrf.mxu0
        %v2669 = vadd.f32 %v2470, %v2668
        %2670 = vmatmul.bf16.gmra.mxu0 %v2439
        %v2671 = vpop.f32.mrf.mxu0
        %v2672 = vadd.f32 %v2470, %v2671
        %v2673 = vpop.f32.mrf.mxu0
        %v2674 = vadd.f32 %v2470, %v2673
        %2675 = vmatmul.bf16.gmra.mxu0 %v2440
        %v2676 = vpop.f32.mrf.mxu0
        %v2677 = vadd.f32 %v2470, %v2676
        %v2678 = vpop.f32.mrf.mxu0
        %v2679 = vadd.f32 %v2470, %v2678
        %2680 = vmatmul.bf16.gmra.mxu0 %v2441
        %v2681 = vpop.f32.mrf.mxu0
        %v2682 = vadd.f32 %v2470, %v2681
        %v2683 = vpop.f32.mrf.mxu0
        %v2684 = vadd.f32 %v2470, %v2683
        %2685 = vmatmul.bf16.gmra.mxu0 %v2442
        %v2686 = vpop.f32.mrf.mxu0
        %v2687 = vadd.f32 %v2470, %v2686
        %v2688 = vpop.f32.mrf.mxu0
        %v2689 = vadd.f32 %v2470, %v2688
        %2690 = vmatmul.bf16.gmra.mxu0 %v2443
        %v2691 = vpop.f32.mrf.mxu0
        %v2692 = vadd.f32 %v2470, %v2691
        %v2693 = vpop.f32.mrf.mxu0
        %v2694 = vadd.f32 %v2470, %v2693
        %2695 = vmatmul.bf16.gmra.mxu0 %v2444
        %v2696 = vpop.f32.mrf.mxu0
        %v2697 = vadd.f32 %v2470, %v2696
        %v2698 = vpop.f32.mrf.mxu0
        %v2699 = vadd.f32 %v2470, %v2698
        %2700 = vmatmul.bf16.gmra.mxu0 %v2445
        %v2701 = vpop.f32.mrf.mxu0
        %v2702 = vadd.f32 %v2470, %v2701
        %v2703 = vpop.f32.mrf.mxu0
        %v2704 = vadd.f32 %v2470, %v2703
        %2705 = vmatmul.bf16.gmra.mxu0 %v2446
        %v2706 = vpop.f32.mrf.mxu0
        %v2707 = vadd.f32 %v2470, %v2706
        %v2708 = vpop.f32.mrf.mxu0
        %v2709 = vadd.f32 %v2470, %v2708
        %2710 = vmatmul.bf16.gmra.mxu0 %v2447
        %v2711 = vpop.f32.mrf.mxu0
        %v2712 = vadd.f32 %v2470, %v2711
        %v2713 = vpop.f32.mrf.mxu0
        %v2714 = vadd.f32 %v2470, %v2713
        %2715 = vmatmul.bf16.gmra.mxu0 %v2448
        %v2716 = vpop.f32.mrf.mxu0
        %v2717 = vadd.f32 %v2470, %v2716
        %v2718 = vpop.f32.mrf.mxu0
        %v2719 = vadd.f32 %v2470, %v2718
        %2720 = vmatmul.bf16.gmra.mxu0 %v2449
        %v2721 = vpop.f32.mrf.mxu0
        %v2722 = vadd.f32 %v2470, %v2721
        %v2723 = vpop.f32.mrf.mxu0
        %v2724 = vadd.f32 %v2470, %v2723
        %2725 = vmatmul.bf16.gmra.mxu0 %v2450
        %v2726 = vpop.f32.mrf.mxu0
        %v2727 = vadd.f32 %v2470, %v2726
        %v2728 = vpop.f32.mrf.mxu0
        %v2729 = vadd.f32 %v2470, %v2728
        %2730 = vdwg.mxu0
        %v2731 = vmax.f32 %v2563, 0.0
        %v2732 = vmax.f32 %v2652, 0.0
        %v2733 = vmax.f32 %v2565, 0.0
        %v2734 = vmax.f32 %v2654, 0.0
        %v2735 = vmax.f32 %v2568, 0.0
        %v2736 = vmax.f32 %v2657, 0.0
        %v2737 = vmax.f32 %v2570, 0.0
        %v2738 = vmax.f32 %v2659, 0.0
        %v2739 = vmax.f32 %v2573, 0.0
        %v2740 = vmax.f32 %v2662, 0.0
        %v2741 = vmax.f32 %v2575, 0.0
        %v2742 = vmax.f32 %v2664, 0.0
        %v2743 = vmax.f32 %v2578, 0.0
        %v2744 = vmax.f32 %v2667, 0.0
        %v2745 = vmax.f32 %v2580, 0.0
        %v2746 = vmax.f32 %v2669, 0.0
        %v2747 = vmax.f32 %v2583, 0.0
        %v2748 = vmax.f32 %v2672, 0.0
        %v2749 = vmax.f32 %v2585, 0.0
        %v2750 = vmax.f32 %v2674, 0.0
        %v2751 = vmax.f32 %v2588, 0.0
        %v2752 = vmax.f32 %v2677, 0.0
        %v2753 = vmax.f32 %v2590, 0.0
        %v2754 = vmax.f32 %v2679, 0.0
        %v2755 = vmax.f32 %v2593, 0.0
        %v2756 = vmax.f32 %v2682, 0.0
        %v2757 = vmax.f32 %v2595, 0.0
        %v2758 = vmax.f32 %v2684, 0.0
        %v2759 = vmax.f32 %v2598, 0.0
        %v2760 = vmax.f32 %v2687, 0.0
        %v2761 = vmax.f32 %v2600, 0.0
        %v2762 = vmax.f32 %v2689, 0.0
        %v2763 = vmax.f32 %v2603, 0.0
        %v2764 = vmax.f32 %v2692, 0.0
        %v2765 = vmax.f32 %v2605, 0.0
        %v2766 = vmax.f32 %v2694, 0.0
        %v2767 = vmax.f32 %v2608, 0.0
        %v2768 = vmax.f32 %v2697, 0.0
        %v2769 = vmax.f32 %v2610, 0.0
        %v2770 = vmax.f32 %v2699, 0.0
        %v2771 = vmax.f32 %v2613, 0.0
        %v2772 = vmax.f32 %v2702, 0.0
        %v2773 = vmax.f32 %v2615, 0.0
        %v2774 = vmax.f32 %v2704, 0.0
        %v2775 = vmax.f32 %v2618, 0.0
        %v2776 = vmax.f32 %v2707, 0.0
        %v2777 = vmax.f32 %v2620, 0.0
        %v2778 = vmax.f32 %v2709, 0.0
        %v2779 = vmax.f32 %v2623, 0.0
        %v2780 = vmax.f32 %v2712, 0.0
        %v2781 = vmax.f32 %v2625, 0.0
        %v2782 = vmax.f32 %v2714, 0.0
        %v2783 = vmax.f32 %v2628, 0.0
        %v2784 = vmax.f32 %v2717, 0.0
        %v2785 = vmax.f32 %v2630, 0.0
        %v2786 = vmax.f32 %v2719, 0.0
        %v2787 = vmax.f32 %v2633, 0.0
        %v2788 = vmax.f32 %v2722, 0.0
        %v2789 = vmax.f32 %v2635, 0.0
        %v2790 = vmax.f32 %v2724, 0.0
        %v2791 = vmax.f32 %v2638, 0.0
        %v2792 = vmax.f32 %v2727, 0.0
        %v2793 = vmax.f32 %v2640, 0.0
        %v2794 = vmax.f32 %v2729, 0.0
        %v2795 = vpack.c.bf16 %v2733, %v2731
        %v2796 = vpack.c.bf16 %v2734, %v2732
        %v2797 = vpack.c.bf16 %v2737, %v2735
        %v2798 = vpack.c.bf16 %v2738, %v2736
        %v2799 = vpack.c.bf16 %v2741, %v2739
        %v2800 = vpack.c.bf16 %v2742, %v2740
        %v2801 = vpack.c.bf16 %v2745, %v2743
        %v2802 = vpack.c.bf16 %v2746, %v2744
        %v2803 = vpack.c.bf16 %v2749, %v2747
        %v2804 = vpack.c.bf16 %v2750, %v2748
        %v2805 = vpack.c.bf16 %v2753, %v2751
        %v2806 = vpack.c.bf16 %v2754, %v2752
        %v2807 = vpack.c.bf16 %v2757, %v2755
        %v2808 = vpack.c.bf16 %v2758, %v2756
        %v2809 = vpack.c.bf16 %v2761, %v2759
        %v2810 = vpack.c.bf16 %v2762, %v2760
        %v2811 = vpack.c.bf16 %v2765, %v2763
        %v2812 = vpack.c.bf16 %v2766, %v2764
        %v2813 = vpack.c.bf16 %v2769, %v2767
        %v2814 = vpack.c.bf16 %v2770, %v2768
        %v2815 = vpack.c.bf16 %v2773, %v2771
        %v2816 = vpack.c.bf16 %v2774, %v2772
        %v2817 = vpack.c.bf16 %v2777, %v2775
        %v2818 = vpack.c.bf16 %v2778, %v2776
        %v2819 = vpack.c.bf16 %v2781, %v2779
        %v2820 = vpack.c.bf16 %v2782, %v2780
        %v2821 = vpack.c.bf16 %v2785, %v2783
        %v2822 = vpack.c.bf16 %v2786, %v2784
        %v2823 = vpack.c.bf16 %v2789, %v2787
        %v2824 = vpack.c.bf16 %v2790, %v2788
        %v2825 = vpack.c.bf16 %v2793, %v2791
        %v2826 = vpack.c.bf16 %v2794, %v2792
        %v2827 = vld [vmem:[%s18] sm:$0xf]
        %v2828 = vld [vmem:[#allocation4] sm:$0xff]
        %v2829 = vld [vmem:[#allocation4 + $0x8] sm:$0xff]
        %v2830 = vld [vmem:[#allocation4 + $0x10] sm:$0xff]
        %v2831 = vld [vmem:[#allocation4 + $0x18] sm:$0xff]
        %v2832 = vld [vmem:[#allocation4 + $0x20] sm:$0xff]
        %v2833 = vld [vmem:[#allocation4 + $0x28] sm:$0xff]
        %v2834 = vld [vmem:[#allocation4 + $0x30] sm:$0xff]
        %v2835 = vld [vmem:[#allocation4 + $0x38] sm:$0xff]
        %v2836 = vld [vmem:[#allocation4 + $0x40] sm:$0xff]
        %v2837 = vld [vmem:[#allocation4 + $0x48] sm:$0xff]
        %v2838 = vld [vmem:[#allocation4 + $0x50] sm:$0xff]
        %v2839 = vld [vmem:[#allocation4 + $0x58] sm:$0xff]
        %v2840 = vld [vmem:[#allocation4 + $0x60] sm:$0xff]
        %v2841 = vld [vmem:[#allocation4 + $0x68] sm:$0xff]
        %v2842 = vld [vmem:[#allocation4 + $0x70] sm:$0xff]
        %v2843 = vld [vmem:[#allocation4 + $0x78] sm:$0xff]
        %v2844 = vld [vmem:[#allocation4 + $0x80] sm:$0xff]
        %v2845 = vld [vmem:[#allocation4 + $0x88] sm:$0xff]
        %v2846 = vld [vmem:[#allocation4 + $0x90] sm:$0xff]
        %v2847 = vld [vmem:[#allocation4 + $0x98] sm:$0xff]
        %v2848 = vld [vmem:[#allocation4 + $0xa0] sm:$0xff]
        %v2849 = vld [vmem:[#allocation4 + $0xa8] sm:$0xff]
        %v2850 = vld [vmem:[#allocation4 + $0xb0] sm:$0xff]
        %v2851 = vld [vmem:[#allocation4 + $0xb8] sm:$0xff]
        %v2852 = vld [vmem:[#allocation4 + $0xc0] sm:$0xff]
        %v2853 = vld [vmem:[#allocation4 + $0xc8] sm:$0xff]
        %v2854 = vld [vmem:[#allocation4 + $0xd0] sm:$0xff]
        %v2855 = vld [vmem:[#allocation4 + $0xd8] sm:$0xff]
        %v2856 = vld [vmem:[#allocation4 + $0xe0] sm:$0xff]
        %v2857 = vld [vmem:[#allocation4 + $0xe8] sm:$0xff]
        %v2858 = vld [vmem:[#allocation4 + $0xf0] sm:$0xff]
        %v2859 = vld [vmem:[#allocation4 + $0xf8] sm:$0xff]
        %v2860 = vld [vmem:[#allocation4 + $0x100] sm:$0xff]
        %v2861 = vld [vmem:[#allocation4 + $0x108] sm:$0xff]
        %v2862 = vld [vmem:[#allocation4 + $0x110] sm:$0xff]
        %v2863 = vld [vmem:[#allocation4 + $0x118] sm:$0xff]
        %v2864 = vld [vmem:[#allocation4 + $0x120] sm:$0xff]
        %v2865 = vld [vmem:[#allocation4 + $0x128] sm:$0xff]
        %v2866 = vld [vmem:[#allocation4 + $0x130] sm:$0xff]
        %v2867 = vld [vmem:[#allocation4 + $0x138] sm:$0xff]
        %v2868 = vld [vmem:[#allocation4 + $0x140] sm:$0xff]
        %v2869 = vld [vmem:[#allocation4 + $0x148] sm:$0xff]
        %v2870 = vld [vmem:[#allocation4 + $0x150] sm:$0xff]
        %v2871 = vld [vmem:[#allocation4 + $0x158] sm:$0xff]
        %v2872 = vld [vmem:[#allocation4 + $0x160] sm:$0xff]
        %v2873 = vld [vmem:[#allocation4 + $0x168] sm:$0xff]
        %v2874 = vld [vmem:[#allocation4 + $0x170] sm:$0xff]
        %v2875 = vld [vmem:[#allocation4 + $0x178] sm:$0xff]
        %v2876 = vld [vmem:[#allocation4 + $0x180] sm:$0xff]
        %v2877 = vld [vmem:[#allocation4 + $0x188] sm:$0xff]
        %v2878 = vld [vmem:[#allocation4 + $0x190] sm:$0xff]
        %v2879 = vld [vmem:[#allocation4 + $0x198] sm:$0xff]
        %v2880 = vld [vmem:[#allocation4 + $0x1a0] sm:$0xff]
        %v2881 = vld [vmem:[#allocation4 + $0x1a8] sm:$0xff]
        %v2882 = vld [vmem:[#allocation4 + $0x1b0] sm:$0xff]
        %v2883 = vld [vmem:[#allocation4 + $0x1b8] sm:$0xff]
        %v2884 = vld [vmem:[#allocation4 + $0x1c0] sm:$0xff]
        %v2885 = vld [vmem:[#allocation4 + $0x1c8] sm:$0xff]
        %v2886 = vld [vmem:[#allocation4 + $0x1d0] sm:$0xff]
        %v2887 = vld [vmem:[#allocation4 + $0x1d8] sm:$0xff]
        %v2888 = vld [vmem:[#allocation4 + $0x1e0] sm:$0xff]
        %v2889 = vld [vmem:[#allocation4 + $0x1e8] sm:$0xff]
        %v2890 = vld [vmem:[#allocation4 + $0x1f0] sm:$0xff]
        %v2891 = vld [vmem:[#allocation4 + $0x1f8] sm:$0xff]
        %v2893 = vperm.slane %v2827, 0
        %v2894 = vperm.slane %v2827, 1
        %v2895 = vperm.slane %v2827, 2
        %v2896 = vperm.slane %v2827, 3
        %v2965 = vunpack.c.l.b16 %v2828
        %v2966 = vunpack.c.h.b16 %v2828
        %v2967 = vunpack.c.l.b16 %v2829
        %v2968 = vunpack.c.h.b16 %v2829
        %v2969 = vunpack.c.l.b16 %v2830
        %v2970 = vunpack.c.h.b16 %v2830
        %v2971 = vunpack.c.l.b16 %v2831
        %v2972 = vunpack.c.h.b16 %v2831
        %v2973 = vunpack.c.l.b16 %v2832
        %v2974 = vunpack.c.h.b16 %v2832
        %v2975 = vunpack.c.l.b16 %v2833
        %v2976 = vunpack.c.h.b16 %v2833
        %v2977 = vunpack.c.l.b16 %v2834
        %v2978 = vunpack.c.h.b16 %v2834
        %v2979 = vunpack.c.l.b16 %v2835
        %v2980 = vunpack.c.h.b16 %v2835
        %v2981 = vunpack.c.l.b16 %v2836
        %v2982 = vunpack.c.h.b16 %v2836
        %v2983 = vunpack.c.l.b16 %v2837
        %v2984 = vunpack.c.h.b16 %v2837
        %v2985 = vunpack.c.l.b16 %v2838
        %v2986 = vunpack.c.h.b16 %v2838
        %v2987 = vunpack.c.l.b16 %v2839
        %v2988 = vunpack.c.h.b16 %v2839
        %v2989 = vunpack.c.l.b16 %v2840
        %v2990 = vunpack.c.h.b16 %v2840
        %v2991 = vunpack.c.l.b16 %v2841
        %v2992 = vunpack.c.h.b16 %v2841
        %v2993 = vunpack.c.l.b16 %v2842
        %v2994 = vunpack.c.h.b16 %v2842
        %v2995 = vunpack.c.l.b16 %v2843
        %v2996 = vunpack.c.h.b16 %v2843
        %v2997 = vunpack.c.l.b16 %v2844
        %v2998 = vunpack.c.h.b16 %v2844
        %v2999 = vunpack.c.l.b16 %v2845
        %v3000 = vunpack.c.h.b16 %v2845
        %v3001 = vunpack.c.l.b16 %v2846
        %v3002 = vunpack.c.h.b16 %v2846
        %v3003 = vunpack.c.l.b16 %v2847
        %v3004 = vunpack.c.h.b16 %v2847
        %v3005 = vunpack.c.l.b16 %v2848
        %v3006 = vunpack.c.h.b16 %v2848
        %v3007 = vunpack.c.l.b16 %v2849
        %v3008 = vunpack.c.h.b16 %v2849
        %v3009 = vunpack.c.l.b16 %v2850
        %v3010 = vunpack.c.h.b16 %v2850
        %v3011 = vunpack.c.l.b16 %v2851
        %v3012 = vunpack.c.h.b16 %v2851
        %v3013 = vunpack.c.l.b16 %v2852
        %v3014 = vunpack.c.h.b16 %v2852
        %v3015 = vunpack.c.l.b16 %v2853
        %v3016 = vunpack.c.h.b16 %v2853
        %v3017 = vunpack.c.l.b16 %v2854
        %v3018 = vunpack.c.h.b16 %v2854
        %v3019 = vunpack.c.l.b16 %v2855
        %v3020 = vunpack.c.h.b16 %v2855
        %v3021 = vunpack.c.l.b16 %v2856
        %v3022 = vunpack.c.h.b16 %v2856
        %v3023 = vunpack.c.l.b16 %v2857
        %v3024 = vunpack.c.h.b16 %v2857
        %v3025 = vunpack.c.l.b16 %v2858
        %v3026 = vunpack.c.h.b16 %v2858
        %v3027 = vunpack.c.l.b16 %v2859
        %v3028 = vunpack.c.h.b16 %v2859
        %v3029 = vunpack.c.l.b16 %v2860
        %v3030 = vunpack.c.h.b16 %v2860
        %v3031 = vunpack.c.l.b16 %v2861
        %v3032 = vunpack.c.h.b16 %v2861
        %v3033 = vunpack.c.l.b16 %v2862
        %v3034 = vunpack.c.h.b16 %v2862
        %v3035 = vunpack.c.l.b16 %v2863
        %v3036 = vunpack.c.h.b16 %v2863
        %v3037 = vunpack.c.l.b16 %v2864
        %v3038 = vunpack.c.h.b16 %v2864
        %v3039 = vunpack.c.l.b16 %v2865
        %v3040 = vunpack.c.h.b16 %v2865
        %v3041 = vunpack.c.l.b16 %v2866
        %v3042 = vunpack.c.h.b16 %v2866
        %v3043 = vunpack.c.l.b16 %v2867
        %v3044 = vunpack.c.h.b16 %v2867
        %v3045 = vunpack.c.l.b16 %v2868
        %v3046 = vunpack.c.h.b16 %v2868
        %v3047 = vunpack.c.l.b16 %v2869
        %v3048 = vunpack.c.h.b16 %v2869
        %v3049 = vunpack.c.l.b16 %v2870
        %v3050 = vunpack.c.h.b16 %v2870
        %v3051 = vunpack.c.l.b16 %v2871
        %v3052 = vunpack.c.h.b16 %v2871
        %v3053 = vunpack.c.l.b16 %v2872
        %v3054 = vunpack.c.h.b16 %v2872
        %v3055 = vunpack.c.l.b16 %v2873
        %v3056 = vunpack.c.h.b16 %v2873
        %v3057 = vunpack.c.l.b16 %v2874
        %v3058 = vunpack.c.h.b16 %v2874
        %v3059 = vunpack.c.l.b16 %v2875
        %v3060 = vunpack.c.h.b16 %v2875
        %v3061 = vunpack.c.l.b16 %v2876
        %v3062 = vunpack.c.h.b16 %v2876
        %v3063 = vunpack.c.l.b16 %v2877
        %v3064 = vunpack.c.h.b16 %v2877
        %v3065 = vunpack.c.l.b16 %v2878
        %v3066 = vunpack.c.h.b16 %v2878
        %v3067 = vunpack.c.l.b16 %v2879
        %v3068 = vunpack.c.h.b16 %v2879
        %v3069 = vunpack.c.l.b16 %v2880
        %v3070 = vunpack.c.h.b16 %v2880
        %v3071 = vunpack.c.l.b16 %v2881
        %v3072 = vunpack.c.h.b16 %v2881
        %v3073 = vunpack.c.l.b16 %v2882
        %v3074 = vunpack.c.h.b16 %v2882
        %v3075 = vunpack.c.l.b16 %v2883
        %v3076 = vunpack.c.h.b16 %v2883
        %v3077 = vunpack.c.l.b16 %v2884
        %v3078 = vunpack.c.h.b16 %v2884
        %v3079 = vunpack.c.l.b16 %v2885
        %v3080 = vunpack.c.h.b16 %v2885
        %v3081 = vunpack.c.l.b16 %v2886
        %v3082 = vunpack.c.h.b16 %v2886
        %v3083 = vunpack.c.l.b16 %v2887
        %v3084 = vunpack.c.h.b16 %v2887
        %v3085 = vunpack.c.l.b16 %v2888
        %v3086 = vunpack.c.h.b16 %v2888
        %v3087 = vunpack.c.l.b16 %v2889
        %v3088 = vunpack.c.h.b16 %v2889
        %v3089 = vunpack.c.l.b16 %v2890
        %v3090 = vunpack.c.h.b16 %v2890
        %v3091 = vunpack.c.l.b16 %v2891
        %v3092 = vunpack.c.h.b16 %v2891
        %v3093 = vpack.c.b16 %v2969, %v2965
        %v3094 = vpack.c.b16 %v2970, %v2966
        %v3095 = vpack.c.b16 %v2971, %v2967
        %v3096 = vpack.c.b16 %v2972, %v2968
        %v3097 = vpack.c.b16 %v2977, %v2973
        %v3098 = vpack.c.b16 %v2978, %v2974
        %v3099 = vpack.c.b16 %v2979, %v2975
        %v3100 = vpack.c.b16 %v2980, %v2976
        %v3101 = vpack.c.b16 %v2985, %v2981
        %v3102 = vpack.c.b16 %v2986, %v2982
        %v3103 = vpack.c.b16 %v2987, %v2983
        %v3104 = vpack.c.b16 %v2988, %v2984
        %v3105 = vpack.c.b16 %v2993, %v2989
        %v3106 = vpack.c.b16 %v2994, %v2990
        %v3107 = vpack.c.b16 %v2995, %v2991
        %v3108 = vpack.c.b16 %v2996, %v2992
        %v3109 = vpack.c.b16 %v3001, %v2997
        %v3110 = vpack.c.b16 %v3002, %v2998
        %v3111 = vpack.c.b16 %v3003, %v2999
        %v3112 = vpack.c.b16 %v3004, %v3000
        %v3113 = vpack.c.b16 %v3009, %v3005
        %v3114 = vpack.c.b16 %v3010, %v3006
        %v3115 = vpack.c.b16 %v3011, %v3007
        %v3116 = vpack.c.b16 %v3012, %v3008
        %v3117 = vpack.c.b16 %v3017, %v3013
        %v3118 = vpack.c.b16 %v3018, %v3014
        %v3119 = vpack.c.b16 %v3019, %v3015
        %v3120 = vpack.c.b16 %v3020, %v3016
        %v3121 = vpack.c.b16 %v3025, %v3021
        %v3122 = vpack.c.b16 %v3026, %v3022
        %v3123 = vpack.c.b16 %v3027, %v3023
        %v3124 = vpack.c.b16 %v3028, %v3024
        %v3125 = vpack.c.b16 %v3033, %v3029
        %v3126 = vpack.c.b16 %v3034, %v3030
        %v3127 = vpack.c.b16 %v3035, %v3031
        %v3128 = vpack.c.b16 %v3036, %v3032
        %v3129 = vpack.c.b16 %v3041, %v3037
        %v3130 = vpack.c.b16 %v3042, %v3038
        %v3131 = vpack.c.b16 %v3043, %v3039
        %v3132 = vpack.c.b16 %v3044, %v3040
        %v3133 = vpack.c.b16 %v3049, %v3045
        %v3134 = vpack.c.b16 %v3050, %v3046
        %v3135 = vpack.c.b16 %v3051, %v3047
        %v3136 = vpack.c.b16 %v3052, %v3048
        %v3137 = vpack.c.b16 %v3057, %v3053
        %v3138 = vpack.c.b16 %v3058, %v3054
        %v3139 = vpack.c.b16 %v3059, %v3055
        %v3140 = vpack.c.b16 %v3060, %v3056
        %v3141 = vpack.c.b16 %v3065, %v3061
        %v3142 = vpack.c.b16 %v3066, %v3062
        %v3143 = vpack.c.b16 %v3067, %v3063
        %v3144 = vpack.c.b16 %v3068, %v3064
        %v3145 = vpack.c.b16 %v3073, %v3069
        %v3146 = vpack.c.b16 %v3074, %v3070
        %v3147 = vpack.c.b16 %v3075, %v3071
        %v3148 = vpack.c.b16 %v3076, %v3072
        %v3149 = vpack.c.b16 %v3081, %v3077
        %v3150 = vpack.c.b16 %v3082, %v3078
        %v3151 = vpack.c.b16 %v3083, %v3079
        %v3152 = vpack.c.b16 %v3084, %v3080
        %v3153 = vpack.c.b16 %v3089, %v3085
        %v3154 = vpack.c.b16 %v3090, %v3086
        %v3155 = vpack.c.b16 %v3091, %v3087
        %v3156 = vpack.c.b16 %v3092, %v3088
        %3221 = vmatpush.bf16.msra.mxu0 %v3121
        %3222 = vmatpush.bf16.msra.mxu0 %v3117
        %3223 = vmatpush.bf16.msra.mxu0 %v3113
        %3224 = vmatpush.bf16.msra.mxu0 %v3109
        %3225 = vmatpush.bf16.msra.mxu0 %v3105
        %3226 = vmatpush.bf16.msra.mxu0 %v3101
        %3227 = vmatpush.bf16.msra.mxu0 %v3097
        %3228 = vmatpush.bf16.msra.mxu0 %v3093
        %3229 = vmatmul.bf16.gmra.mxu0 %v2795
        %v3230 = vpop.f32.mrf.mxu0
        %v3231 = vadd.f32 %v2893, %v3230
        %v3232 = vpop.f32.mrf.mxu0
        %v3233 = vadd.f32 %v2893, %v3232
        %3234 = vmatmul.bf16.gmra.mxu0 %v2797
        %v3235 = vpop.f32.mrf.mxu0
        %v3236 = vadd.f32 %v2893, %v3235
        %v3237 = vpop.f32.mrf.mxu0
        %v3238 = vadd.f32 %v2893, %v3237
        %3239 = vmatmul.bf16.gmra.mxu0 %v2799
        %v3240 = vpop.f32.mrf.mxu0
        %v3241 = vadd.f32 %v2893, %v3240
        %v3242 = vpop.f32.mrf.mxu0
        %v3243 = vadd.f32 %v2893, %v3242
        %3244 = vmatmul.bf16.gmra.mxu0 %v2801
        %v3245 = vpop.f32.mrf.mxu0
        %v3246 = vadd.f32 %v2893, %v3245
        %v3247 = vpop.f32.mrf.mxu0
        %v3248 = vadd.f32 %v2893, %v3247
        %3249 = vmatmul.bf16.gmra.mxu0 %v2803
        %v3250 = vpop.f32.mrf.mxu0
        %v3251 = vadd.f32 %v2893, %v3250
        %v3252 = vpop.f32.mrf.mxu0
        %v3253 = vadd.f32 %v2893, %v3252
        %3254 = vmatmul.bf16.gmra.mxu0 %v2805
        %v3255 = vpop.f32.mrf.mxu0
        %v3256 = vadd.f32 %v2893, %v3255
        %v3257 = vpop.f32.mrf.mxu0
        %v3258 = vadd.f32 %v2893, %v3257
        %3259 = vmatmul.bf16.gmra.mxu0 %v2807
        %v3260 = vpop.f32.mrf.mxu0
        %v3261 = vadd.f32 %v2893, %v3260
        %v3262 = vpop.f32.mrf.mxu0
        %v3263 = vadd.f32 %v2893, %v3262
        %3264 = vmatmul.bf16.gmra.mxu0 %v2809
        %v3265 = vpop.f32.mrf.mxu0
        %v3266 = vadd.f32 %v2893, %v3265
        %v3267 = vpop.f32.mrf.mxu0
        %v3268 = vadd.f32 %v2893, %v3267
        %3269 = vmatmul.bf16.gmra.mxu0 %v2811
        %v3270 = vpop.f32.mrf.mxu0
        %v3271 = vadd.f32 %v2893, %v3270
        %v3272 = vpop.f32.mrf.mxu0
        %v3273 = vadd.f32 %v2893, %v3272
        %3274 = vmatmul.bf16.gmra.mxu0 %v2813
        %v3275 = vpop.f32.mrf.mxu0
        %v3276 = vadd.f32 %v2893, %v3275
        %v3277 = vpop.f32.mrf.mxu0
        %v3278 = vadd.f32 %v2893, %v3277
        %3279 = vmatmul.bf16.gmra.mxu0 %v2815
        %v3280 = vpop.f32.mrf.mxu0
        %v3281 = vadd.f32 %v2893, %v3280
        %v3282 = vpop.f32.mrf.mxu0
        %v3283 = vadd.f32 %v2893, %v3282
        %3284 = vmatmul.bf16.gmra.mxu0 %v2817
        %v3285 = vpop.f32.mrf.mxu0
        %v3286 = vadd.f32 %v2893, %v3285
        %v3287 = vpop.f32.mrf.mxu0
        %v3288 = vadd.f32 %v2893, %v3287
        %3289 = vmatmul.bf16.gmra.mxu0 %v2819
        %v3290 = vpop.f32.mrf.mxu0
        %v3291 = vadd.f32 %v2893, %v3290
        %v3292 = vpop.f32.mrf.mxu0
        %v3293 = vadd.f32 %v2893, %v3292
        %3294 = vmatmul.bf16.gmra.mxu0 %v2821
        %v3295 = vpop.f32.mrf.mxu0
        %v3296 = vadd.f32 %v2893, %v3295
        %v3297 = vpop.f32.mrf.mxu0
        %v3298 = vadd.f32 %v2893, %v3297
        %3299 = vmatmul.bf16.gmra.mxu0 %v2823
        %v3300 = vpop.f32.mrf.mxu0
        %v3301 = vadd.f32 %v2893, %v3300
        %v3302 = vpop.f32.mrf.mxu0
        %v3303 = vadd.f32 %v2893, %v3302
        %3304 = vmatmul.bf16.gmra.mxu0 %v2825
        %v3305 = vpop.f32.mrf.mxu0
        %v3306 = vadd.f32 %v2893, %v3305
        %v3307 = vpop.f32.mrf.mxu0
        %v3308 = vadd.f32 %v2893, %v3307
        %3309 = vdwg.mxu0
        %3310 = vmatpush.bf16.msra.mxu0 %v3153
        %3311 = vmatpush.bf16.msra.mxu0 %v3149
        %3312 = vmatpush.bf16.msra.mxu0 %v3145
        %3313 = vmatpush.bf16.msra.mxu0 %v3141
        %3314 = vmatpush.bf16.msra.mxu0 %v3137
        %3315 = vmatpush.bf16.msra.mxu0 %v3133
        %3316 = vmatpush.bf16.msra.mxu0 %v3129
        %3317 = vmatpush.bf16.msra.mxu0 %v3125
        %3318 = vmatmul.bf16.gmra.mxu0 %v2796
        %v3319 = vpop.f32.mrf.mxu0
        %v3320 = vadd.f32 %v3231, %v3319
        %v3321 = vpop.f32.mrf.mxu0
        %v3322 = vadd.f32 %v3233, %v3321
        %3323 = vmatmul.bf16.gmra.mxu0 %v2798
        %v3324 = vpop.f32.mrf.mxu0
        %v3325 = vadd.f32 %v3236, %v3324
        %v3326 = vpop.f32.mrf.mxu0
        %v3327 = vadd.f32 %v3238, %v3326
        %3328 = vmatmul.bf16.gmra.mxu0 %v2800
        %v3329 = vpop.f32.mrf.mxu0
        %v3330 = vadd.f32 %v3241, %v3329
        %v3331 = vpop.f32.mrf.mxu0
        %v3332 = vadd.f32 %v3243, %v3331
        %3333 = vmatmul.bf16.gmra.mxu0 %v2802
        %v3334 = vpop.f32.mrf.mxu0
        %v3335 = vadd.f32 %v3246, %v3334
        %v3336 = vpop.f32.mrf.mxu0
        %v3337 = vadd.f32 %v3248, %v3336
        %3338 = vmatmul.bf16.gmra.mxu0 %v2804
        %v3339 = vpop.f32.mrf.mxu0
        %v3340 = vadd.f32 %v3251, %v3339
        %v3341 = vpop.f32.mrf.mxu0
        %v3342 = vadd.f32 %v3253, %v3341
        %3343 = vmatmul.bf16.gmra.mxu0 %v2806
        %v3344 = vpop.f32.mrf.mxu0
        %v3345 = vadd.f32 %v3256, %v3344
        %v3346 = vpop.f32.mrf.mxu0
        %v3347 = vadd.f32 %v3258, %v3346
        %3348 = vmatmul.bf16.gmra.mxu0 %v2808
        %v3349 = vpop.f32.mrf.mxu0
        %v3350 = vadd.f32 %v3261, %v3349
        %v3351 = vpop.f32.mrf.mxu0
        %v3352 = vadd.f32 %v3263, %v3351
        %3353 = vmatmul.bf16.gmra.mxu0 %v2810
        %v3354 = vpop.f32.mrf.mxu0
        %v3355 = vadd.f32 %v3266, %v3354
        %v3356 = vpop.f32.mrf.mxu0
        %v3357 = vadd.f32 %v3268, %v3356
        %3358 = vmatmul.bf16.gmra.mxu0 %v2812
        %v3359 = vpop.f32.mrf.mxu0
        %v3360 = vadd.f32 %v3271, %v3359
        %v3361 = vpop.f32.mrf.mxu0
        %v3362 = vadd.f32 %v3273, %v3361
        %3363 = vmatmul.bf16.gmra.mxu0 %v2814
        %v3364 = vpop.f32.mrf.mxu0
        %v3365 = vadd.f32 %v3276, %v3364
        %v3366 = vpop.f32.mrf.mxu0
        %v3367 = vadd.f32 %v3278, %v3366
        %3368 = vmatmul.bf16.gmra.mxu0 %v2816
        %v3369 = vpop.f32.mrf.mxu0
        %v3370 = vadd.f32 %v3281, %v3369
        %v3371 = vpop.f32.mrf.mxu0
        %v3372 = vadd.f32 %v3283, %v3371
        %3373 = vmatmul.bf16.gmra.mxu0 %v2818
        %v3374 = vpop.f32.mrf.mxu0
        %v3375 = vadd.f32 %v3286, %v3374
        %v3376 = vpop.f32.mrf.mxu0
        %v3377 = vadd.f32 %v3288, %v3376
        %3378 = vmatmul.bf16.gmra.mxu0 %v2820
        %v3379 = vpop.f32.mrf.mxu0
        %v3380 = vadd.f32 %v3291, %v3379
        %v3381 = vpop.f32.mrf.mxu0
        %v3382 = vadd.f32 %v3293, %v3381
        %3383 = vmatmul.bf16.gmra.mxu0 %v2822
        %v3384 = vpop.f32.mrf.mxu0
        %v3385 = vadd.f32 %v3296, %v3384
        %v3386 = vpop.f32.mrf.mxu0
        %v3387 = vadd.f32 %v3298, %v3386
        %3388 = vmatmul.bf16.gmra.mxu0 %v2824
        %v3389 = vpop.f32.mrf.mxu0
        %v3390 = vadd.f32 %v3301, %v3389
        %v3391 = vpop.f32.mrf.mxu0
        %v3392 = vadd.f32 %v3303, %v3391
        %3393 = vmatmul.bf16.gmra.mxu0 %v2826
        %v3394 = vpop.f32.mrf.mxu0
        %v3395 = vadd.f32 %v3306, %v3394
        %v3396 = vpop.f32.mrf.mxu0
        %v3397 = vadd.f32 %v3308, %v3396
        %3398 = vdwg.mxu0
        %3399 = vmatpush.bf16.msra.mxu0 %v3122
        %3400 = vmatpush.bf16.msra.mxu0 %v3118
        %3401 = vmatpush.bf16.msra.mxu0 %v3114
        %3402 = vmatpush.bf16.msra.mxu0 %v3110
        %3403 = vmatpush.bf16.msra.mxu0 %v3106
        %3404 = vmatpush.bf16.msra.mxu0 %v3102
        %3405 = vmatpush.bf16.msra.mxu0 %v3098
        %3406 = vmatpush.bf16.msra.mxu0 %v3094
        %3407 = vmatmul.bf16.gmra.mxu0 %v2795
        %v3408 = vpop.f32.mrf.mxu0
        %v3409 = vadd.f32 %v2894, %v3408
        %v3410 = vpop.f32.mrf.mxu0
        %v3411 = vadd.f32 %v2894, %v3410
        %3412 = vmatmul.bf16.gmra.mxu0 %v2797
        %v3413 = vpop.f32.mrf.mxu0
        %v3414 = vadd.f32 %v2894, %v3413
        %v3415 = vpop.f32.mrf.mxu0
        %v3416 = vadd.f32 %v2894, %v3415
        %3417 = vmatmul.bf16.gmra.mxu0 %v2799
        %v3418 = vpop.f32.mrf.mxu0
        %v3419 = vadd.f32 %v2894, %v3418
        %v3420 = vpop.f32.mrf.mxu0
        %v3421 = vadd.f32 %v2894, %v3420
        %3422 = vmatmul.bf16.gmra.mxu0 %v2801
        %v3423 = vpop.f32.mrf.mxu0
        %v3424 = vadd.f32 %v2894, %v3423
        %v3425 = vpop.f32.mrf.mxu0
        %v3426 = vadd.f32 %v2894, %v3425
        %3427 = vmatmul.bf16.gmra.mxu0 %v2803
        %v3428 = vpop.f32.mrf.mxu0
        %v3429 = vadd.f32 %v2894, %v3428
        %v3430 = vpop.f32.mrf.mxu0
        %v3431 = vadd.f32 %v2894, %v3430
        %3432 = vmatmul.bf16.gmra.mxu0 %v2805
        %v3433 = vpop.f32.mrf.mxu0
        %v3434 = vadd.f32 %v2894, %v3433
        %v3435 = vpop.f32.mrf.mxu0
        %v3436 = vadd.f32 %v2894, %v3435
        %3437 = vmatmul.bf16.gmra.mxu0 %v2807
        %v3438 = vpop.f32.mrf.mxu0
        %v3439 = vadd.f32 %v2894, %v3438
        %v3440 = vpop.f32.mrf.mxu0
        %v3441 = vadd.f32 %v2894, %v3440
        %3442 = vmatmul.bf16.gmra.mxu0 %v2809
        %v3443 = vpop.f32.mrf.mxu0
        %v3444 = vadd.f32 %v2894, %v3443
        %v3445 = vpop.f32.mrf.mxu0
        %v3446 = vadd.f32 %v2894, %v3445
        %3447 = vmatmul.bf16.gmra.mxu0 %v2811
        %v3448 = vpop.f32.mrf.mxu0
        %v3449 = vadd.f32 %v2894, %v3448
        %v3450 = vpop.f32.mrf.mxu0
        %v3451 = vadd.f32 %v2894, %v3450
        %3452 = vmatmul.bf16.gmra.mxu0 %v2813
        %v3453 = vpop.f32.mrf.mxu0
        %v3454 = vadd.f32 %v2894, %v3453
        %v3455 = vpop.f32.mrf.mxu0
        %v3456 = vadd.f32 %v2894, %v3455
        %3457 = vmatmul.bf16.gmra.mxu0 %v2815
        %v3458 = vpop.f32.mrf.mxu0
        %v3459 = vadd.f32 %v2894, %v3458
        %v3460 = vpop.f32.mrf.mxu0
        %v3461 = vadd.f32 %v2894, %v3460
        %3462 = vmatmul.bf16.gmra.mxu0 %v2817
        %v3463 = vpop.f32.mrf.mxu0
        %v3464 = vadd.f32 %v2894, %v3463
        %v3465 = vpop.f32.mrf.mxu0
        %v3466 = vadd.f32 %v2894, %v3465
        %3467 = vmatmul.bf16.gmra.mxu0 %v2819
        %v3468 = vpop.f32.mrf.mxu0
        %v3469 = vadd.f32 %v2894, %v3468
        %v3470 = vpop.f32.mrf.mxu0
        %v3471 = vadd.f32 %v2894, %v3470
        %3472 = vmatmul.bf16.gmra.mxu0 %v2821
        %v3473 = vpop.f32.mrf.mxu0
        %v3474 = vadd.f32 %v2894, %v3473
        %v3475 = vpop.f32.mrf.mxu0
        %v3476 = vadd.f32 %v2894, %v3475
        %3477 = vmatmul.bf16.gmra.mxu0 %v2823
        %v3478 = vpop.f32.mrf.mxu0
        %v3479 = vadd.f32 %v2894, %v3478
        %v3480 = vpop.f32.mrf.mxu0
        %v3481 = vadd.f32 %v2894, %v3480
        %3482 = vmatmul.bf16.gmra.mxu0 %v2825
        %v3483 = vpop.f32.mrf.mxu0
        %v3484 = vadd.f32 %v2894, %v3483
        %v3485 = vpop.f32.mrf.mxu0
        %v3486 = vadd.f32 %v2894, %v3485
        %3487 = vdwg.mxu0
        %3488 = vmatpush.bf16.msra.mxu0 %v3154
        %3489 = vmatpush.bf16.msra.mxu0 %v3150
        %3490 = vmatpush.bf16.msra.mxu0 %v3146
        %3491 = vmatpush.bf16.msra.mxu0 %v3142
        %3492 = vmatpush.bf16.msra.mxu0 %v3138
        %3493 = vmatpush.bf16.msra.mxu0 %v3134
        %3494 = vmatpush.bf16.msra.mxu0 %v3130
        %3495 = vmatpush.bf16.msra.mxu0 %v3126
        %3496 = vmatmul.bf16.gmra.mxu0 %v2796
        %v3497 = vpop.f32.mrf.mxu0
        %v3498 = vadd.f32 %v3409, %v3497
        %v3499 = vpop.f32.mrf.mxu0
        %v3500 = vadd.f32 %v3411, %v3499
        %3501 = vmatmul.bf16.gmra.mxu0 %v2798
        %v3502 = vpop.f32.mrf.mxu0
        %v3503 = vadd.f32 %v3414, %v3502
        %v3504 = vpop.f32.mrf.mxu0
        %v3505 = vadd.f32 %v3416, %v3504
        %3506 = vmatmul.bf16.gmra.mxu0 %v2800
        %v3507 = vpop.f32.mrf.mxu0
        %v3508 = vadd.f32 %v3419, %v3507
        %v3509 = vpop.f32.mrf.mxu0
        %v3510 = vadd.f32 %v3421, %v3509
        %3511 = vmatmul.bf16.gmra.mxu0 %v2802
        %v3512 = vpop.f32.mrf.mxu0
        %v3513 = vadd.f32 %v3424, %v3512
        %v3514 = vpop.f32.mrf.mxu0
        %v3515 = vadd.f32 %v3426, %v3514
        %3516 = vmatmul.bf16.gmra.mxu0 %v2804
        %v3517 = vpop.f32.mrf.mxu0
        %v3518 = vadd.f32 %v3429, %v3517
        %v3519 = vpop.f32.mrf.mxu0
        %v3520 = vadd.f32 %v3431, %v3519
        %3521 = vmatmul.bf16.gmra.mxu0 %v2806
        %v3522 = vpop.f32.mrf.mxu0
        %v3523 = vadd.f32 %v3434, %v3522
        %v3524 = vpop.f32.mrf.mxu0
        %v3525 = vadd.f32 %v3436, %v3524
        %3526 = vmatmul.bf16.gmra.mxu0 %v2808
        %v3527 = vpop.f32.mrf.mxu0
        %v3528 = vadd.f32 %v3439, %v3527
        %v3529 = vpop.f32.mrf.mxu0
        %v3530 = vadd.f32 %v3441, %v3529
        %3531 = vmatmul.bf16.gmra.mxu0 %v2810
        %v3532 = vpop.f32.mrf.mxu0
        %v3533 = vadd.f32 %v3444, %v3532
        %v3534 = vpop.f32.mrf.mxu0
        %v3535 = vadd.f32 %v3446, %v3534
        %3536 = vmatmul.bf16.gmra.mxu0 %v2812
        %v3537 = vpop.f32.mrf.mxu0
        %v3538 = vadd.f32 %v3449, %v3537
        %v3539 = vpop.f32.mrf.mxu0
        %v3540 = vadd.f32 %v3451, %v3539
        %3541 = vmatmul.bf16.gmra.mxu0 %v2814
        %v3542 = vpop.f32.mrf.mxu0
        %v3543 = vadd.f32 %v3454, %v3542
        %v3544 = vpop.f32.mrf.mxu0
        %v3545 = vadd.f32 %v3456, %v3544
        %3546 = vmatmul.bf16.gmra.mxu0 %v2816
        %v3547 = vpop.f32.mrf.mxu0
        %v3548 = vadd.f32 %v3459, %v3547
        %v3549 = vpop.f32.mrf.mxu0
        %v3550 = vadd.f32 %v3461, %v3549
        %3551 = vmatmul.bf16.gmra.mxu0 %v2818
        %v3552 = vpop.f32.mrf.mxu0
        %v3553 = vadd.f32 %v3464, %v3552
        %v3554 = vpop.f32.mrf.mxu0
        %v3555 = vadd.f32 %v3466, %v3554
        %3556 = vmatmul.bf16.gmra.mxu0 %v2820
        %v3557 = vpop.f32.mrf.mxu0
        %v3558 = vadd.f32 %v3469, %v3557
        %v3559 = vpop.f32.mrf.mxu0
        %v3560 = vadd.f32 %v3471, %v3559
        %3561 = vmatmul.bf16.gmra.mxu0 %v2822
        %v3562 = vpop.f32.mrf.mxu0
        %v3563 = vadd.f32 %v3474, %v3562
        %v3564 = vpop.f32.mrf.mxu0
        %v3565 = vadd.f32 %v3476, %v3564
        %3566 = vmatmul.bf16.gmra.mxu0 %v2824
        %v3567 = vpop.f32.mrf.mxu0
        %v3568 = vadd.f32 %v3479, %v3567
        %v3569 = vpop.f32.mrf.mxu0
        %v3570 = vadd.f32 %v3481, %v3569
        %3571 = vmatmul.bf16.gmra.mxu0 %v2826
        %v3572 = vpop.f32.mrf.mxu0
        %v3573 = vadd.f32 %v3484, %v3572
        %v3574 = vpop.f32.mrf.mxu0
        %v3575 = vadd.f32 %v3486, %v3574
        %3576 = vdwg.mxu0
        %3577 = vmatpush.bf16.msra.mxu0 %v3123
        %3578 = vmatpush.bf16.msra.mxu0 %v3119
        %3579 = vmatpush.bf16.msra.mxu0 %v3115
        %3580 = vmatpush.bf16.msra.mxu0 %v3111
        %3581 = vmatpush.bf16.msra.mxu0 %v3107
        %3582 = vmatpush.bf16.msra.mxu0 %v3103
        %3583 = vmatpush.bf16.msra.mxu0 %v3099
        %3584 = vmatpush.bf16.msra.mxu0 %v3095
        %3585 = vmatmul.bf16.gmra.mxu0 %v2795
        %v3586 = vpop.f32.mrf.mxu0
        %v3587 = vadd.f32 %v2895, %v3586
        %v3588 = vpop.f32.mrf.mxu0
        %v3589 = vadd.f32 %v2895, %v3588
        %3590 = vmatmul.bf16.gmra.mxu0 %v2797
        %v3591 = vpop.f32.mrf.mxu0
        %v3592 = vadd.f32 %v2895, %v3591
        %v3593 = vpop.f32.mrf.mxu0
        %v3594 = vadd.f32 %v2895, %v3593
        %3595 = vmatmul.bf16.gmra.mxu0 %v2799
        %v3596 = vpop.f32.mrf.mxu0
        %v3597 = vadd.f32 %v2895, %v3596
        %v3598 = vpop.f32.mrf.mxu0
        %v3599 = vadd.f32 %v2895, %v3598
        %3600 = vmatmul.bf16.gmra.mxu0 %v2801
        %v3601 = vpop.f32.mrf.mxu0
        %v3602 = vadd.f32 %v2895, %v3601
        %v3603 = vpop.f32.mrf.mxu0
        %v3604 = vadd.f32 %v2895, %v3603
        %3605 = vmatmul.bf16.gmra.mxu0 %v2803
        %v3606 = vpop.f32.mrf.mxu0
        %v3607 = vadd.f32 %v2895, %v3606
        %v3608 = vpop.f32.mrf.mxu0
        %v3609 = vadd.f32 %v2895, %v3608
        %3610 = vmatmul.bf16.gmra.mxu0 %v2805
        %v3611 = vpop.f32.mrf.mxu0
        %v3612 = vadd.f32 %v2895, %v3611
        %v3613 = vpop.f32.mrf.mxu0
        %v3614 = vadd.f32 %v2895, %v3613
        %3615 = vmatmul.bf16.gmra.mxu0 %v2807
        %v3616 = vpop.f32.mrf.mxu0
        %v3617 = vadd.f32 %v2895, %v3616
        %v3618 = vpop.f32.mrf.mxu0
        %v3619 = vadd.f32 %v2895, %v3618
        %3620 = vmatmul.bf16.gmra.mxu0 %v2809
        %v3621 = vpop.f32.mrf.mxu0
        %v3622 = vadd.f32 %v2895, %v3621
        %v3623 = vpop.f32.mrf.mxu0
        %v3624 = vadd.f32 %v2895, %v3623
        %3625 = vmatmul.bf16.gmra.mxu0 %v2811
        %v3626 = vpop.f32.mrf.mxu0
        %v3627 = vadd.f32 %v2895, %v3626
        %v3628 = vpop.f32.mrf.mxu0
        %v3629 = vadd.f32 %v2895, %v3628
        %3630 = vmatmul.bf16.gmra.mxu0 %v2813
        %v3631 = vpop.f32.mrf.mxu0
        %v3632 = vadd.f32 %v2895, %v3631
        %v3633 = vpop.f32.mrf.mxu0
        %v3634 = vadd.f32 %v2895, %v3633
        %3635 = vmatmul.bf16.gmra.mxu0 %v2815
        %v3636 = vpop.f32.mrf.mxu0
        %v3637 = vadd.f32 %v2895, %v3636
        %v3638 = vpop.f32.mrf.mxu0
        %v3639 = vadd.f32 %v2895, %v3638
        %3640 = vmatmul.bf16.gmra.mxu0 %v2817
        %v3641 = vpop.f32.mrf.mxu0
        %v3642 = vadd.f32 %v2895, %v3641
        %v3643 = vpop.f32.mrf.mxu0
        %v3644 = vadd.f32 %v2895, %v3643
        %3645 = vmatmul.bf16.gmra.mxu0 %v2819
        %v3646 = vpop.f32.mrf.mxu0
        %v3647 = vadd.f32 %v2895, %v3646
        %v3648 = vpop.f32.mrf.mxu0
        %v3649 = vadd.f32 %v2895, %v3648
        %3650 = vmatmul.bf16.gmra.mxu0 %v2821
        %v3651 = vpop.f32.mrf.mxu0
        %v3652 = vadd.f32 %v2895, %v3651
        %v3653 = vpop.f32.mrf.mxu0
        %v3654 = vadd.f32 %v2895, %v3653
        %3655 = vmatmul.bf16.gmra.mxu0 %v2823
        %v3656 = vpop.f32.mrf.mxu0
        %v3657 = vadd.f32 %v2895, %v3656
        %v3658 = vpop.f32.mrf.mxu0
        %v3659 = vadd.f32 %v2895, %v3658
        %3660 = vmatmul.bf16.gmra.mxu0 %v2825
        %v3661 = vpop.f32.mrf.mxu0
        %v3662 = vadd.f32 %v2895, %v3661
        %v3663 = vpop.f32.mrf.mxu0
        %v3664 = vadd.f32 %v2895, %v3663
        %3665 = vdwg.mxu0
        %3666 = vmatpush.bf16.msra.mxu0 %v3155
        %3667 = vmatpush.bf16.msra.mxu0 %v3151
        %3668 = vmatpush.bf16.msra.mxu0 %v3147
        %3669 = vmatpush.bf16.msra.mxu0 %v3143
        %3670 = vmatpush.bf16.msra.mxu0 %v3139
        %3671 = vmatpush.bf16.msra.mxu0 %v3135
        %3672 = vmatpush.bf16.msra.mxu0 %v3131
        %3673 = vmatpush.bf16.msra.mxu0 %v3127
        %3674 = vmatmul.bf16.gmra.mxu0 %v2796
        %v3675 = vpop.f32.mrf.mxu0
        %v3676 = vadd.f32 %v3587, %v3675
        %v3677 = vpop.f32.mrf.mxu0
        %v3678 = vadd.f32 %v3589, %v3677
        %3679 = vmatmul.bf16.gmra.mxu0 %v2798
        %v3680 = vpop.f32.mrf.mxu0
        %v3681 = vadd.f32 %v3592, %v3680
        %v3682 = vpop.f32.mrf.mxu0
        %v3683 = vadd.f32 %v3594, %v3682
        %3684 = vmatmul.bf16.gmra.mxu0 %v2800
        %v3685 = vpop.f32.mrf.mxu0
        %v3686 = vadd.f32 %v3597, %v3685
        %v3687 = vpop.f32.mrf.mxu0
        %v3688 = vadd.f32 %v3599, %v3687
        %3689 = vmatmul.bf16.gmra.mxu0 %v2802
        %v3690 = vpop.f32.mrf.mxu0
        %v3691 = vadd.f32 %v3602, %v3690
        %v3692 = vpop.f32.mrf.mxu0
        %v3693 = vadd.f32 %v3604, %v3692
        %3694 = vmatmul.bf16.gmra.mxu0 %v2804
        %v3695 = vpop.f32.mrf.mxu0
        %v3696 = vadd.f32 %v3607, %v3695
        %v3697 = vpop.f32.mrf.mxu0
        %v3698 = vadd.f32 %v3609, %v3697
        %3699 = vmatmul.bf16.gmra.mxu0 %v2806
        %v3700 = vpop.f32.mrf.mxu0
        %v3701 = vadd.f32 %v3612, %v3700
        %v3702 = vpop.f32.mrf.mxu0
        %v3703 = vadd.f32 %v3614, %v3702
        %3704 = vmatmul.bf16.gmra.mxu0 %v2808
        %v3705 = vpop.f32.mrf.mxu0
        %v3706 = vadd.f32 %v3617, %v3705
        %v3707 = vpop.f32.mrf.mxu0
        %v3708 = vadd.f32 %v3619, %v3707
        %3709 = vmatmul.bf16.gmra.mxu0 %v2810
        %v3710 = vpop.f32.mrf.mxu0
        %v3711 = vadd.f32 %v3622, %v3710
        %v3712 = vpop.f32.mrf.mxu0
        %v3713 = vadd.f32 %v3624, %v3712
        %3714 = vmatmul.bf16.gmra.mxu0 %v2812
        %v3715 = vpop.f32.mrf.mxu0
        %v3716 = vadd.f32 %v3627, %v3715
        %v3717 = vpop.f32.mrf.mxu0
        %v3718 = vadd.f32 %v3629, %v3717
        %3719 = vmatmul.bf16.gmra.mxu0 %v2814
        %v3720 = vpop.f32.mrf.mxu0
        %v3721 = vadd.f32 %v3632, %v3720
        %v3722 = vpop.f32.mrf.mxu0
        %v3723 = vadd.f32 %v3634, %v3722
        %3724 = vmatmul.bf16.gmra.mxu0 %v2816
        %v3725 = vpop.f32.mrf.mxu0
        %v3726 = vadd.f32 %v3637, %v3725
        %v3727 = vpop.f32.mrf.mxu0
        %v3728 = vadd.f32 %v3639, %v3727
        %3729 = vmatmul.bf16.gmra.mxu0 %v2818
        %v3730 = vpop.f32.mrf.mxu0
        %v3731 = vadd.f32 %v3642, %v3730
        %v3732 = vpop.f32.mrf.mxu0
        %v3733 = vadd.f32 %v3644, %v3732
        %3734 = vmatmul.bf16.gmra.mxu0 %v2820
        %v3735 = vpop.f32.mrf.mxu0
        %v3736 = vadd.f32 %v3647, %v3735
        %v3737 = vpop.f32.mrf.mxu0
        %v3738 = vadd.f32 %v3649, %v3737
        %3739 = vmatmul.bf16.gmra.mxu0 %v2822
        %v3740 = vpop.f32.mrf.mxu0
        %v3741 = vadd.f32 %v3652, %v3740
        %v3742 = vpop.f32.mrf.mxu0
        %v3743 = vadd.f32 %v3654, %v3742
        %3744 = vmatmul.bf16.gmra.mxu0 %v2824
        %v3745 = vpop.f32.mrf.mxu0
        %v3746 = vadd.f32 %v3657, %v3745
        %v3747 = vpop.f32.mrf.mxu0
        %v3748 = vadd.f32 %v3659, %v3747
        %3749 = vmatmul.bf16.gmra.mxu0 %v2826
        %v3750 = vpop.f32.mrf.mxu0
        %v3751 = vadd.f32 %v3662, %v3750
        %v3752 = vpop.f32.mrf.mxu0
        %v3753 = vadd.f32 %v3664, %v3752
        %3754 = vdwg.mxu0
        %3755 = vmatpush.bf16.msra.mxu0 %v3124
        %3756 = vmatpush.bf16.msra.mxu0 %v3120
        %3757 = vmatpush.bf16.msra.mxu0 %v3116
        %3758 = vmatpush.bf16.msra.mxu0 %v3112
        %3759 = vmatpush.bf16.msra.mxu0 %v3108
        %3760 = vmatpush.bf16.msra.mxu0 %v3104
        %3761 = vmatpush.bf16.msra.mxu0 %v3100
        %3762 = vmatpush.bf16.msra.mxu0 %v3096
        %3763 = vmatmul.bf16.gmra.mxu0 %v2795
        %v3764 = vpop.f32.mrf.mxu0
        %v3765 = vadd.f32 %v2896, %v3764
        %v3766 = vpop.f32.mrf.mxu0
        %v3767 = vadd.f32 %v2896, %v3766
        %3768 = vmatmul.bf16.gmra.mxu0 %v2797
        %v3769 = vpop.f32.mrf.mxu0
        %v3770 = vadd.f32 %v2896, %v3769
        %v3771 = vpop.f32.mrf.mxu0
        %v3772 = vadd.f32 %v2896, %v3771
        %3773 = vmatmul.bf16.gmra.mxu0 %v2799
        %v3774 = vpop.f32.mrf.mxu0
        %v3775 = vadd.f32 %v2896, %v3774
        %v3776 = vpop.f32.mrf.mxu0
        %v3777 = vadd.f32 %v2896, %v3776
        %3778 = vmatmul.bf16.gmra.mxu0 %v2801
        %v3779 = vpop.f32.mrf.mxu0
        %v3780 = vadd.f32 %v2896, %v3779
        %v3781 = vpop.f32.mrf.mxu0
        %v3782 = vadd.f32 %v2896, %v3781
        %3783 = vmatmul.bf16.gmra.mxu0 %v2803
        %v3784 = vpop.f32.mrf.mxu0
        %v3785 = vadd.f32 %v2896, %v3784
        %v3786 = vpop.f32.mrf.mxu0
        %v3787 = vadd.f32 %v2896, %v3786
        %3788 = vmatmul.bf16.gmra.mxu0 %v2805
        %v3789 = vpop.f32.mrf.mxu0
        %v3790 = vadd.f32 %v2896, %v3789
        %v3791 = vpop.f32.mrf.mxu0
        %v3792 = vadd.f32 %v2896, %v3791
        %3793 = vmatmul.bf16.gmra.mxu0 %v2807
        %v3794 = vpop.f32.mrf.mxu0
        %v3795 = vadd.f32 %v2896, %v3794
        %v3796 = vpop.f32.mrf.mxu0
        %v3797 = vadd.f32 %v2896, %v3796
        %3798 = vmatmul.bf16.gmra.mxu0 %v2809
        %v3799 = vpop.f32.mrf.mxu0
        %v3800 = vadd.f32 %v2896, %v3799
        %v3801 = vpop.f32.mrf.mxu0
        %v3802 = vadd.f32 %v2896, %v3801
        %3803 = vmatmul.bf16.gmra.mxu0 %v2811
        %v3804 = vpop.f32.mrf.mxu0
        %v3805 = vadd.f32 %v2896, %v3804
        %v3806 = vpop.f32.mrf.mxu0
        %v3807 = vadd.f32 %v2896, %v3806
        %3808 = vmatmul.bf16.gmra.mxu0 %v2813
        %v3809 = vpop.f32.mrf.mxu0
        %v3810 = vadd.f32 %v2896, %v3809
        %v3811 = vpop.f32.mrf.mxu0
        %v3812 = vadd.f32 %v2896, %v3811
        %3813 = vmatmul.bf16.gmra.mxu0 %v2815
        %v3814 = vpop.f32.mrf.mxu0
        %v3815 = vadd.f32 %v2896, %v3814
        %v3816 = vpop.f32.mrf.mxu0
        %v3817 = vadd.f32 %v2896, %v3816
        %3818 = vmatmul.bf16.gmra.mxu0 %v2817
        %v3819 = vpop.f32.mrf.mxu0
        %v3820 = vadd.f32 %v2896, %v3819
        %v3821 = vpop.f32.mrf.mxu0
        %v3822 = vadd.f32 %v2896, %v3821
        %3823 = vmatmul.bf16.gmra.mxu0 %v2819
        %v3824 = vpop.f32.mrf.mxu0
        %v3825 = vadd.f32 %v2896, %v3824
        %v3826 = vpop.f32.mrf.mxu0
        %v3827 = vadd.f32 %v2896, %v3826
        %3828 = vmatmul.bf16.gmra.mxu0 %v2821
        %v3829 = vpop.f32.mrf.mxu0
        %v3830 = vadd.f32 %v2896, %v3829
        %v3831 = vpop.f32.mrf.mxu0
        %v3832 = vadd.f32 %v2896, %v3831
        %3833 = vmatmul.bf16.gmra.mxu0 %v2823
        %v3834 = vpop.f32.mrf.mxu0
        %v3835 = vadd.f32 %v2896, %v3834
        %v3836 = vpop.f32.mrf.mxu0
        %v3837 = vadd.f32 %v2896, %v3836
        %3838 = vmatmul.bf16.gmra.mxu0 %v2825
        %v3839 = vpop.f32.mrf.mxu0
        %v3840 = vadd.f32 %v2896, %v3839
        %v3841 = vpop.f32.mrf.mxu0
        %v3842 = vadd.f32 %v2896, %v3841
        %3843 = vdwg.mxu0
        %3844 = vmatpush.bf16.msra.mxu0 %v3156
        %3845 = vmatpush.bf16.msra.mxu0 %v3152
        %3846 = vmatpush.bf16.msra.mxu0 %v3148
        %3847 = vmatpush.bf16.msra.mxu0 %v3144
        %3848 = vmatpush.bf16.msra.mxu0 %v3140
        %3849 = vmatpush.bf16.msra.mxu0 %v3136
        %3850 = vmatpush.bf16.msra.mxu0 %v3132
        %3851 = vmatpush.bf16.msra.mxu0 %v3128
        %3852 = vmatmul.bf16.gmra.mxu0 %v2796
        %v3853 = vpop.f32.mrf.mxu0
        %v3854 = vadd.f32 %v3765, %v3853
        %v3855 = vpop.f32.mrf.mxu0
        %v3856 = vadd.f32 %v3767, %v3855
        %3857 = vmatmul.bf16.gmra.mxu0 %v2798
        %v3858 = vpop.f32.mrf.mxu0
        %v3859 = vadd.f32 %v3770, %v3858
        %v3860 = vpop.f32.mrf.mxu0
        %v3861 = vadd.f32 %v3772, %v3860
        %3862 = vmatmul.bf16.gmra.mxu0 %v2800
        %v3863 = vpop.f32.mrf.mxu0
        %v3864 = vadd.f32 %v3775, %v3863
        %v3865 = vpop.f32.mrf.mxu0
        %v3866 = vadd.f32 %v3777, %v3865
        %3867 = vmatmul.bf16.gmra.mxu0 %v2802
        %v3868 = vpop.f32.mrf.mxu0
        %v3869 = vadd.f32 %v3780, %v3868
        %v3870 = vpop.f32.mrf.mxu0
        %v3871 = vadd.f32 %v3782, %v3870
        %3872 = vmatmul.bf16.gmra.mxu0 %v2804
        %v3873 = vpop.f32.mrf.mxu0
        %v3874 = vadd.f32 %v3785, %v3873
        %v3875 = vpop.f32.mrf.mxu0
        %v3876 = vadd.f32 %v3787, %v3875
        %3877 = vmatmul.bf16.gmra.mxu0 %v2806
        %v3878 = vpop.f32.mrf.mxu0
        %v3879 = vadd.f32 %v3790, %v3878
        %v3880 = vpop.f32.mrf.mxu0
        %v3881 = vadd.f32 %v3792, %v3880
        %3882 = vmatmul.bf16.gmra.mxu0 %v2808
        %v3883 = vpop.f32.mrf.mxu0
        %v3884 = vadd.f32 %v3795, %v3883
        %v3885 = vpop.f32.mrf.mxu0
        %v3886 = vadd.f32 %v3797, %v3885
        %3887 = vmatmul.bf16.gmra.mxu0 %v2810
        %v3888 = vpop.f32.mrf.mxu0
        %v3889 = vadd.f32 %v3800, %v3888
        %v3890 = vpop.f32.mrf.mxu0
        %v3891 = vadd.f32 %v3802, %v3890
        %3892 = vmatmul.bf16.gmra.mxu0 %v2812
        %v3893 = vpop.f32.mrf.mxu0
        %v3894 = vadd.f32 %v3805, %v3893
        %v3895 = vpop.f32.mrf.mxu0
        %v3896 = vadd.f32 %v3807, %v3895
        %3897 = vmatmul.bf16.gmra.mxu0 %v2814
        %v3898 = vpop.f32.mrf.mxu0
        %v3899 = vadd.f32 %v3810, %v3898
        %v3900 = vpop.f32.mrf.mxu0
        %v3901 = vadd.f32 %v3812, %v3900
        %3902 = vmatmul.bf16.gmra.mxu0 %v2816
        %v3903 = vpop.f32.mrf.mxu0
        %v3904 = vadd.f32 %v3815, %v3903
        %v3905 = vpop.f32.mrf.mxu0
        %v3906 = vadd.f32 %v3817, %v3905
        %3907 = vmatmul.bf16.gmra.mxu0 %v2818
        %v3908 = vpop.f32.mrf.mxu0
        %v3909 = vadd.f32 %v3820, %v3908
        %v3910 = vpop.f32.mrf.mxu0
        %v3911 = vadd.f32 %v3822, %v3910
        %3912 = vmatmul.bf16.gmra.mxu0 %v2820
        %v3913 = vpop.f32.mrf.mxu0
        %v3914 = vadd.f32 %v3825, %v3913
        %v3915 = vpop.f32.mrf.mxu0
        %v3916 = vadd.f32 %v3827, %v3915
        %3917 = vmatmul.bf16.gmra.mxu0 %v2822
        %v3918 = vpop.f32.mrf.mxu0
        %v3919 = vadd.f32 %v3830, %v3918
        %v3920 = vpop.f32.mrf.mxu0
        %v3921 = vadd.f32 %v3832, %v3920
        %3922 = vmatmul.bf16.gmra.mxu0 %v2824
        %v3923 = vpop.f32.mrf.mxu0
        %v3924 = vadd.f32 %v3835, %v3923
        %v3925 = vpop.f32.mrf.mxu0
        %v3926 = vadd.f32 %v3837, %v3925
        %3927 = vmatmul.bf16.gmra.mxu0 %v2826
        %v3928 = vpop.f32.mrf.mxu0
        %v3929 = vadd.f32 %v3840, %v3928
        %v3930 = vpop.f32.mrf.mxu0
        %v3931 = vadd.f32 %v3842, %v3930
        %3932 = vdwg.mxu0
        %v3933 = vmax.f32 %v3320, 0.0
        %v3934 = vmax.f32 %v3498, 0.0
        %v3935 = vmax.f32 %v3676, 0.0
        %v3936 = vmax.f32 %v3854, 0.0
        %v3937 = vmax.f32 %v3322, 0.0
        %v3938 = vmax.f32 %v3500, 0.0
        %v3939 = vmax.f32 %v3678, 0.0
        %v3940 = vmax.f32 %v3856, 0.0
        %v3941 = vmax.f32 %v3325, 0.0
        %v3942 = vmax.f32 %v3503, 0.0
        %v3943 = vmax.f32 %v3681, 0.0
        %v3944 = vmax.f32 %v3859, 0.0
        %v3945 = vmax.f32 %v3327, 0.0
        %v3946 = vmax.f32 %v3505, 0.0
        %v3947 = vmax.f32 %v3683, 0.0
        %v3948 = vmax.f32 %v3861, 0.0
        %v3949 = vmax.f32 %v3330, 0.0
        %v3950 = vmax.f32 %v3508, 0.0
        %v3951 = vmax.f32 %v3686, 0.0
        %v3952 = vmax.f32 %v3864, 0.0
        %v3953 = vmax.f32 %v3332, 0.0
        %v3954 = vmax.f32 %v3510, 0.0
        %v3955 = vmax.f32 %v3688, 0.0
        %v3956 = vmax.f32 %v3866, 0.0
        %v3957 = vmax.f32 %v3335, 0.0
        %v3958 = vmax.f32 %v3513, 0.0
        %v3959 = vmax.f32 %v3691, 0.0
        %v3960 = vmax.f32 %v3869, 0.0
        %v3961 = vmax.f32 %v3337, 0.0
        %v3962 = vmax.f32 %v3515, 0.0
        %v3963 = vmax.f32 %v3693, 0.0
        %v3964 = vmax.f32 %v3871, 0.0
        %v3965 = vmax.f32 %v3340, 0.0
        %v3966 = vmax.f32 %v3518, 0.0
        %v3967 = vmax.f32 %v3696, 0.0
        %v3968 = vmax.f32 %v3874, 0.0
        %v3969 = vmax.f32 %v3342, 0.0
        %v3970 = vmax.f32 %v3520, 0.0
        %v3971 = vmax.f32 %v3698, 0.0
        %v3972 = vmax.f32 %v3876, 0.0
        %v3973 = vmax.f32 %v3345, 0.0
        %v3974 = vmax.f32 %v3523, 0.0
        %v3975 = vmax.f32 %v3701, 0.0
        %v3976 = vmax.f32 %v3879, 0.0
        %v3977 = vmax.f32 %v3347, 0.0
        %v3978 = vmax.f32 %v3525, 0.0
        %v3979 = vmax.f32 %v3703, 0.0
        %v3980 = vmax.f32 %v3881, 0.0
        %v3981 = vmax.f32 %v3350, 0.0
        %v3982 = vmax.f32 %v3528, 0.0
        %v3983 = vmax.f32 %v3706, 0.0
        %v3984 = vmax.f32 %v3884, 0.0
        %v3985 = vmax.f32 %v3352, 0.0
        %v3986 = vmax.f32 %v3530, 0.0
        %v3987 = vmax.f32 %v3708, 0.0
        %v3988 = vmax.f32 %v3886, 0.0
        %v3989 = vmax.f32 %v3355, 0.0
        %v3990 = vmax.f32 %v3533, 0.0
        %v3991 = vmax.f32 %v3711, 0.0
        %v3992 = vmax.f32 %v3889, 0.0
        %v3993 = vmax.f32 %v3357, 0.0
        %v3994 = vmax.f32 %v3535, 0.0
        %v3995 = vmax.f32 %v3713, 0.0
        %v3996 = vmax.f32 %v3891, 0.0
        %v3997 = vmax.f32 %v3360, 0.0
        %v3998 = vmax.f32 %v3538, 0.0
        %v3999 = vmax.f32 %v3716, 0.0
        %v4000 = vmax.f32 %v3894, 0.0
        %v4001 = vmax.f32 %v3362, 0.0
        %v4002 = vmax.f32 %v3540, 0.0
        %v4003 = vmax.f32 %v3718, 0.0
        %v4004 = vmax.f32 %v3896, 0.0
        %v4005 = vmax.f32 %v3365, 0.0
        %v4006 = vmax.f32 %v3543, 0.0
        %v4007 = vmax.f32 %v3721, 0.0
        %v4008 = vmax.f32 %v3899, 0.0
        %v4009 = vmax.f32 %v3367, 0.0
        %v4010 = vmax.f32 %v3545, 0.0
        %v4011 = vmax.f32 %v3723, 0.0
        %v4012 = vmax.f32 %v3901, 0.0
        %v4013 = vmax.f32 %v3370, 0.0
        %v4014 = vmax.f32 %v3548, 0.0
        %v4015 = vmax.f32 %v3726, 0.0
        %v4016 = vmax.f32 %v3904, 0.0
        %v4017 = vmax.f32 %v3372, 0.0
        %v4018 = vmax.f32 %v3550, 0.0
        %v4019 = vmax.f32 %v3728, 0.0
        %v4020 = vmax.f32 %v3906, 0.0
        %v4021 = vmax.f32 %v3375, 0.0
        %v4022 = vmax.f32 %v3553, 0.0
        %v4023 = vmax.f32 %v3731, 0.0
        %v4024 = vmax.f32 %v3909, 0.0
        %v4025 = vmax.f32 %v3377, 0.0
        %v4026 = vmax.f32 %v3555, 0.0
        %v4027 = vmax.f32 %v3733, 0.0
        %v4028 = vmax.f32 %v3911, 0.0
        %v4029 = vmax.f32 %v3380, 0.0
        %v4030 = vmax.f32 %v3558, 0.0
        %v4031 = vmax.f32 %v3736, 0.0
        %v4032 = vmax.f32 %v3914, 0.0
        %v4033 = vmax.f32 %v3382, 0.0
        %v4034 = vmax.f32 %v3560, 0.0
        %v4035 = vmax.f32 %v3738, 0.0
        %v4036 = vmax.f32 %v3916, 0.0
        %v4037 = vmax.f32 %v3385, 0.0
        %v4038 = vmax.f32 %v3563, 0.0
        %v4039 = vmax.f32 %v3741, 0.0
        %v4040 = vmax.f32 %v3919, 0.0
        %v4041 = vmax.f32 %v3387, 0.0
        %v4042 = vmax.f32 %v3565, 0.0
        %v4043 = vmax.f32 %v3743, 0.0
        %v4044 = vmax.f32 %v3921, 0.0
        %v4045 = vmax.f32 %v3390, 0.0
        %v4046 = vmax.f32 %v3568, 0.0
        %v4047 = vmax.f32 %v3746, 0.0
        %v4048 = vmax.f32 %v3924, 0.0
        %v4049 = vmax.f32 %v3392, 0.0
        %v4050 = vmax.f32 %v3570, 0.0
        %v4051 = vmax.f32 %v3748, 0.0
        %v4052 = vmax.f32 %v3926, 0.0
        %v4053 = vmax.f32 %v3395, 0.0
        %v4054 = vmax.f32 %v3573, 0.0
        %v4055 = vmax.f32 %v3751, 0.0
        %v4056 = vmax.f32 %v3929, 0.0
        %v4057 = vmax.f32 %v3397, 0.0
        %v4058 = vmax.f32 %v3575, 0.0
        %v4059 = vmax.f32 %v3753, 0.0
        %v4060 = vmax.f32 %v3931, 0.0
        %v4061 = vmax.f32 %v3933, %v3937
        %v4062 = vmax.f32 %v4061, %v3941
        %v4063 = vmax.f32 %v4062, %v3945
        %v4064 = vmax.f32 %v4063, %v3949
        %v4065 = vmax.f32 %v4064, %v3953
        %v4066 = vmax.f32 %v4065, %v3957
        %v4067 = vmax.f32 %v4066, %v3961
        %v4068 = vmax.f32 %v4067, %v3965
        %v4069 = vmax.f32 %v4068, %v3969
        %v4070 = vmax.f32 %v4069, %v3973
        %v4071 = vmax.f32 %v4070, %v3977
        %v4072 = vmax.f32 %v4071, %v3981
        %v4073 = vmax.f32 %v4072, %v3985
        %v4074 = vmax.f32 %v4073, %v3989
        %v4075 = vmax.f32 %v4074, %v3993
        %v4076 = vmax.f32 %v4075, %v3997
        %v4077 = vmax.f32 %v4076, %v4001
        %v4078 = vmax.f32 %v4077, %v4005
        %v4079 = vmax.f32 %v4078, %v4009
        %v4080 = vmax.f32 %v4079, %v4013
        %v4081 = vmax.f32 %v4080, %v4017
        %v4082 = vmax.f32 %v4081, %v4021
        %v4083 = vmax.f32 %v4082, %v4025
        %v4084 = vmax.f32 %v4083, %v4029
        %v4085 = vmax.f32 %v4084, %v4033
        %v4086 = vmax.f32 %v4085, %v4037
        %v4087 = vmax.f32 %v4086, %v4041
        %v4088 = vmax.f32 %v4087, %v4045
        %v4089 = vmax.f32 %v4088, %v4049
        %v4090 = vmax.f32 %v4089, %v4053
        %v4091 = vmax.f32 %v4090, %v4057
        %v4092 = vrot.slane %v4091, 4
        %v4093 = vmax.f32 %v4091, %v4092
        %v4094 = vrot.slane %v4093, 2
        %v4095 = vmax.f32 %v4093, %v4094
        %v4096 = vrot.slane %v4095, 1
        %v4097 = vmax.f32 %v4095, %v4096
        %v4098 = vmax.f32 %v3934, %v3938
        %v4099 = vmax.f32 %v4098, %v3942
        %v4100 = vmax.f32 %v4099, %v3946
        %v4101 = vmax.f32 %v4100, %v3950
        %v4102 = vmax.f32 %v4101, %v3954
        %v4103 = vmax.f32 %v4102, %v3958
        %v4104 = vmax.f32 %v4103, %v3962
        %v4105 = vmax.f32 %v4104, %v3966
        %v4106 = vmax.f32 %v4105, %v3970
        %v4107 = vmax.f32 %v4106, %v3974
        %v4108 = vmax.f32 %v4107, %v3978
        %v4109 = vmax.f32 %v4108, %v3982
        %v4110 = vmax.f32 %v4109, %v3986
        %v4111 = vmax.f32 %v4110, %v3990
        %v4112 = vmax.f32 %v4111, %v3994
        %v4113 = vmax.f32 %v4112, %v3998
        %v4114 = vmax.f32 %v4113, %v4002
        %v4115 = vmax.f32 %v4114, %v4006
        %v4116 = vmax.f32 %v4115, %v4010
        %v4117 = vmax.f32 %v4116, %v4014
        %v4118 = vmax.f32 %v4117, %v4018
        %v4119 = vmax.f32 %v4118, %v4022
        %v4120 = vmax.f32 %v4119, %v4026
        %v4121 = vmax.f32 %v4120, %v4030
        %v4122 = vmax.f32 %v4121, %v4034
        %v4123 = vmax.f32 %v4122, %v4038
        %v4124 = vmax.f32 %v4123, %v4042
        %v4125 = vmax.f32 %v4124, %v4046
        %v4126 = vmax.f32 %v4125, %v4050
        %v4127 = vmax.f32 %v4126, %v4054
        %v4128 = vmax.f32 %v4127, %v4058
        %v4129 = vrot.slane %v4128, 4
        %v4130 = vmax.f32 %v4128, %v4129
        %v4131 = vrot.slane %v4130, 2
        %v4132 = vmax.f32 %v4130, %v4131
        %v4133 = vrot.slane %v4132, 1
        %v4134 = vmax.f32 %v4132, %v4133
        %v4135 = vmax.f32 %v3935, %v3939
        %v4136 = vmax.f32 %v4135, %v3943
        %v4137 = vmax.f32 %v4136, %v3947
        %v4138 = vmax.f32 %v4137, %v3951
        %v4139 = vmax.f32 %v4138, %v3955
        %v4140 = vmax.f32 %v4139, %v3959
        %v4141 = vmax.f32 %v4140, %v3963
        %v4142 = vmax.f32 %v4141, %v3967
        %v4143 = vmax.f32 %v4142, %v3971
        %v4144 = vmax.f32 %v4143, %v3975
        %v4145 = vmax.f32 %v4144, %v3979
        %v4146 = vmax.f32 %v4145, %v3983
        %v4147 = vmax.f32 %v4146, %v3987
        %v4148 = vmax.f32 %v4147, %v3991
        %v4149 = vmax.f32 %v4148, %v3995
        %v4150 = vmax.f32 %v4149, %v3999
        %v4151 = vmax.f32 %v4150, %v4003
        %v4152 = vmax.f32 %v4151, %v4007
        %v4153 = vmax.f32 %v4152, %v4011
        %v4154 = vmax.f32 %v4153, %v4015
        %v4155 = vmax.f32 %v4154, %v4019
        %v4156 = vmax.f32 %v4155, %v4023
        %v4157 = vmax.f32 %v4156, %v4027
        %v4158 = vmax.f32 %v4157, %v4031
        %v4159 = vmax.f32 %v4158, %v4035
        %v4160 = vmax.f32 %v4159, %v4039
        %v4161 = vmax.f32 %v4160, %v4043
        %v4162 = vmax.f32 %v4161, %v4047
        %v4163 = vmax.f32 %v4162, %v4051
        %v4164 = vmax.f32 %v4163, %v4055
        %v4165 = vmax.f32 %v4164, %v4059
        %v4166 = vrot.slane %v4165, 4
        %v4167 = vmax.f32 %v4165, %v4166
        %v4168 = vrot.slane %v4167, 2
        %v4169 = vmax.f32 %v4167, %v4168
        %v4170 = vrot.slane %v4169, 1
        %v4171 = vmax.f32 %v4169, %v4170
        %v4172 = vmax.f32 %v3936, %v3940
        %v4173 = vmax.f32 %v4172, %v3944
        %v4174 = vmax.f32 %v4173, %v3948
        %v4175 = vmax.f32 %v4174, %v3952
        %v4176 = vmax.f32 %v4175, %v3956
        %v4177 = vmax.f32 %v4176, %v3960
        %v4178 = vmax.f32 %v4177, %v3964
        %v4179 = vmax.f32 %v4178, %v3968
        %v4180 = vmax.f32 %v4179, %v3972
        %v4181 = vmax.f32 %v4180, %v3976
        %v4182 = vmax.f32 %v4181, %v3980
        %v4183 = vmax.f32 %v4182, %v3984
        %v4184 = vmax.f32 %v4183, %v3988
        %v4185 = vmax.f32 %v4184, %v3992
        %v4186 = vmax.f32 %v4185, %v3996
        %v4187 = vmax.f32 %v4186, %v4000
        %v4188 = vmax.f32 %v4187, %v4004
        %v4189 = vmax.f32 %v4188, %v4008
        %v4190 = vmax.f32 %v4189, %v4012
        %v4191 = vmax.f32 %v4190, %v4016
        %v4192 = vmax.f32 %v4191, %v4020
        %v4193 = vmax.f32 %v4192, %v4024
        %v4194 = vmax.f32 %v4193, %v4028
        %v4195 = vmax.f32 %v4194, %v4032
        %v4196 = vmax.f32 %v4195, %v4036
        %v4197 = vmax.f32 %v4196, %v4040
        %v4198 = vmax.f32 %v4197, %v4044
        %v4199 = vmax.f32 %v4198, %v4048
        %v4200 = vmax.f32 %v4199, %v4052
        %v4201 = vmax.f32 %v4200, %v4056
        %v4202 = vmax.f32 %v4201, %v4060
        %v4203 = vrot.slane %v4202, 4
        %v4204 = vmax.f32 %v4202, %v4203
        %v4205 = vrot.slane %v4204, 2
        %v4206 = vmax.f32 %v4204, %v4205
        %v4207 = vrot.slane %v4206, 1
        %v4208 = vmax.f32 %v4206, %v4207
        %v4209 = vpack.c.bf16 %v4097, %v4097
        %v4210 = vpack.c.bf16 %v4134, %v4134
        %v4211 = vpack.c.bf16 %v4171, %v4171
        %v4212 = vpack.c.bf16 %v4208, %v4208
        %v4213 = vld [vmem:[%s20] sm:$0xf]
        %v4214 = vld [vmem:[#allocation6] sm:$0xff]
        %v4215 = vld [vmem:[#allocation6 + $0x8] sm:$0xff]
        %v4216 = vld [vmem:[#allocation6 + $0x10] sm:$0xff]
        %v4217 = vld [vmem:[#allocation6 + $0x18] sm:$0xff]
        %v4218 = vld [vmem:[#allocation6 + $0x20] sm:$0xff]
        %v4219 = vld [vmem:[#allocation6 + $0x28] sm:$0xff]
        %v4220 = vld [vmem:[#allocation6 + $0x30] sm:$0xff]
        %v4221 = vld [vmem:[#allocation6 + $0x38] sm:$0xff]
        %v4222 = vld [vmem:[#allocation6 + $0x40] sm:$0xff]
        %v4223 = vld [vmem:[#allocation6 + $0x48] sm:$0xff]
        %v4224 = vld [vmem:[#allocation6 + $0x50] sm:$0xff]
        %v4225 = vld [vmem:[#allocation6 + $0x58] sm:$0xff]
        %v4226 = vld [vmem:[#allocation6 + $0x60] sm:$0xff]
        %v4227 = vld [vmem:[#allocation6 + $0x68] sm:$0xff]
        %v4228 = vld [vmem:[#allocation6 + $0x70] sm:$0xff]
        %v4229 = vld [vmem:[#allocation6 + $0x78] sm:$0xff]
        %v4230 = vld [vmem:[#allocation6 + $0x80] sm:$0xff]
        %v4231 = vld [vmem:[#allocation6 + $0x88] sm:$0xff]
        %v4232 = vld [vmem:[#allocation6 + $0x90] sm:$0xff]
        %v4233 = vld [vmem:[#allocation6 + $0x98] sm:$0xff]
        %v4234 = vld [vmem:[#allocation6 + $0xa0] sm:$0xff]
        %v4235 = vld [vmem:[#allocation6 + $0xa8] sm:$0xff]
        %v4236 = vld [vmem:[#allocation6 + $0xb0] sm:$0xff]
        %v4237 = vld [vmem:[#allocation6 + $0xb8] sm:$0xff]
        %v4238 = vld [vmem:[#allocation6 + $0xc0] sm:$0xff]
        %v4239 = vld [vmem:[#allocation6 + $0xc8] sm:$0xff]
        %v4240 = vld [vmem:[#allocation6 + $0xd0] sm:$0xff]
        %v4241 = vld [vmem:[#allocation6 + $0xd8] sm:$0xff]
        %v4242 = vld [vmem:[#allocation6 + $0xe0] sm:$0xff]
        %v4243 = vld [vmem:[#allocation6 + $0xe8] sm:$0xff]
        %v4244 = vld [vmem:[#allocation6 + $0xf0] sm:$0xff]
        %v4245 = vld [vmem:[#allocation6 + $0xf8] sm:$0xff]
        %v4246 = vld [vmem:[#allocation6 + $0x100] sm:$0xff]
        %v4247 = vld [vmem:[#allocation6 + $0x108] sm:$0xff]
        %v4248 = vld [vmem:[#allocation6 + $0x110] sm:$0xff]
        %v4249 = vld [vmem:[#allocation6 + $0x118] sm:$0xff]
        %v4250 = vld [vmem:[#allocation6 + $0x120] sm:$0xff]
        %v4251 = vld [vmem:[#allocation6 + $0x128] sm:$0xff]
        %v4252 = vld [vmem:[#allocation6 + $0x130] sm:$0xff]
        %v4253 = vld [vmem:[#allocation6 + $0x138] sm:$0xff]
        %v4254 = vld [vmem:[#allocation6 + $0x140] sm:$0xff]
        %v4255 = vld [vmem:[#allocation6 + $0x148] sm:$0xff]
        %v4256 = vld [vmem:[#allocation6 + $0x150] sm:$0xff]
        %v4257 = vld [vmem:[#allocation6 + $0x158] sm:$0xff]
        %v4258 = vld [vmem:[#allocation6 + $0x160] sm:$0xff]
        %v4259 = vld [vmem:[#allocation6 + $0x168] sm:$0xff]
        %v4260 = vld [vmem:[#allocation6 + $0x170] sm:$0xff]
        %v4261 = vld [vmem:[#allocation6 + $0x178] sm:$0xff]
        %v4262 = vld [vmem:[#allocation6 + $0x180] sm:$0xff]
        %v4263 = vld [vmem:[#allocation6 + $0x188] sm:$0xff]
        %v4264 = vld [vmem:[#allocation6 + $0x190] sm:$0xff]
        %v4265 = vld [vmem:[#allocation6 + $0x198] sm:$0xff]
        %v4266 = vld [vmem:[#allocation6 + $0x1a0] sm:$0xff]
        %v4267 = vld [vmem:[#allocation6 + $0x1a8] sm:$0xff]
        %v4268 = vld [vmem:[#allocation6 + $0x1b0] sm:$0xff]
        %v4269 = vld [vmem:[#allocation6 + $0x1b8] sm:$0xff]
        %v4270 = vld [vmem:[#allocation6 + $0x1c0] sm:$0xff]
        %v4271 = vld [vmem:[#allocation6 + $0x1c8] sm:$0xff]
        %v4272 = vld [vmem:[#allocation6 + $0x1d0] sm:$0xff]
        %v4273 = vld [vmem:[#allocation6 + $0x1d8] sm:$0xff]
        %v4274 = vld [vmem:[#allocation6 + $0x1e0] sm:$0xff]
        %v4275 = vld [vmem:[#allocation6 + $0x1e8] sm:$0xff]
        %v4276 = vld [vmem:[#allocation6 + $0x1f0] sm:$0xff]
        %v4277 = vld [vmem:[#allocation6 + $0x1f8] sm:$0xff]
        %v4278 = vld [vmem:[#allocation6 + $0x200] sm:$0xff]
        %v4279 = vld [vmem:[#allocation6 + $0x208] sm:$0xff]
        %v4280 = vld [vmem:[#allocation6 + $0x210] sm:$0xff]
        %v4281 = vld [vmem:[#allocation6 + $0x218] sm:$0xff]
        %v4282 = vld [vmem:[#allocation6 + $0x220] sm:$0xff]
        %v4283 = vld [vmem:[#allocation6 + $0x228] sm:$0xff]
        %v4284 = vld [vmem:[#allocation6 + $0x230] sm:$0xff]
        %v4285 = vld [vmem:[#allocation6 + $0x238] sm:$0xff]
        %v4286 = vld [vmem:[#allocation6 + $0x240] sm:$0xff]
        %v4287 = vld [vmem:[#allocation6 + $0x248] sm:$0xff]
        %v4288 = vld [vmem:[#allocation6 + $0x250] sm:$0xff]
        %v4289 = vld [vmem:[#allocation6 + $0x258] sm:$0xff]
        %v4290 = vld [vmem:[#allocation6 + $0x260] sm:$0xff]
        %v4291 = vld [vmem:[#allocation6 + $0x268] sm:$0xff]
        %v4292 = vld [vmem:[#allocation6 + $0x270] sm:$0xff]
        %v4293 = vld [vmem:[#allocation6 + $0x278] sm:$0xff]
        %v4294 = vld [vmem:[#allocation6 + $0x280] sm:$0xff]
        %v4295 = vld [vmem:[#allocation6 + $0x288] sm:$0xff]
        %v4296 = vld [vmem:[#allocation6 + $0x290] sm:$0xff]
        %v4297 = vld [vmem:[#allocation6 + $0x298] sm:$0xff]
        %v4298 = vld [vmem:[#allocation6 + $0x2a0] sm:$0xff]
        %v4299 = vld [vmem:[#allocation6 + $0x2a8] sm:$0xff]
        %v4300 = vld [vmem:[#allocation6 + $0x2b0] sm:$0xff]
        %v4301 = vld [vmem:[#allocation6 + $0x2b8] sm:$0xff]
        %v4302 = vld [vmem:[#allocation6 + $0x2c0] sm:$0xff]
        %v4303 = vld [vmem:[#allocation6 + $0x2c8] sm:$0xff]
        %v4304 = vld [vmem:[#allocation6 + $0x2d0] sm:$0xff]
        %v4305 = vld [vmem:[#allocation6 + $0x2d8] sm:$0xff]
        %v4306 = vld [vmem:[#allocation6 + $0x2e0] sm:$0xff]
        %v4307 = vld [vmem:[#allocation6 + $0x2e8] sm:$0xff]
        %v4308 = vld [vmem:[#allocation6 + $0x2f0] sm:$0xff]
        %v4309 = vld [vmem:[#allocation6 + $0x2f8] sm:$0xff]
        %v4310 = vld [vmem:[#allocation6 + $0x300] sm:$0xff]
        %v4311 = vld [vmem:[#allocation6 + $0x308] sm:$0xff]
        %v4312 = vld [vmem:[#allocation6 + $0x310] sm:$0xff]
        %v4313 = vld [vmem:[#allocation6 + $0x318] sm:$0xff]
        %v4314 = vld [vmem:[#allocation6 + $0x320] sm:$0xff]
        %v4315 = vld [vmem:[#allocation6 + $0x328] sm:$0xff]
        %v4316 = vld [vmem:[#allocation6 + $0x330] sm:$0xff]
        %v4317 = vld [vmem:[#allocation6 + $0x338] sm:$0xff]
        %v4318 = vld [vmem:[#allocation6 + $0x340] sm:$0xff]
        %v4319 = vld [vmem:[#allocation6 + $0x348] sm:$0xff]
        %v4320 = vld [vmem:[#allocation6 + $0x350] sm:$0xff]
        %v4321 = vld [vmem:[#allocation6 + $0x358] sm:$0xff]
        %v4322 = vld [vmem:[#allocation6 + $0x360] sm:$0xff]
        %v4323 = vld [vmem:[#allocation6 + $0x368] sm:$0xff]
        %v4324 = vld [vmem:[#allocation6 + $0x370] sm:$0xff]
        %v4325 = vld [vmem:[#allocation6 + $0x378] sm:$0xff]
        %v4326 = vld [vmem:[#allocation6 + $0x380] sm:$0xff]
        %v4327 = vld [vmem:[#allocation6 + $0x388] sm:$0xff]
        %v4328 = vld [vmem:[#allocation6 + $0x390] sm:$0xff]
        %v4329 = vld [vmem:[#allocation6 + $0x398] sm:$0xff]
        %v4330 = vld [vmem:[#allocation6 + $0x3a0] sm:$0xff]
        %v4331 = vld [vmem:[#allocation6 + $0x3a8] sm:$0xff]
        %v4332 = vld [vmem:[#allocation6 + $0x3b0] sm:$0xff]
        %v4333 = vld [vmem:[#allocation6 + $0x3b8] sm:$0xff]
        %v4334 = vld [vmem:[#allocation6 + $0x3c0] sm:$0xff]
        %v4335 = vld [vmem:[#allocation6 + $0x3c8] sm:$0xff]
        %v4336 = vld [vmem:[#allocation6 + $0x3d0] sm:$0xff]
        %v4337 = vld [vmem:[#allocation6 + $0x3d8] sm:$0xff]
        %v4338 = vld [vmem:[#allocation6 + $0x3e0] sm:$0xff]
        %v4339 = vld [vmem:[#allocation6 + $0x3e8] sm:$0xff]
        %v4340 = vld [vmem:[#allocation6 + $0x3f0] sm:$0xff]
        %v4341 = vld [vmem:[#allocation6 + $0x3f8] sm:$0xff]
        %v4470 = vunpack.c.l.b16 %v4214
        %v4471 = vunpack.c.h.b16 %v4214
        %v4472 = vunpack.c.l.b16 %v4215
        %v4473 = vunpack.c.h.b16 %v4215
        %v4474 = vunpack.c.l.b16 %v4216
        %v4475 = vunpack.c.h.b16 %v4216
        %v4476 = vunpack.c.l.b16 %v4217
        %v4477 = vunpack.c.h.b16 %v4217
        %v4478 = vunpack.c.l.b16 %v4218
        %v4479 = vunpack.c.h.b16 %v4218
        %v4480 = vunpack.c.l.b16 %v4219
        %v4481 = vunpack.c.h.b16 %v4219
        %v4482 = vunpack.c.l.b16 %v4220
        %v4483 = vunpack.c.h.b16 %v4220
        %v4484 = vunpack.c.l.b16 %v4221
        %v4485 = vunpack.c.h.b16 %v4221
        %v4486 = vunpack.c.l.b16 %v4222
        %v4487 = vunpack.c.h.b16 %v4222
        %v4488 = vunpack.c.l.b16 %v4223
        %v4489 = vunpack.c.h.b16 %v4223
        %v4490 = vunpack.c.l.b16 %v4224
        %v4491 = vunpack.c.h.b16 %v4224
        %v4492 = vunpack.c.l.b16 %v4225
        %v4493 = vunpack.c.h.b16 %v4225
        %v4494 = vunpack.c.l.b16 %v4226
        %v4495 = vunpack.c.h.b16 %v4226
        %v4496 = vunpack.c.l.b16 %v4227
        %v4497 = vunpack.c.h.b16 %v4227
        %v4498 = vunpack.c.l.b16 %v4228
        %v4499 = vunpack.c.h.b16 %v4228
        %v4500 = vunpack.c.l.b16 %v4229
        %v4501 = vunpack.c.h.b16 %v4229
        %v4502 = vunpack.c.l.b16 %v4230
        %v4503 = vunpack.c.h.b16 %v4230
        %v4504 = vunpack.c.l.b16 %v4231
        %v4505 = vunpack.c.h.b16 %v4231
        %v4506 = vunpack.c.l.b16 %v4232
        %v4507 = vunpack.c.h.b16 %v4232
        %v4508 = vunpack.c.l.b16 %v4233
        %v4509 = vunpack.c.h.b16 %v4233
        %v4510 = vunpack.c.l.b16 %v4234
        %v4511 = vunpack.c.h.b16 %v4234
        %v4512 = vunpack.c.l.b16 %v4235
        %v4513 = vunpack.c.h.b16 %v4235
        %v4514 = vunpack.c.l.b16 %v4236
        %v4515 = vunpack.c.h.b16 %v4236
        %v4516 = vunpack.c.l.b16 %v4237
        %v4517 = vunpack.c.h.b16 %v4237
        %v4518 = vunpack.c.l.b16 %v4238
        %v4519 = vunpack.c.h.b16 %v4238
        %v4520 = vunpack.c.l.b16 %v4239
        %v4521 = vunpack.c.h.b16 %v4239
        %v4522 = vunpack.c.l.b16 %v4240
        %v4523 = vunpack.c.h.b16 %v4240
        %v4524 = vunpack.c.l.b16 %v4241
        %v4525 = vunpack.c.h.b16 %v4241
        %v4526 = vunpack.c.l.b16 %v4242
        %v4527 = vunpack.c.h.b16 %v4242
        %v4528 = vunpack.c.l.b16 %v4243
        %v4529 = vunpack.c.h.b16 %v4243
        %v4530 = vunpack.c.l.b16 %v4244
        %v4531 = vunpack.c.h.b16 %v4244
        %v4532 = vunpack.c.l.b16 %v4245
        %v4533 = vunpack.c.h.b16 %v4245
        %v4534 = vunpack.c.l.b16 %v4246
        %v4535 = vunpack.c.h.b16 %v4246
        %v4536 = vunpack.c.l.b16 %v4247
        %v4537 = vunpack.c.h.b16 %v4247
        %v4538 = vunpack.c.l.b16 %v4248
        %v4539 = vunpack.c.h.b16 %v4248
        %v4540 = vunpack.c.l.b16 %v4249
        %v4541 = vunpack.c.h.b16 %v4249
        %v4542 = vunpack.c.l.b16 %v4250
        %v4543 = vunpack.c.h.b16 %v4250
        %v4544 = vunpack.c.l.b16 %v4251
        %v4545 = vunpack.c.h.b16 %v4251
        %v4546 = vunpack.c.l.b16 %v4252
        %v4547 = vunpack.c.h.b16 %v4252
        %v4548 = vunpack.c.l.b16 %v4253
        %v4549 = vunpack.c.h.b16 %v4253
        %v4550 = vunpack.c.l.b16 %v4254
        %v4551 = vunpack.c.h.b16 %v4254
        %v4552 = vunpack.c.l.b16 %v4255
        %v4553 = vunpack.c.h.b16 %v4255
        %v4554 = vunpack.c.l.b16 %v4256
        %v4555 = vunpack.c.h.b16 %v4256
        %v4556 = vunpack.c.l.b16 %v4257
        %v4557 = vunpack.c.h.b16 %v4257
        %v4558 = vunpack.c.l.b16 %v4258
        %v4559 = vunpack.c.h.b16 %v4258
        %v4560 = vunpack.c.l.b16 %v4259
        %v4561 = vunpack.c.h.b16 %v4259
        %v4562 = vunpack.c.l.b16 %v4260
        %v4563 = vunpack.c.h.b16 %v4260
        %v4564 = vunpack.c.l.b16 %v4261
        %v4565 = vunpack.c.h.b16 %v4261
        %v4566 = vunpack.c.l.b16 %v4262
        %v4567 = vunpack.c.h.b16 %v4262
        %v4568 = vunpack.c.l.b16 %v4263
        %v4569 = vunpack.c.h.b16 %v4263
        %v4570 = vunpack.c.l.b16 %v4264
        %v4571 = vunpack.c.h.b16 %v4264
        %v4572 = vunpack.c.l.b16 %v4265
        %v4573 = vunpack.c.h.b16 %v4265
        %v4574 = vunpack.c.l.b16 %v4266
        %v4575 = vunpack.c.h.b16 %v4266
        %v4576 = vunpack.c.l.b16 %v4267
        %v4577 = vunpack.c.h.b16 %v4267
        %v4578 = vunpack.c.l.b16 %v4268
        %v4579 = vunpack.c.h.b16 %v4268
        %v4580 = vunpack.c.l.b16 %v4269
        %v4581 = vunpack.c.h.b16 %v4269
        %v4582 = vunpack.c.l.b16 %v4270
        %v4583 = vunpack.c.h.b16 %v4270
        %v4584 = vunpack.c.l.b16 %v4271
        %v4585 = vunpack.c.h.b16 %v4271
        %v4586 = vunpack.c.l.b16 %v4272
        %v4587 = vunpack.c.h.b16 %v4272
        %v4588 = vunpack.c.l.b16 %v4273
        %v4589 = vunpack.c.h.b16 %v4273
        %v4590 = vunpack.c.l.b16 %v4274
        %v4591 = vunpack.c.h.b16 %v4274
        %v4592 = vunpack.c.l.b16 %v4275
        %v4593 = vunpack.c.h.b16 %v4275
        %v4594 = vunpack.c.l.b16 %v4276
        %v4595 = vunpack.c.h.b16 %v4276
        %v4596 = vunpack.c.l.b16 %v4277
        %v4597 = vunpack.c.h.b16 %v4277
        %v4598 = vunpack.c.l.b16 %v4278
        %v4599 = vunpack.c.h.b16 %v4278
        %v4600 = vunpack.c.l.b16 %v4279
        %v4601 = vunpack.c.h.b16 %v4279
        %v4602 = vunpack.c.l.b16 %v4280
        %v4603 = vunpack.c.h.b16 %v4280
        %v4604 = vunpack.c.l.b16 %v4281
        %v4605 = vunpack.c.h.b16 %v4281
        %v4606 = vunpack.c.l.b16 %v4282
        %v4607 = vunpack.c.h.b16 %v4282
        %v4608 = vunpack.c.l.b16 %v4283
        %v4609 = vunpack.c.h.b16 %v4283
        %v4610 = vunpack.c.l.b16 %v4284
        %v4611 = vunpack.c.h.b16 %v4284
        %v4612 = vunpack.c.l.b16 %v4285
        %v4613 = vunpack.c.h.b16 %v4285
        %v4614 = vunpack.c.l.b16 %v4286
        %v4615 = vunpack.c.h.b16 %v4286
        %v4616 = vunpack.c.l.b16 %v4287
        %v4617 = vunpack.c.h.b16 %v4287
        %v4618 = vunpack.c.l.b16 %v4288
        %v4619 = vunpack.c.h.b16 %v4288
        %v4620 = vunpack.c.l.b16 %v4289
        %v4621 = vunpack.c.h.b16 %v4289
        %v4622 = vunpack.c.l.b16 %v4290
        %v4623 = vunpack.c.h.b16 %v4290
        %v4624 = vunpack.c.l.b16 %v4291
        %v4625 = vunpack.c.h.b16 %v4291
        %v4626 = vunpack.c.l.b16 %v4292
        %v4627 = vunpack.c.h.b16 %v4292
        %v4628 = vunpack.c.l.b16 %v4293
        %v4629 = vunpack.c.h.b16 %v4293
        %v4630 = vunpack.c.l.b16 %v4294
        %v4631 = vunpack.c.h.b16 %v4294
        %v4632 = vunpack.c.l.b16 %v4295
        %v4633 = vunpack.c.h.b16 %v4295
        %v4634 = vunpack.c.l.b16 %v4296
        %v4635 = vunpack.c.h.b16 %v4296
        %v4636 = vunpack.c.l.b16 %v4297
        %v4637 = vunpack.c.h.b16 %v4297
        %v4638 = vunpack.c.l.b16 %v4298
        %v4639 = vunpack.c.h.b16 %v4298
        %v4640 = vunpack.c.l.b16 %v4299
        %v4641 = vunpack.c.h.b16 %v4299
        %v4642 = vunpack.c.l.b16 %v4300
        %v4643 = vunpack.c.h.b16 %v4300
        %v4644 = vunpack.c.l.b16 %v4301
        %v4645 = vunpack.c.h.b16 %v4301
        %v4646 = vunpack.c.l.b16 %v4302
        %v4647 = vunpack.c.h.b16 %v4302
        %v4648 = vunpack.c.l.b16 %v4303
        %v4649 = vunpack.c.h.b16 %v4303
        %v4650 = vunpack.c.l.b16 %v4304
        %v4651 = vunpack.c.h.b16 %v4304
        %v4652 = vunpack.c.l.b16 %v4305
        %v4653 = vunpack.c.h.b16 %v4305
        %v4654 = vunpack.c.l.b16 %v4306
        %v4655 = vunpack.c.h.b16 %v4306
        %v4656 = vunpack.c.l.b16 %v4307
        %v4657 = vunpack.c.h.b16 %v4307
        %v4658 = vunpack.c.l.b16 %v4308
        %v4659 = vunpack.c.h.b16 %v4308
        %v4660 = vunpack.c.l.b16 %v4309
        %v4661 = vunpack.c.h.b16 %v4309
        %v4662 = vunpack.c.l.b16 %v4310
        %v4663 = vunpack.c.h.b16 %v4310
        %v4664 = vunpack.c.l.b16 %v4311
        %v4665 = vunpack.c.h.b16 %v4311
        %v4666 = vunpack.c.l.b16 %v4312
        %v4667 = vunpack.c.h.b16 %v4312
        %v4668 = vunpack.c.l.b16 %v4313
        %v4669 = vunpack.c.h.b16 %v4313
        %v4670 = vunpack.c.l.b16 %v4314
        %v4671 = vunpack.c.h.b16 %v4314
        %v4672 = vunpack.c.l.b16 %v4315
        %v4673 = vunpack.c.h.b16 %v4315
        %v4674 = vunpack.c.l.b16 %v4316
        %v4675 = vunpack.c.h.b16 %v4316
        %v4676 = vunpack.c.l.b16 %v4317
        %v4677 = vunpack.c.h.b16 %v4317
        %v4678 = vunpack.c.l.b16 %v4318
        %v4679 = vunpack.c.h.b16 %v4318
        %v4680 = vunpack.c.l.b16 %v4319
        %v4681 = vunpack.c.h.b16 %v4319
        %v4682 = vunpack.c.l.b16 %v4320
        %v4683 = vunpack.c.h.b16 %v4320
        %v4684 = vunpack.c.l.b16 %v4321
        %v4685 = vunpack.c.h.b16 %v4321
        %v4686 = vunpack.c.l.b16 %v4322
        %v4687 = vunpack.c.h.b16 %v4322
        %v4688 = vunpack.c.l.b16 %v4323
        %v4689 = vunpack.c.h.b16 %v4323
        %v4690 = vunpack.c.l.b16 %v4324
        %v4691 = vunpack.c.h.b16 %v4324
        %v4692 = vunpack.c.l.b16 %v4325
        %v4693 = vunpack.c.h.b16 %v4325
        %v4694 = vunpack.c.l.b16 %v4326
        %v4695 = vunpack.c.h.b16 %v4326
        %v4696 = vunpack.c.l.b16 %v4327
        %v4697 = vunpack.c.h.b16 %v4327
        %v4698 = vunpack.c.l.b16 %v4328
        %v4699 = vunpack.c.h.b16 %v4328
        %v4700 = vunpack.c.l.b16 %v4329
        %v4701 = vunpack.c.h.b16 %v4329
        %v4702 = vunpack.c.l.b16 %v4330
        %v4703 = vunpack.c.h.b16 %v4330
        %v4704 = vunpack.c.l.b16 %v4331
        %v4705 = vunpack.c.h.b16 %v4331
        %v4706 = vunpack.c.l.b16 %v4332
        %v4707 = vunpack.c.h.b16 %v4332
        %v4708 = vunpack.c.l.b16 %v4333
        %v4709 = vunpack.c.h.b16 %v4333
        %v4710 = vunpack.c.l.b16 %v4334
        %v4711 = vunpack.c.h.b16 %v4334
        %v4712 = vunpack.c.l.b16 %v4335
        %v4713 = vunpack.c.h.b16 %v4335
        %v4714 = vunpack.c.l.b16 %v4336
        %v4715 = vunpack.c.h.b16 %v4336
        %v4716 = vunpack.c.l.b16 %v4337
        %v4717 = vunpack.c.h.b16 %v4337
        %v4718 = vunpack.c.l.b16 %v4338
        %v4719 = vunpack.c.h.b16 %v4338
        %v4720 = vunpack.c.l.b16 %v4339
        %v4721 = vunpack.c.h.b16 %v4339
        %v4722 = vunpack.c.l.b16 %v4340
        %v4723 = vunpack.c.h.b16 %v4340
        %v4724 = vunpack.c.l.b16 %v4341
        %v4725 = vunpack.c.h.b16 %v4341
        %v4726 = vpack.c.b16 %v4474, %v4470
        %v4727 = vpack.c.b16 %v4475, %v4471
        %v4728 = vpack.c.b16 %v4476, %v4472
        %v4729 = vpack.c.b16 %v4477, %v4473
        %v4730 = vpack.c.b16 %v4482, %v4478
        %v4731 = vpack.c.b16 %v4483, %v4479
        %v4732 = vpack.c.b16 %v4484, %v4480
        %v4733 = vpack.c.b16 %v4485, %v4481
        %v4734 = vpack.c.b16 %v4490, %v4486
        %v4735 = vpack.c.b16 %v4491, %v4487
        %v4736 = vpack.c.b16 %v4492, %v4488
        %v4737 = vpack.c.b16 %v4493, %v4489
        %v4738 = vpack.c.b16 %v4498, %v4494
        %v4739 = vpack.c.b16 %v4499, %v4495
        %v4740 = vpack.c.b16 %v4500, %v4496
        %v4741 = vpack.c.b16 %v4501, %v4497
        %v4742 = vpack.c.b16 %v4506, %v4502
        %v4743 = vpack.c.b16 %v4507, %v4503
        %v4744 = vpack.c.b16 %v4508, %v4504
        %v4745 = vpack.c.b16 %v4509, %v4505
        %v4746 = vpack.c.b16 %v4514, %v4510
        %v4747 = vpack.c.b16 %v4515, %v4511
        %v4748 = vpack.c.b16 %v4516, %v4512
        %v4749 = vpack.c.b16 %v4517, %v4513
        %v4750 = vpack.c.b16 %v4522, %v4518
        %v4751 = vpack.c.b16 %v4523, %v4519
        %v4752 = vpack.c.b16 %v4524, %v4520
        %v4753 = vpack.c.b16 %v4525, %v4521
        %v4754 = vpack.c.b16 %v4530, %v4526
        %v4755 = vpack.c.b16 %v4531, %v4527
        %v4756 = vpack.c.b16 %v4532, %v4528
        %v4757 = vpack.c.b16 %v4533, %v4529
        %v4758 = vpack.c.b16 %v4538, %v4534
        %v4759 = vpack.c.b16 %v4539, %v4535
        %v4760 = vpack.c.b16 %v4540, %v4536
        %v4761 = vpack.c.b16 %v4541, %v4537
        %v4762 = vpack.c.b16 %v4546, %v4542
        %v4763 = vpack.c.b16 %v4547, %v4543
        %v4764 = vpack.c.b16 %v4548, %v4544
        %v4765 = vpack.c.b16 %v4549, %v4545
        %v4766 = vpack.c.b16 %v4554, %v4550
        %v4767 = vpack.c.b16 %v4555, %v4551
        %v4768 = vpack.c.b16 %v4556, %v4552
        %v4769 = vpack.c.b16 %v4557, %v4553
        %v4770 = vpack.c.b16 %v4562, %v4558
        %v4771 = vpack.c.b16 %v4563, %v4559
        %v4772 = vpack.c.b16 %v4564, %v4560
        %v4773 = vpack.c.b16 %v4565, %v4561
        %v4774 = vpack.c.b16 %v4570, %v4566
        %v4775 = vpack.c.b16 %v4571, %v4567
        %v4776 = vpack.c.b16 %v4572, %v4568
        %v4777 = vpack.c.b16 %v4573, %v4569
        %v4778 = vpack.c.b16 %v4578, %v4574
        %v4779 = vpack.c.b16 %v4579, %v4575
        %v4780 = vpack.c.b16 %v4580, %v4576
        %v4781 = vpack.c.b16 %v4581, %v4577
        %v4782 = vpack.c.b16 %v4586, %v4582
        %v4783 = vpack.c.b16 %v4587, %v4583
        %v4784 = vpack.c.b16 %v4588, %v4584
        %v4785 = vpack.c.b16 %v4589, %v4585
        %v4786 = vpack.c.b16 %v4594, %v4590
        %v4787 = vpack.c.b16 %v4595, %v4591
        %v4788 = vpack.c.b16 %v4596, %v4592
        %v4789 = vpack.c.b16 %v4597, %v4593
        %v4790 = vpack.c.b16 %v4602, %v4598
        %v4791 = vpack.c.b16 %v4603, %v4599
        %v4792 = vpack.c.b16 %v4604, %v4600
        %v4793 = vpack.c.b16 %v4605, %v4601
        %v4794 = vpack.c.b16 %v4610, %v4606
        %v4795 = vpack.c.b16 %v4611, %v4607
        %v4796 = vpack.c.b16 %v4612, %v4608
        %v4797 = vpack.c.b16 %v4613, %v4609
        %v4798 = vpack.c.b16 %v4618, %v4614
        %v4799 = vpack.c.b16 %v4619, %v4615
        %v4800 = vpack.c.b16 %v4620, %v4616
        %v4801 = vpack.c.b16 %v4621, %v4617
        %v4802 = vpack.c.b16 %v4626, %v4622
        %v4803 = vpack.c.b16 %v4627, %v4623
        %v4804 = vpack.c.b16 %v4628, %v4624
        %v4805 = vpack.c.b16 %v4629, %v4625
        %v4806 = vpack.c.b16 %v4634, %v4630
        %v4807 = vpack.c.b16 %v4635, %v4631
        %v4808 = vpack.c.b16 %v4636, %v4632
        %v4809 = vpack.c.b16 %v4637, %v4633
        %v4810 = vpack.c.b16 %v4642, %v4638
        %v4811 = vpack.c.b16 %v4643, %v4639
        %v4812 = vpack.c.b16 %v4644, %v4640
        %v4813 = vpack.c.b16 %v4645, %v4641
        %v4814 = vpack.c.b16 %v4650, %v4646
        %v4815 = vpack.c.b16 %v4651, %v4647
        %v4816 = vpack.c.b16 %v4652, %v4648
        %v4817 = vpack.c.b16 %v4653, %v4649
        %v4818 = vpack.c.b16 %v4658, %v4654
        %v4819 = vpack.c.b16 %v4659, %v4655
        %v4820 = vpack.c.b16 %v4660, %v4656
        %v4821 = vpack.c.b16 %v4661, %v4657
        %v4822 = vpack.c.b16 %v4666, %v4662
        %v4823 = vpack.c.b16 %v4667, %v4663
        %v4824 = vpack.c.b16 %v4668, %v4664
        %v4825 = vpack.c.b16 %v4669, %v4665
        %v4826 = vpack.c.b16 %v4674, %v4670
        %v4827 = vpack.c.b16 %v4675, %v4671
        %v4828 = vpack.c.b16 %v4676, %v4672
        %v4829 = vpack.c.b16 %v4677, %v4673
        %v4830 = vpack.c.b16 %v4682, %v4678
        %v4831 = vpack.c.b16 %v4683, %v4679
        %v4832 = vpack.c.b16 %v4684, %v4680
        %v4833 = vpack.c.b16 %v4685, %v4681
        %v4834 = vpack.c.b16 %v4690, %v4686
        %v4835 = vpack.c.b16 %v4691, %v4687
        %v4836 = vpack.c.b16 %v4692, %v4688
        %v4837 = vpack.c.b16 %v4693, %v4689
        %v4838 = vpack.c.b16 %v4698, %v4694
        %v4839 = vpack.c.b16 %v4699, %v4695
        %v4840 = vpack.c.b16 %v4700, %v4696
        %v4841 = vpack.c.b16 %v4701, %v4697
        %v4842 = vpack.c.b16 %v4706, %v4702
        %v4843 = vpack.c.b16 %v4707, %v4703
        %v4844 = vpack.c.b16 %v4708, %v4704
        %v4845 = vpack.c.b16 %v4709, %v4705
        %v4846 = vpack.c.b16 %v4714, %v4710
        %v4847 = vpack.c.b16 %v4715, %v4711
        %v4848 = vpack.c.b16 %v4716, %v4712
        %v4849 = vpack.c.b16 %v4717, %v4713
        %v4850 = vpack.c.b16 %v4722, %v4718
        %v4851 = vpack.c.b16 %v4723, %v4719
        %v4852 = vpack.c.b16 %v4724, %v4720
        %v4853 = vpack.c.b16 %v4725, %v4721
        %v4983 = vperm.slane %v4213, 0
        %v4984 = vperm.slane %v4213, 1
        %v4985 = vperm.slane %v4213, 2
        %v4986 = vperm.slane %v4213, 3
        %4991 = vmatpush.bf16.msra.mxu0 %v4754
        %4992 = vmatpush.bf16.msra.mxu0 %v4750
        %4993 = vmatpush.bf16.msra.mxu0 %v4746
        %4994 = vmatpush.bf16.msra.mxu0 %v4742
        %4995 = vmatpush.bf16.msra.mxu0 %v4738
        %4996 = vmatpush.bf16.msra.mxu0 %v4734
        %4997 = vmatpush.bf16.msra.mxu0 %v4730
        %4998 = vmatpush.bf16.msra.mxu0 %v4726
        %4999 = vmatmul.bf16.gmra.mxu0 %v4209
        %v5000 = vpop.f32.mrf.mxu0
        %v5001 = vadd.f32 %v4983, %v5000
        %v5002 = vpop.f32.mrf.mxu0
        %5003 = vdwg.mxu0
        %5004 = vmatpush.bf16.msra.mxu0 %v4786
        %5005 = vmatpush.bf16.msra.mxu0 %v4782
        %5006 = vmatpush.bf16.msra.mxu0 %v4778
        %5007 = vmatpush.bf16.msra.mxu0 %v4774
        %5008 = vmatpush.bf16.msra.mxu0 %v4770
        %5009 = vmatpush.bf16.msra.mxu0 %v4766
        %5010 = vmatpush.bf16.msra.mxu0 %v4762
        %5011 = vmatpush.bf16.msra.mxu0 %v4758
        %5012 = vmatmul.bf16.gmra.mxu0 %v4210
        %v5013 = vpop.f32.mrf.mxu0
        %v5014 = vadd.f32 %v5001, %v5013
        %v5015 = vpop.f32.mrf.mxu0
        %5016 = vdwg.mxu0
        %5017 = vmatpush.bf16.msra.mxu0 %v4818
        %5018 = vmatpush.bf16.msra.mxu0 %v4814
        %5019 = vmatpush.bf16.msra.mxu0 %v4810
        %5020 = vmatpush.bf16.msra.mxu0 %v4806
        %5021 = vmatpush.bf16.msra.mxu0 %v4802
        %5022 = vmatpush.bf16.msra.mxu0 %v4798
        %5023 = vmatpush.bf16.msra.mxu0 %v4794
        %5024 = vmatpush.bf16.msra.mxu0 %v4790
        %5025 = vmatmul.bf16.gmra.mxu0 %v4211
        %v5026 = vpop.f32.mrf.mxu0
        %v5027 = vadd.f32 %v5014, %v5026
        %v5028 = vpop.f32.mrf.mxu0
        %5029 = vdwg.mxu0
        %5030 = vmatpush.bf16.msra.mxu0 %v4850
        %5031 = vmatpush.bf16.msra.mxu0 %v4846
        %5032 = vmatpush.bf16.msra.mxu0 %v4842
        %5033 = vmatpush.bf16.msra.mxu0 %v4838
        %5034 = vmatpush.bf16.msra.mxu0 %v4834
        %5035 = vmatpush.bf16.msra.mxu0 %v4830
        %5036 = vmatpush.bf16.msra.mxu0 %v4826
        %5037 = vmatpush.bf16.msra.mxu0 %v4822
        %5038 = vmatmul.bf16.gmra.mxu0 %v4212
        %v5039 = vpop.f32.mrf.mxu0
        %v5040 = vadd.f32 %v5027, %v5039
        %v5041 = vpop.f32.mrf.mxu0
        %5042 = vdwg.mxu0
        %5043 = vmatpush.bf16.msra.mxu0 %v4755
        %5044 = vmatpush.bf16.msra.mxu0 %v4751
        %5045 = vmatpush.bf16.msra.mxu0 %v4747
        %5046 = vmatpush.bf16.msra.mxu0 %v4743
        %5047 = vmatpush.bf16.msra.mxu0 %v4739
        %5048 = vmatpush.bf16.msra.mxu0 %v4735
        %5049 = vmatpush.bf16.msra.mxu0 %v4731
        %5050 = vmatpush.bf16.msra.mxu0 %v4727
        %5051 = vmatmul.bf16.gmra.mxu0 %v4209
        %v5052 = vpop.f32.mrf.mxu0
        %v5053 = vadd.f32 %v4984, %v5052
        %v5054 = vpop.f32.mrf.mxu0
        %5055 = vdwg.mxu0
        %5056 = vmatpush.bf16.msra.mxu0 %v4787
        %5057 = vmatpush.bf16.msra.mxu0 %v4783
        %5058 = vmatpush.bf16.msra.mxu0 %v4779
        %5059 = vmatpush.bf16.msra.mxu0 %v4775
        %5060 = vmatpush.bf16.msra.mxu0 %v4771
        %5061 = vmatpush.bf16.msra.mxu0 %v4767
        %5062 = vmatpush.bf16.msra.mxu0 %v4763
        %5063 = vmatpush.bf16.msra.mxu0 %v4759
        %5064 = vmatmul.bf16.gmra.mxu0 %v4210
        %v5065 = vpop.f32.mrf.mxu0
        %v5066 = vadd.f32 %v5053, %v5065
        %v5067 = vpop.f32.mrf.mxu0
        %5068 = vdwg.mxu0
        %5069 = vmatpush.bf16.msra.mxu0 %v4819
        %5070 = vmatpush.bf16.msra.mxu0 %v4815
        %5071 = vmatpush.bf16.msra.mxu0 %v4811
        %5072 = vmatpush.bf16.msra.mxu0 %v4807
        %5073 = vmatpush.bf16.msra.mxu0 %v4803
        %5074 = vmatpush.bf16.msra.mxu0 %v4799
        %5075 = vmatpush.bf16.msra.mxu0 %v4795
        %5076 = vmatpush.bf16.msra.mxu0 %v4791
        %5077 = vmatmul.bf16.gmra.mxu0 %v4211
        %v5078 = vpop.f32.mrf.mxu0
        %v5079 = vadd.f32 %v5066, %v5078
        %v5080 = vpop.f32.mrf.mxu0
        %5081 = vdwg.mxu0
        %5082 = vmatpush.bf16.msra.mxu0 %v4851
        %5083 = vmatpush.bf16.msra.mxu0 %v4847
        %5084 = vmatpush.bf16.msra.mxu0 %v4843
        %5085 = vmatpush.bf16.msra.mxu0 %v4839
        %5086 = vmatpush.bf16.msra.mxu0 %v4835
        %5087 = vmatpush.bf16.msra.mxu0 %v4831
        %5088 = vmatpush.bf16.msra.mxu0 %v4827
        %5089 = vmatpush.bf16.msra.mxu0 %v4823
        %5090 = vmatmul.bf16.gmra.mxu0 %v4212
        %v5091 = vpop.f32.mrf.mxu0
        %v5092 = vadd.f32 %v5079, %v5091
        %v5093 = vpop.f32.mrf.mxu0
        %5094 = vdwg.mxu0
        %5095 = vmatpush.bf16.msra.mxu0 %v4756
        %5096 = vmatpush.bf16.msra.mxu0 %v4752
        %5097 = vmatpush.bf16.msra.mxu0 %v4748
        %5098 = vmatpush.bf16.msra.mxu0 %v4744
        %5099 = vmatpush.bf16.msra.mxu0 %v4740
        %5100 = vmatpush.bf16.msra.mxu0 %v4736
        %5101 = vmatpush.bf16.msra.mxu0 %v4732
        %5102 = vmatpush.bf16.msra.mxu0 %v4728
        %5103 = vmatmul.bf16.gmra.mxu0 %v4209
        %v5104 = vpop.f32.mrf.mxu0
        %v5105 = vadd.f32 %v4985, %v5104
        %v5106 = vpop.f32.mrf.mxu0
        %5107 = vdwg.mxu0
        %5108 = vmatpush.bf16.msra.mxu0 %v4788
        %5109 = vmatpush.bf16.msra.mxu0 %v4784
        %5110 = vmatpush.bf16.msra.mxu0 %v4780
        %5111 = vmatpush.bf16.msra.mxu0 %v4776
        %5112 = vmatpush.bf16.msra.mxu0 %v4772
        %5113 = vmatpush.bf16.msra.mxu0 %v4768
        %5114 = vmatpush.bf16.msra.mxu0 %v4764
        %5115 = vmatpush.bf16.msra.mxu0 %v4760
        %5116 = vmatmul.bf16.gmra.mxu0 %v4210
        %v5117 = vpop.f32.mrf.mxu0
        %v5118 = vadd.f32 %v5105, %v5117
        %v5119 = vpop.f32.mrf.mxu0
        %5120 = vdwg.mxu0
        %5121 = vmatpush.bf16.msra.mxu0 %v4820
        %5122 = vmatpush.bf16.msra.mxu0 %v4816
        %5123 = vmatpush.bf16.msra.mxu0 %v4812
        %5124 = vmatpush.bf16.msra.mxu0 %v4808
        %5125 = vmatpush.bf16.msra.mxu0 %v4804
        %5126 = vmatpush.bf16.msra.mxu0 %v4800
        %5127 = vmatpush.bf16.msra.mxu0 %v4796
        %5128 = vmatpush.bf16.msra.mxu0 %v4792
        %5129 = vmatmul.bf16.gmra.mxu0 %v4211
        %v5130 = vpop.f32.mrf.mxu0
        %v5131 = vadd.f32 %v5118, %v5130
        %v5132 = vpop.f32.mrf.mxu0
        %5133 = vdwg.mxu0
        %5134 = vmatpush.bf16.msra.mxu0 %v4852
        %5135 = vmatpush.bf16.msra.mxu0 %v4848
        %5136 = vmatpush.bf16.msra.mxu0 %v4844
        %5137 = vmatpush.bf16.msra.mxu0 %v4840
        %5138 = vmatpush.bf16.msra.mxu0 %v4836
        %5139 = vmatpush.bf16.msra.mxu0 %v4832
        %5140 = vmatpush.bf16.msra.mxu0 %v4828
        %5141 = vmatpush.bf16.msra.mxu0 %v4824
        %5142 = vmatmul.bf16.gmra.mxu0 %v4212
        %v5143 = vpop.f32.mrf.mxu0
        %v5144 = vadd.f32 %v5131, %v5143
        %v5145 = vpop.f32.mrf.mxu0
        %5146 = vdwg.mxu0
        %5147 = vmatpush.bf16.msra.mxu0 %v4757
        %5148 = vmatpush.bf16.msra.mxu0 %v4753
        %5149 = vmatpush.bf16.msra.mxu0 %v4749
        %5150 = vmatpush.bf16.msra.mxu0 %v4745
        %5151 = vmatpush.bf16.msra.mxu0 %v4741
        %5152 = vmatpush.bf16.msra.mxu0 %v4737
        %5153 = vmatpush.bf16.msra.mxu0 %v4733
        %5154 = vmatpush.bf16.msra.mxu0 %v4729
        %5155 = vmatmul.bf16.gmra.mxu0 %v4209
        %v5156 = vpop.f32.mrf.mxu0
        %v5157 = vadd.f32 %v4986, %v5156
        %v5158 = vpop.f32.mrf.mxu0
        %5159 = vdwg.mxu0
        %5160 = vmatpush.bf16.msra.mxu0 %v4789
        %5161 = vmatpush.bf16.msra.mxu0 %v4785
        %5162 = vmatpush.bf16.msra.mxu0 %v4781
        %5163 = vmatpush.bf16.msra.mxu0 %v4777
        %5164 = vmatpush.bf16.msra.mxu0 %v4773
        %5165 = vmatpush.bf16.msra.mxu0 %v4769
        %5166 = vmatpush.bf16.msra.mxu0 %v4765
        %5167 = vmatpush.bf16.msra.mxu0 %v4761
        %5168 = vmatmul.bf16.gmra.mxu0 %v4210
        %v5169 = vpop.f32.mrf.mxu0
        %v5170 = vadd.f32 %v5157, %v5169
        %v5171 = vpop.f32.mrf.mxu0
        %5172 = vdwg.mxu0
        %5173 = vmatpush.bf16.msra.mxu0 %v4821
        %5174 = vmatpush.bf16.msra.mxu0 %v4817
        %5175 = vmatpush.bf16.msra.mxu0 %v4813
        %5176 = vmatpush.bf16.msra.mxu0 %v4809
        %5177 = vmatpush.bf16.msra.mxu0 %v4805
        %5178 = vmatpush.bf16.msra.mxu0 %v4801
        %5179 = vmatpush.bf16.msra.mxu0 %v4797
        %5180 = vmatpush.bf16.msra.mxu0 %v4793
        %5181 = vmatmul.bf16.gmra.mxu0 %v4211
        %v5182 = vpop.f32.mrf.mxu0
        %v5183 = vadd.f32 %v5170, %v5182
        %v5184 = vpop.f32.mrf.mxu0
        %5185 = vdwg.mxu0
        %5186 = vmatpush.bf16.msra.mxu0 %v4853
        %5187 = vmatpush.bf16.msra.mxu0 %v4849
        %5188 = vmatpush.bf16.msra.mxu0 %v4845
        %5189 = vmatpush.bf16.msra.mxu0 %v4841
        %5190 = vmatpush.bf16.msra.mxu0 %v4837
        %5191 = vmatpush.bf16.msra.mxu0 %v4833
        %5192 = vmatpush.bf16.msra.mxu0 %v4829
        %5193 = vmatpush.bf16.msra.mxu0 %v4825
        %5194 = vmatmul.bf16.gmra.mxu0 %v4212
        %v5195 = vpop.f32.mrf.mxu0
        %v5196 = vadd.f32 %v5183, %v5195
        %v5197 = vpop.f32.mrf.mxu0
        %5198 = vdwg.mxu0
        %v5199 = vmax.f32 %v5040, 0.0
        %v5200 = vmax.f32 %v5092, 0.0
        %v5201 = vmax.f32 %v5144, 0.0
        %v5202 = vmax.f32 %v5196, 0.0
        %v5203 = vpack.c.bf16 %v5199, %v5199
        %v5204 = vpack.c.bf16 %v5200, %v5200
        %v5205 = vpack.c.bf16 %v5201, %v5201
        %v5206 = vpack.c.bf16 %v5202, %v5202
        %v5207 = vld [vmem:[%s22] sm:$0x3]
        %v5208 = vld [vmem:[#allocation7] sm:$0xff]
        %v5209 = vld [vmem:[#allocation7 + $0x8] sm:$0xff]
        %v5210 = vld [vmem:[#allocation7 + $0x10] sm:$0xff]
        %v5211 = vld [vmem:[#allocation7 + $0x18] sm:$0xff]
        %v5212 = vld [vmem:[#allocation7 + $0x20] sm:$0xff]
        %v5213 = vld [vmem:[#allocation7 + $0x28] sm:$0xff]
        %v5214 = vld [vmem:[#allocation7 + $0x30] sm:$0xff]
        %v5215 = vld [vmem:[#allocation7 + $0x38] sm:$0xff]
        %v5216 = vld [vmem:[#allocation7 + $0x40] sm:$0xff]
        %v5217 = vld [vmem:[#allocation7 + $0x48] sm:$0xff]
        %v5218 = vld [vmem:[#allocation7 + $0x50] sm:$0xff]
        %v5219 = vld [vmem:[#allocation7 + $0x58] sm:$0xff]
        %v5220 = vld [vmem:[#allocation7 + $0x60] sm:$0xff]
        %v5221 = vld [vmem:[#allocation7 + $0x68] sm:$0xff]
        %v5222 = vld [vmem:[#allocation7 + $0x70] sm:$0xff]
        %v5223 = vld [vmem:[#allocation7 + $0x78] sm:$0xff]
        %v5224 = vld [vmem:[#allocation7 + $0x80] sm:$0xff]
        %v5225 = vld [vmem:[#allocation7 + $0x88] sm:$0xff]
        %v5226 = vld [vmem:[#allocation7 + $0x90] sm:$0xff]
        %v5227 = vld [vmem:[#allocation7 + $0x98] sm:$0xff]
        %v5228 = vld [vmem:[#allocation7 + $0xa0] sm:$0xff]
        %v5229 = vld [vmem:[#allocation7 + $0xa8] sm:$0xff]
        %v5230 = vld [vmem:[#allocation7 + $0xb0] sm:$0xff]
        %v5231 = vld [vmem:[#allocation7 + $0xb8] sm:$0xff]
        %v5232 = vld [vmem:[#allocation7 + $0xc0] sm:$0xff]
        %v5233 = vld [vmem:[#allocation7 + $0xc8] sm:$0xff]
        %v5234 = vld [vmem:[#allocation7 + $0xd0] sm:$0xff]
        %v5235 = vld [vmem:[#allocation7 + $0xd8] sm:$0xff]
        %v5236 = vld [vmem:[#allocation7 + $0xe0] sm:$0xff]
        %v5237 = vld [vmem:[#allocation7 + $0xe8] sm:$0xff]
        %v5238 = vld [vmem:[#allocation7 + $0xf0] sm:$0xff]
        %v5239 = vld [vmem:[#allocation7 + $0xf8] sm:$0xff]
        %v5240 = vld [vmem:[#allocation7 + $0x100] sm:$0xff]
        %v5241 = vld [vmem:[#allocation7 + $0x108] sm:$0xff]
        %v5242 = vld [vmem:[#allocation7 + $0x110] sm:$0xff]
        %v5243 = vld [vmem:[#allocation7 + $0x118] sm:$0xff]
        %v5244 = vld [vmem:[#allocation7 + $0x120] sm:$0xff]
        %v5245 = vld [vmem:[#allocation7 + $0x128] sm:$0xff]
        %v5246 = vld [vmem:[#allocation7 + $0x130] sm:$0xff]
        %v5247 = vld [vmem:[#allocation7 + $0x138] sm:$0xff]
        %v5248 = vld [vmem:[#allocation7 + $0x140] sm:$0xff]
        %v5249 = vld [vmem:[#allocation7 + $0x148] sm:$0xff]
        %v5250 = vld [vmem:[#allocation7 + $0x150] sm:$0xff]
        %v5251 = vld [vmem:[#allocation7 + $0x158] sm:$0xff]
        %v5252 = vld [vmem:[#allocation7 + $0x160] sm:$0xff]
        %v5253 = vld [vmem:[#allocation7 + $0x168] sm:$0xff]
        %v5254 = vld [vmem:[#allocation7 + $0x170] sm:$0xff]
        %v5255 = vld [vmem:[#allocation7 + $0x178] sm:$0xff]
        %v5256 = vld [vmem:[#allocation7 + $0x180] sm:$0xff]
        %v5257 = vld [vmem:[#allocation7 + $0x188] sm:$0xff]
        %v5258 = vld [vmem:[#allocation7 + $0x190] sm:$0xff]
        %v5259 = vld [vmem:[#allocation7 + $0x198] sm:$0xff]
        %v5260 = vld [vmem:[#allocation7 + $0x1a0] sm:$0xff]
        %v5261 = vld [vmem:[#allocation7 + $0x1a8] sm:$0xff]
        %v5262 = vld [vmem:[#allocation7 + $0x1b0] sm:$0xff]
        %v5263 = vld [vmem:[#allocation7 + $0x1b8] sm:$0xff]
        %v5264 = vld [vmem:[#allocation7 + $0x1c0] sm:$0xff]
        %v5265 = vld [vmem:[#allocation7 + $0x1c8] sm:$0xff]
        %v5266 = vld [vmem:[#allocation7 + $0x1d0] sm:$0xff]
        %v5267 = vld [vmem:[#allocation7 + $0x1d8] sm:$0xff]
        %v5268 = vld [vmem:[#allocation7 + $0x1e0] sm:$0xff]
        %v5269 = vld [vmem:[#allocation7 + $0x1e8] sm:$0xff]
        %v5270 = vld [vmem:[#allocation7 + $0x1f0] sm:$0xff]
        %v5271 = vld [vmem:[#allocation7 + $0x1f8] sm:$0xff]
        %v5336 = vunpack.c.l.b16 %v5208
        %v5337 = vunpack.c.h.b16 %v5208
        %v5338 = vunpack.c.l.b16 %v5209
        %v5339 = vunpack.c.h.b16 %v5209
        %v5340 = vunpack.c.l.b16 %v5210
        %v5341 = vunpack.c.h.b16 %v5210
        %v5342 = vunpack.c.l.b16 %v5211
        %v5343 = vunpack.c.h.b16 %v5211
        %v5344 = vunpack.c.l.b16 %v5212
        %v5345 = vunpack.c.h.b16 %v5212
        %v5346 = vunpack.c.l.b16 %v5213
        %v5347 = vunpack.c.h.b16 %v5213
        %v5348 = vunpack.c.l.b16 %v5214
        %v5349 = vunpack.c.h.b16 %v5214
        %v5350 = vunpack.c.l.b16 %v5215
        %v5351 = vunpack.c.h.b16 %v5215
        %v5352 = vunpack.c.l.b16 %v5216
        %v5353 = vunpack.c.h.b16 %v5216
        %v5354 = vunpack.c.l.b16 %v5217
        %v5355 = vunpack.c.h.b16 %v5217
        %v5356 = vunpack.c.l.b16 %v5218
        %v5357 = vunpack.c.h.b16 %v5218
        %v5358 = vunpack.c.l.b16 %v5219
        %v5359 = vunpack.c.h.b16 %v5219
        %v5360 = vunpack.c.l.b16 %v5220
        %v5361 = vunpack.c.h.b16 %v5220
        %v5362 = vunpack.c.l.b16 %v5221
        %v5363 = vunpack.c.h.b16 %v5221
        %v5364 = vunpack.c.l.b16 %v5222
        %v5365 = vunpack.c.h.b16 %v5222
        %v5366 = vunpack.c.l.b16 %v5223
        %v5367 = vunpack.c.h.b16 %v5223
        %v5368 = vunpack.c.l.b16 %v5224
        %v5369 = vunpack.c.h.b16 %v5224
        %v5370 = vunpack.c.l.b16 %v5225
        %v5371 = vunpack.c.h.b16 %v5225
        %v5372 = vunpack.c.l.b16 %v5226
        %v5373 = vunpack.c.h.b16 %v5226
        %v5374 = vunpack.c.l.b16 %v5227
        %v5375 = vunpack.c.h.b16 %v5227
        %v5376 = vunpack.c.l.b16 %v5228
        %v5377 = vunpack.c.h.b16 %v5228
        %v5378 = vunpack.c.l.b16 %v5229
        %v5379 = vunpack.c.h.b16 %v5229
        %v5380 = vunpack.c.l.b16 %v5230
        %v5381 = vunpack.c.h.b16 %v5230
        %v5382 = vunpack.c.l.b16 %v5231
        %v5383 = vunpack.c.h.b16 %v5231
        %v5384 = vunpack.c.l.b16 %v5232
        %v5385 = vunpack.c.h.b16 %v5232
        %v5386 = vunpack.c.l.b16 %v5233
        %v5387 = vunpack.c.h.b16 %v5233
        %v5388 = vunpack.c.l.b16 %v5234
        %v5389 = vunpack.c.h.b16 %v5234
        %v5390 = vunpack.c.l.b16 %v5235
        %v5391 = vunpack.c.h.b16 %v5235
        %v5392 = vunpack.c.l.b16 %v5236
        %v5393 = vunpack.c.h.b16 %v5236
        %v5394 = vunpack.c.l.b16 %v5237
        %v5395 = vunpack.c.h.b16 %v5237
        %v5396 = vunpack.c.l.b16 %v5238
        %v5397 = vunpack.c.h.b16 %v5238
        %v5398 = vunpack.c.l.b16 %v5239
        %v5399 = vunpack.c.h.b16 %v5239
        %v5400 = vunpack.c.l.b16 %v5240
        %v5401 = vunpack.c.h.b16 %v5240
        %v5402 = vunpack.c.l.b16 %v5241
        %v5403 = vunpack.c.h.b16 %v5241
        %v5404 = vunpack.c.l.b16 %v5242
        %v5405 = vunpack.c.h.b16 %v5242
        %v5406 = vunpack.c.l.b16 %v5243
        %v5407 = vunpack.c.h.b16 %v5243
        %v5408 = vunpack.c.l.b16 %v5244
        %v5409 = vunpack.c.h.b16 %v5244
        %v5410 = vunpack.c.l.b16 %v5245
        %v5411 = vunpack.c.h.b16 %v5245
        %v5412 = vunpack.c.l.b16 %v5246
        %v5413 = vunpack.c.h.b16 %v5246
        %v5414 = vunpack.c.l.b16 %v5247
        %v5415 = vunpack.c.h.b16 %v5247
        %v5416 = vunpack.c.l.b16 %v5248
        %v5417 = vunpack.c.h.b16 %v5248
        %v5418 = vunpack.c.l.b16 %v5249
        %v5419 = vunpack.c.h.b16 %v5249
        %v5420 = vunpack.c.l.b16 %v5250
        %v5421 = vunpack.c.h.b16 %v5250
        %v5422 = vunpack.c.l.b16 %v5251
        %v5423 = vunpack.c.h.b16 %v5251
        %v5424 = vunpack.c.l.b16 %v5252
        %v5425 = vunpack.c.h.b16 %v5252
        %v5426 = vunpack.c.l.b16 %v5253
        %v5427 = vunpack.c.h.b16 %v5253
        %v5428 = vunpack.c.l.b16 %v5254
        %v5429 = vunpack.c.h.b16 %v5254
        %v5430 = vunpack.c.l.b16 %v5255
        %v5431 = vunpack.c.h.b16 %v5255
        %v5432 = vunpack.c.l.b16 %v5256
        %v5433 = vunpack.c.h.b16 %v5256
        %v5434 = vunpack.c.l.b16 %v5257
        %v5435 = vunpack.c.h.b16 %v5257
        %v5436 = vunpack.c.l.b16 %v5258
        %v5437 = vunpack.c.h.b16 %v5258
        %v5438 = vunpack.c.l.b16 %v5259
        %v5439 = vunpack.c.h.b16 %v5259
        %v5440 = vunpack.c.l.b16 %v5260
        %v5441 = vunpack.c.h.b16 %v5260
        %v5442 = vunpack.c.l.b16 %v5261
        %v5443 = vunpack.c.h.b16 %v5261
        %v5444 = vunpack.c.l.b16 %v5262
        %v5445 = vunpack.c.h.b16 %v5262
        %v5446 = vunpack.c.l.b16 %v5263
        %v5447 = vunpack.c.h.b16 %v5263
        %v5448 = vunpack.c.l.b16 %v5264
        %v5449 = vunpack.c.h.b16 %v5264
        %v5450 = vunpack.c.l.b16 %v5265
        %v5451 = vunpack.c.h.b16 %v5265
        %v5452 = vunpack.c.l.b16 %v5266
        %v5453 = vunpack.c.h.b16 %v5266
        %v5454 = vunpack.c.l.b16 %v5267
        %v5455 = vunpack.c.h.b16 %v5267
        %v5456 = vunpack.c.l.b16 %v5268
        %v5457 = vunpack.c.h.b16 %v5268
        %v5458 = vunpack.c.l.b16 %v5269
        %v5459 = vunpack.c.h.b16 %v5269
        %v5460 = vunpack.c.l.b16 %v5270
        %v5461 = vunpack.c.h.b16 %v5270
        %v5462 = vunpack.c.l.b16 %v5271
        %v5463 = vunpack.c.h.b16 %v5271
        %v5464 = vpack.c.b16 %v5338, %v5336
        %v5465 = vpack.c.b16 %v5339, %v5337
        %v5466 = vpack.c.b16 %v5342, %v5340
        %v5467 = vpack.c.b16 %v5343, %v5341
        %v5468 = vpack.c.b16 %v5346, %v5344
        %v5469 = vpack.c.b16 %v5347, %v5345
        %v5470 = vpack.c.b16 %v5350, %v5348
        %v5471 = vpack.c.b16 %v5351, %v5349
        %v5472 = vpack.c.b16 %v5354, %v5352
        %v5473 = vpack.c.b16 %v5355, %v5353
        %v5474 = vpack.c.b16 %v5358, %v5356
        %v5475 = vpack.c.b16 %v5359, %v5357
        %v5476 = vpack.c.b16 %v5362, %v5360
        %v5477 = vpack.c.b16 %v5363, %v5361
        %v5478 = vpack.c.b16 %v5366, %v5364
        %v5479 = vpack.c.b16 %v5367, %v5365
        %v5480 = vpack.c.b16 %v5370, %v5368
        %v5481 = vpack.c.b16 %v5371, %v5369
        %v5482 = vpack.c.b16 %v5374, %v5372
        %v5483 = vpack.c.b16 %v5375, %v5373
        %v5484 = vpack.c.b16 %v5378, %v5376
        %v5485 = vpack.c.b16 %v5379, %v5377
        %v5486 = vpack.c.b16 %v5382, %v5380
        %v5487 = vpack.c.b16 %v5383, %v5381
        %v5488 = vpack.c.b16 %v5386, %v5384
        %v5489 = vpack.c.b16 %v5387, %v5385
        %v5490 = vpack.c.b16 %v5390, %v5388
        %v5491 = vpack.c.b16 %v5391, %v5389
        %v5492 = vpack.c.b16 %v5394, %v5392
        %v5493 = vpack.c.b16 %v5395, %v5393
        %v5494 = vpack.c.b16 %v5398, %v5396
        %v5495 = vpack.c.b16 %v5399, %v5397
        %v5496 = vpack.c.b16 %v5402, %v5400
        %v5497 = vpack.c.b16 %v5403, %v5401
        %v5498 = vpack.c.b16 %v5406, %v5404
        %v5499 = vpack.c.b16 %v5407, %v5405
        %v5500 = vpack.c.b16 %v5410, %v5408
        %v5501 = vpack.c.b16 %v5411, %v5409
        %v5502 = vpack.c.b16 %v5414, %v5412
        %v5503 = vpack.c.b16 %v5415, %v5413
        %v5504 = vpack.c.b16 %v5418, %v5416
        %v5505 = vpack.c.b16 %v5419, %v5417
        %v5506 = vpack.c.b16 %v5422, %v5420
        %v5507 = vpack.c.b16 %v5423, %v5421
        %v5508 = vpack.c.b16 %v5426, %v5424
        %v5509 = vpack.c.b16 %v5427, %v5425
        %v5510 = vpack.c.b16 %v5430, %v5428
        %v5511 = vpack.c.b16 %v5431, %v5429
        %v5512 = vpack.c.b16 %v5434, %v5432
        %v5513 = vpack.c.b16 %v5435, %v5433
        %v5514 = vpack.c.b16 %v5438, %v5436
        %v5515 = vpack.c.b16 %v5439, %v5437
        %v5516 = vpack.c.b16 %v5442, %v5440
        %v5517 = vpack.c.b16 %v5443, %v5441
        %v5518 = vpack.c.b16 %v5446, %v5444
        %v5519 = vpack.c.b16 %v5447, %v5445
        %v5520 = vpack.c.b16 %v5450, %v5448
        %v5521 = vpack.c.b16 %v5451, %v5449
        %v5522 = vpack.c.b16 %v5454, %v5452
        %v5523 = vpack.c.b16 %v5455, %v5453
        %v5524 = vpack.c.b16 %v5458, %v5456
        %v5525 = vpack.c.b16 %v5459, %v5457
        %v5526 = vpack.c.b16 %v5462, %v5460
        %v5527 = vpack.c.b16 %v5463, %v5461
        %v5593 = vperm.slane %v5207, 0
        %v5594 = vperm.slane %v5207, 1
        %5597 = vmatpush.bf16.msra.mxu0 %v5478
        %5598 = vmatpush.bf16.msra.mxu0 %v5476
        %5599 = vmatpush.bf16.msra.mxu0 %v5474
        %5600 = vmatpush.bf16.msra.mxu0 %v5472
        %5601 = vmatpush.bf16.msra.mxu0 %v5470
        %5602 = vmatpush.bf16.msra.mxu0 %v5468
        %5603 = vmatpush.bf16.msra.mxu0 %v5466
        %5604 = vmatpush.bf16.msra.mxu0 %v5464
        %5605 = vmatmul.bf16.gmra.mxu0 %v5203
        %v5606 = vpop.f32.mrf.mxu0
        %v5607 = vadd.f32 %v5593, %v5606
        %v5608 = vpop.f32.mrf.mxu0
        %5609 = vdwg.mxu0
        %5610 = vmatpush.bf16.msra.mxu0 %v5494
        %5611 = vmatpush.bf16.msra.mxu0 %v5492
        %5612 = vmatpush.bf16.msra.mxu0 %v5490
        %5613 = vmatpush.bf16.msra.mxu0 %v5488
        %5614 = vmatpush.bf16.msra.mxu0 %v5486
        %5615 = vmatpush.bf16.msra.mxu0 %v5484
        %5616 = vmatpush.bf16.msra.mxu0 %v5482
        %5617 = vmatpush.bf16.msra.mxu0 %v5480
        %5618 = vmatmul.bf16.gmra.mxu0 %v5204
        %v5619 = vpop.f32.mrf.mxu0
        %v5620 = vadd.f32 %v5607, %v5619
        %v5621 = vpop.f32.mrf.mxu0
        %5622 = vdwg.mxu0
        %5623 = vmatpush.bf16.msra.mxu0 %v5510
        %5624 = vmatpush.bf16.msra.mxu0 %v5508
        %5625 = vmatpush.bf16.msra.mxu0 %v5506
        %5626 = vmatpush.bf16.msra.mxu0 %v5504
        %5627 = vmatpush.bf16.msra.mxu0 %v5502
        %5628 = vmatpush.bf16.msra.mxu0 %v5500
        %5629 = vmatpush.bf16.msra.mxu0 %v5498
        %5630 = vmatpush.bf16.msra.mxu0 %v5496
        %5631 = vmatmul.bf16.gmra.mxu0 %v5205
        %v5632 = vpop.f32.mrf.mxu0
        %v5633 = vadd.f32 %v5620, %v5632
        %v5634 = vpop.f32.mrf.mxu0
        %5635 = vdwg.mxu0
        %5636 = vmatpush.bf16.msra.mxu0 %v5526
        %5637 = vmatpush.bf16.msra.mxu0 %v5524
        %5638 = vmatpush.bf16.msra.mxu0 %v5522
        %5639 = vmatpush.bf16.msra.mxu0 %v5520
        %5640 = vmatpush.bf16.msra.mxu0 %v5518
        %5641 = vmatpush.bf16.msra.mxu0 %v5516
        %5642 = vmatpush.bf16.msra.mxu0 %v5514
        %5643 = vmatpush.bf16.msra.mxu0 %v5512
        %5644 = vmatmul.bf16.gmra.mxu0 %v5206
        %v5645 = vpop.f32.mrf.mxu0
        %v5646 = vadd.f32 %v5633, %v5645
        %v5647 = vpop.f32.mrf.mxu0
        %5648 = vdwg.mxu0
        %5649 = vmatpush.bf16.msra.mxu0 %v5479
        %5650 = vmatpush.bf16.msra.mxu0 %v5477
        %5651 = vmatpush.bf16.msra.mxu0 %v5475
        %5652 = vmatpush.bf16.msra.mxu0 %v5473
        %5653 = vmatpush.bf16.msra.mxu0 %v5471
        %5654 = vmatpush.bf16.msra.mxu0 %v5469
        %5655 = vmatpush.bf16.msra.mxu0 %v5467
        %5656 = vmatpush.bf16.msra.mxu0 %v5465
        %5657 = vmatmul.bf16.gmra.mxu0 %v5203
        %v5658 = vpop.f32.mrf.mxu0
        %v5659 = vadd.f32 %v5594, %v5658
        %v5660 = vpop.f32.mrf.mxu0
        %5661 = vdwg.mxu0
        %5662 = vmatpush.bf16.msra.mxu0 %v5495
        %5663 = vmatpush.bf16.msra.mxu0 %v5493
        %5664 = vmatpush.bf16.msra.mxu0 %v5491
        %5665 = vmatpush.bf16.msra.mxu0 %v5489
        %5666 = vmatpush.bf16.msra.mxu0 %v5487
        %5667 = vmatpush.bf16.msra.mxu0 %v5485
        %5668 = vmatpush.bf16.msra.mxu0 %v5483
        %5669 = vmatpush.bf16.msra.mxu0 %v5481
        %5670 = vmatmul.bf16.gmra.mxu0 %v5204
        %v5671 = vpop.f32.mrf.mxu0
        %v5672 = vadd.f32 %v5659, %v5671
        %v5673 = vpop.f32.mrf.mxu0
        %5674 = vdwg.mxu0
        %5675 = vmatpush.bf16.msra.mxu0 %v5511
        %5676 = vmatpush.bf16.msra.mxu0 %v5509
        %5677 = vmatpush.bf16.msra.mxu0 %v5507
        %5678 = vmatpush.bf16.msra.mxu0 %v5505
        %5679 = vmatpush.bf16.msra.mxu0 %v5503
        %5680 = vmatpush.bf16.msra.mxu0 %v5501
        %5681 = vmatpush.bf16.msra.mxu0 %v5499
        %5682 = vmatpush.bf16.msra.mxu0 %v5497
        %5683 = vmatmul.bf16.gmra.mxu0 %v5205
        %v5684 = vpop.f32.mrf.mxu0
        %v5685 = vadd.f32 %v5672, %v5684
        %v5686 = vpop.f32.mrf.mxu0
        %5687 = vdwg.mxu0
        %5688 = vmatpush.bf16.msra.mxu0 %v5527
        %5689 = vmatpush.bf16.msra.mxu0 %v5525
        %5690 = vmatpush.bf16.msra.mxu0 %v5523
        %5691 = vmatpush.bf16.msra.mxu0 %v5521
        %5692 = vmatpush.bf16.msra.mxu0 %v5519
        %5693 = vmatpush.bf16.msra.mxu0 %v5517
        %5694 = vmatpush.bf16.msra.mxu0 %v5515
        %5695 = vmatpush.bf16.msra.mxu0 %v5513
        %5696 = vmatmul.bf16.gmra.mxu0 %v5206
        %v5697 = vpop.f32.mrf.mxu0
        %v5698 = vadd.f32 %v5685, %v5697
        %v5699 = vpop.f32.mrf.mxu0
        %5700 = vdwg.mxu0
        %v5701 = vmax.f32 %v5646, 0.0
        %v5702 = vmax.f32 %v5698, 0.0
        %v5703 = vpack.c.bf16 %v5701, %v5701
        %v5704 = vpack.c.bf16 %v5702, %v5702
        %v5705 = vld [vmem:[%s24] sm:$0x1]
        %v5706 = vld [vmem:[%s23] sm:$0xf]
        %v5707 = vld [vmem:[%s23 + $0x4] sm:$0xf]
        %v5708 = vld [vmem:[%s23 + $0x8] sm:$0xf]
        %v5709 = vld [vmem:[%s23 + $0xc] sm:$0xf]
        %v5710 = vld [vmem:[%s23 + $0x10] sm:$0xf]
        %v5711 = vld [vmem:[%s23 + $0x14] sm:$0xf]
        %v5712 = vld [vmem:[%s23 + $0x18] sm:$0xf]
        %v5713 = vld [vmem:[%s23 + $0x1c] sm:$0xf]
        %v5714 = vld [vmem:[%s23 + $0x20] sm:$0xf]
        %v5715 = vld [vmem:[%s23 + $0x24] sm:$0xf]
        %v5716 = vld [vmem:[%s23 + $0x28] sm:$0xf]
        %v5717 = vld [vmem:[%s23 + $0x2c] sm:$0xf]
        %v5718 = vld [vmem:[%s23 + $0x30] sm:$0xf]
        %v5719 = vld [vmem:[%s23 + $0x34] sm:$0xf]
        %v5720 = vld [vmem:[%s23 + $0x38] sm:$0xf]
        %v5721 = vld [vmem:[%s23 + $0x3c] sm:$0xf]
        %v5722 = vld [vmem:[%s23 + $0x40] sm:$0xf]
        %v5723 = vld [vmem:[%s23 + $0x44] sm:$0xf]
        %v5724 = vld [vmem:[%s23 + $0x48] sm:$0xf]
        %v5725 = vld [vmem:[%s23 + $0x4c] sm:$0xf]
        %v5726 = vld [vmem:[%s23 + $0x50] sm:$0xf]
        %v5727 = vld [vmem:[%s23 + $0x54] sm:$0xf]
        %v5728 = vld [vmem:[%s23 + $0x58] sm:$0xf]
        %v5729 = vld [vmem:[%s23 + $0x5c] sm:$0xf]
        %v5730 = vld [vmem:[%s23 + $0x60] sm:$0xf]
        %v5731 = vld [vmem:[%s23 + $0x64] sm:$0xf]
        %v5732 = vld [vmem:[%s23 + $0x68] sm:$0xf]
        %v5733 = vld [vmem:[%s23 + $0x6c] sm:$0xf]
        %v5734 = vld [vmem:[%s23 + $0x70] sm:$0xf]
        %v5735 = vld [vmem:[%s23 + $0x74] sm:$0xf]
        %v5736 = vld [vmem:[%s23 + $0x78] sm:$0xf]
        %v5737 = vld [vmem:[%s23 + $0x7c] sm:$0xf]
        %v5770 = vunpack.c.l.b16 %v5706
        %v5771 = vunpack.c.l.b16 %v5707
        %v5772 = vunpack.c.l.b16 %v5708
        %v5773 = vunpack.c.l.b16 %v5709
        %v5774 = vunpack.c.l.b16 %v5710
        %v5775 = vunpack.c.l.b16 %v5711
        %v5776 = vunpack.c.l.b16 %v5712
        %v5777 = vunpack.c.l.b16 %v5713
        %v5778 = vunpack.c.l.b16 %v5714
        %v5779 = vunpack.c.l.b16 %v5715
        %v5780 = vunpack.c.l.b16 %v5716
        %v5781 = vunpack.c.l.b16 %v5717
        %v5782 = vunpack.c.l.b16 %v5718
        %v5783 = vunpack.c.l.b16 %v5719
        %v5784 = vunpack.c.l.b16 %v5720
        %v5785 = vunpack.c.l.b16 %v5721
        %v5786 = vunpack.c.l.b16 %v5722
        %v5787 = vunpack.c.l.b16 %v5723
        %v5788 = vunpack.c.l.b16 %v5724
        %v5789 = vunpack.c.l.b16 %v5725
        %v5790 = vunpack.c.l.b16 %v5726
        %v5791 = vunpack.c.l.b16 %v5727
        %v5792 = vunpack.c.l.b16 %v5728
        %v5793 = vunpack.c.l.b16 %v5729
        %v5794 = vunpack.c.l.b16 %v5730
        %v5795 = vunpack.c.l.b16 %v5731
        %v5796 = vunpack.c.l.b16 %v5732
        %v5797 = vunpack.c.l.b16 %v5733
        %v5798 = vunpack.c.l.b16 %v5734
        %v5799 = vunpack.c.l.b16 %v5735
        %v5800 = vunpack.c.l.b16 %v5736
        %v5801 = vunpack.c.l.b16 %v5737
        %v5802 = vpack.c.b16 %v5771, %v5770
        %v5803 = vpack.c.b16 %v5773, %v5772
        %v5804 = vpack.c.b16 %v5775, %v5774
        %v5805 = vpack.c.b16 %v5777, %v5776
        %v5806 = vpack.c.b16 %v5779, %v5778
        %v5807 = vpack.c.b16 %v5781, %v5780
        %v5808 = vpack.c.b16 %v5783, %v5782
        %v5809 = vpack.c.b16 %v5785, %v5784
        %v5810 = vpack.c.b16 %v5787, %v5786
        %v5811 = vpack.c.b16 %v5789, %v5788
        %v5812 = vpack.c.b16 %v5791, %v5790
        %v5813 = vpack.c.b16 %v5793, %v5792
        %v5814 = vpack.c.b16 %v5795, %v5794
        %v5815 = vpack.c.b16 %v5797, %v5796
        %v5816 = vpack.c.b16 %v5799, %v5798
        %v5817 = vpack.c.b16 %v5801, %v5800
        %5834 = vmatpush.bf16.msra.mxu0 %v5809
        %5835 = vmatpush.bf16.msra.mxu0 %v5808
        %5836 = vmatpush.bf16.msra.mxu0 %v5807
        %5837 = vmatpush.bf16.msra.mxu0 %v5806
        %5838 = vmatpush.bf16.msra.mxu0 %v5805
        %5839 = vmatpush.bf16.msra.mxu0 %v5804
        %5840 = vmatpush.bf16.msra.mxu0 %v5803
        %5841 = vmatpush.bf16.msra.mxu0 %v5802
        %5842 = vmatmul.bf16.gmra.mxu0 %v5703
        %v5843 = vpop.f32.mrf.mxu0
        %v5844 = vadd.f32 %v5705, %v5843
        %v5845 = vpop.f32.mrf.mxu0
        %5846 = vdwg.mxu0
        %5847 = vmatpush.bf16.msra.mxu0 %v5817
        %5848 = vmatpush.bf16.msra.mxu0 %v5816
        %5849 = vmatpush.bf16.msra.mxu0 %v5815
        %5850 = vmatpush.bf16.msra.mxu0 %v5814
        %5851 = vmatpush.bf16.msra.mxu0 %v5813
        %5852 = vmatpush.bf16.msra.mxu0 %v5812
        %5853 = vmatpush.bf16.msra.mxu0 %v5811
        %5854 = vmatpush.bf16.msra.mxu0 %v5810
        %5855 = vmatmul.bf16.gmra.mxu0 %v5704
        %v5856 = vpop.f32.mrf.mxu0
        %v5857 = vadd.f32 %v5844, %v5856
        %v5858 = vpop.f32.mrf.mxu0
        %5859 = vdwg.mxu0
        %vm5860 = vcmask 237568
        %5861 = vst.msk [vmem:[%s863] sm:$0x1] %vm5860, %v5857
        %p5862 = scmp.lt.s32.totalorder %s41, 1
        %s5863 = scalar_select %p5862, %s41, 1
        %s5864 = scalar_lea.vmem %s25, %s5863
        %p5865 = scmp.lt.s32.totalorder %s41, 1
        %s5866 = scalar_select %p5865, %s41, 1
        %s5867 = scalar_lea.vmem %s26, %s5866
        // Predicated region
        $region137: #{front_pointnet_forward.1} parent=119 // pred_check
          %p5868 = pneg %p589
        $region138: #{front_pointnet_forward.1} parent=119 // pred_check_branch
          %5870 = sbr.rel (%p5868) target = $region140
        $region139: #{front_pointnet_forward.1} parent=119 // pred_region
          _
        $region140: #{front_pointnet_forward.1} parent=119 // pred_fallthru
          _
        // Predicated region
        $region141: #{front_pointnet_forward.1} parent=119 // pred_check
          %p5871 = pneg %p615
        $region142: #{front_pointnet_forward.1} parent=119 // pred_check_branch
          %5873 = sbr.rel (%p5871) target = $region144
        $region143: #{front_pointnet_forward.1} parent=119 // pred_region
          _
        $region144: #{front_pointnet_forward.1} parent=119 // pred_fallthru
          _
      $region120: #{front_pointnet_forward.1} parent=5 // pred_fallthru
        _
      %p5874 = scmp.le.s32.totalorder 2, %s36
      // Predicated region
      $region145: #{front_pointnet_forward.1} parent=5 // pred_check
        %p5875 = pneg %p5874
      $region146: #{front_pointnet_forward.1} parent=5 // pred_check_branch
        %5877 = sbr.rel (%p5875) target = $region148
      $region147: #{front_pointnet_forward.1} parent=5 // pred_region
        %s5878 = ssub.s32 %s36, 2
        // Predicated region
        $region149: #{front_pointnet_forward.1} parent=147 // pred_check
          %p5879 = pneg %p595
        $region150: #{front_pointnet_forward.1} parent=147 // pred_check_branch
          %5881 = sbr.rel (%p5879) target = $region152
        $region151: #{front_pointnet_forward.1} parent=147 // pred_region
          %p5882 = scmp.lt.s32.totalorder %s42, 1
          %s5883 = scalar_select %p5882, %s42, 1
          %s5884 = scalar_lea.vmem %s25, %s5883
        $region152: #{front_pointnet_forward.1} parent=147 // pred_fallthru
          _
        // Predicated region
        $region153: #{front_pointnet_forward.1} parent=147 // pred_check
          %p5885 = pneg %p621
        $region154: #{front_pointnet_forward.1} parent=147 // pred_check_branch
          %5887 = sbr.rel (%p5885) target = $region156
        $region155: #{front_pointnet_forward.1} parent=147 // pred_region
          %p5888 = scmp.lt.s32.totalorder %s42, 1
          %s5889 = scalar_select %p5888, %s42, 1
          %s5890 = scalar_lea.vmem %s26, %s5889
        $region156: #{front_pointnet_forward.1} parent=147 // pred_fallthru
          _
      $region148: #{front_pointnet_forward.1} parent=5 // pred_fallthru
        _
    $region6: #{front_pointnet_forward.1} parent=1 // loop_footer
      %s40 = sadd.s32 1, %s36
    $region7: #{front_pointnet_forward.1} parent=1 // loop_footer_branch
      %35 = sbr.rel target = $region3
    $region8: #{front_pointnet_forward.1} parent=1 // loop_exit
      _
    %5891 = vsyncpa [#allocation3], 1
    %s5892 = scalar_lea.sflag [#allocation3], 1
    %5893 = vsyncpa %s5892, 1
    %5894 = vsyncpa [#allocation5], 1
    %5895 = vsyncpa [#allocation8], 1

</llo_original>
